<compile_context>
chip_gen: v7x
topology: tpu7x:2x2x1
jax: 0.10.0
libtpu: 0.0.40
codegen_flags: <defaults>
</compile_context>

<pallas_src>
import functools

import jax
import jax.numpy as jnp
from jax.experimental import pallas as pl
from jax.experimental.pallas import tpu as pltpu

LANE = 128


# ----------------------------------------------------------------------------- kernels
def _fused_propagate_kernel(a_ref, x_ref, w_ref, b_ref, o_ref, acc_ref, *,
                            apply_relu, tk, x_resident):
    """OUT[i] = sum_k A[i,k] @ (X[k] @ W)  (+ bias [+ relu] at the final k).

    a_ref : (tm, tk) bf16 A_hat tile (dominant HBM stream)
    x_ref : (n, fin) resident  OR  (tk, fin) streamed feature tile (bf16)
    w_ref : (fin, f) bf16 weight, VMEM-resident
    b_ref : (1, f)   f32 bias, VMEM-resident
    acc_ref: (tm, f) f32 accumulator scratch
    """
    k = pl.program_id(1)

    @pl.when(k == 0)
    def _():
        acc_ref[...] = jnp.zeros_like(acc_ref)

    if x_resident:
        start = pl.multiple_of(k * tk, tk)
        x_blk = x_ref[pl.ds(start, tk), :]
    else:
        x_blk = x_ref[...]

    # Fused tiny feature GEMM (hides under the HBM-bound A stream).
    m = jnp.dot(x_blk, w_ref[...], preferred_element_type=jnp.float32)
    m = m.astype(x_blk.dtype)

    acc_ref[...] += jnp.dot(a_ref[...], m, preferred_element_type=jnp.float32)

    @pl.when(k == pl.num_programs(1) - 1)
    def _():
        out = acc_ref[...] + b_ref[...]
        if apply_relu:
            out = jnp.maximum(out, 0.0)
        o_ref[...] = out.astype(o_ref.dtype)


# ----------------------------------------------------------------------------- wrappers
def _vmem_budget_bytes():
    """Generation-aware scoped-VMEM budget (v7x has 64 MiB physical, v5e/v6e 128)."""
    cap = 64 * 1024 * 1024
    try:
        cap = int(pltpu.get_tpu_info().vmem_capacity_bytes)
    except Exception:
        pass
    if cap >= 128 * 1024 * 1024:
        return 96 * 1024 * 1024
    return 48 * 1024 * 1024


def _pick_tiles(n):
    """tm = min(512, n//2) so >=2 row tiles feed both v7x TCs; tk as large as fits."""
    assert n % 128 == 0, "node count must be a multiple of 128 (pad the graph)"
    tm = max(128, min(512, n // 2))
    tm = (tm // 128) * 128
    while n % tm:
        tm -= 128
    tk = min(1024, n)
    while n % tk:
        tk -= 128
    return tm, tk


def propagate_fused(a_hat, x_feat, w, bias, *, tm, tk, apply_relu, out_dtype,
                    vmem_budget):
    """One GCNConv layer: out = A_hat @ (x_feat @ w) + bias  (optional relu)."""
    n = a_hat.shape[0]
    fin = x_feat.shape[1]
    f = w.shape[1]
    assert a_hat.shape[1] == n and x_feat.shape[0] == n and w.shape[0] == fin
    assert bias.shape == (1, f)
    assert n % tm == 0 and n % tk == 0

    x_isz = jnp.dtype(x_feat.dtype).itemsize
    a_isz = jnp.dtype(a_hat.dtype).itemsize
    o_isz = jnp.dtype(out_dtype).itemsize
    # Conservative VMEM estimate assuming double-buffering of every BlockSpec.
    est_resident = (2 * tm * tk * a_isz            # A_hat tiles
                    + 2 * n * fin * x_isz          # resident features
                    + 2 * fin * f * x_isz          # W
                    + 2 * f * 4                    # bias
                    + 2 * tm * f * o_isz           # output tile
                    + tm * f * 4)                  # f32 accumulator
    x_resident = est_resident <= vmem_budget

    if x_resident:
        # Constant block index -> single DMA, features live in VMEM for the whole call.
        x_spec = pl.BlockSpec((n, fin), lambda i, k: (0, 0))
    else:
        # Fallback: stream (tk, fin) tiles along the reduction axis (large tk keeps the
        # per-row-tile re-stream small relative to the A_hat traffic).
        x_spec = pl.BlockSpec((tk, fin), lambda i, k: (k, 0))

    kernel = functools.partial(_fused_propagate_kernel, apply_relu=apply_relu,
                               tk=tk, x_resident=x_resident)

    return pl.pallas_call(
        kernel,
        out_shape=jax.ShapeDtypeStruct((n, f), out_dtype),
        grid_spec=pltpu.PrefetchScalarGridSpec(
            num_scalar_prefetch=0,
            grid=(n // tm, n // tk),                           # reduction axis last
            in_specs=[
                pl.BlockSpec((tm, tk), lambda i, k: (i, k)),   # A_hat tile
                x_spec,                                        # features
                pl.BlockSpec((fin, f), lambda i, k: (0, 0)),   # W resident
                pl.BlockSpec((1, f), lambda i, k: (0, 0)),     # bias resident
            ],
            out_specs=pl.BlockSpec((tm, f), lambda i, k: (i, 0)),
            scratch_shapes=[pltpu.VMEM((tm, f), jnp.float32)],
        ),
        compiler_params=pltpu.CompilerParams(
            dimension_semantics=("parallel", "arbitrary"),
            vmem_limit_bytes=vmem_budget,
        ),
    )(a_hat, x_feat, w, bias)


def gcn_forward(a_hat_bf16, x_bf16, w1, b1, w2, b2, *, tm=None, tk=None):
    """Forward of the 2-layer GCN.

    a_hat_bf16 : (N, N)   bf16 normalized adjacency
    x_bf16     : (N, Fin) bf16 node features (Fin need NOT be lane-padded)
    w1         : (Fin, Fp) bf16 GCNConv-1 weight, output dim zero-padded to 128
    b1         : (1, Fp)  f32  zero-padded bias
    w2         : (Fp, Fp) bf16 GCNConv-2 weight, zero-padded
    b2         : (1, Fp)  f32  zero-padded bias
    returns (N, Fp) f32 logits (padded columns are exactly zero).
    """
    n = a_hat_bf16.shape[0]
    tm_d, tk_d = _pick_tiles(n)
    tm = tm or tm_d
    tk = tk or tk_d
    budget = _vmem_budget_bytes()

    # ---- layer 1: H = relu(A_hat @ (X @ W1) + b1) ----
    h = propagate_fused(a_hat_bf16, x_bf16, w1, b1, tm=tm, tk=tk,
                        apply_relu=True, out_dtype=jnp.bfloat16, vmem_budget=budget)
    # TODO(synk): F.dropout(x, training=self.training) — eval-mode identity here.
    # ---- layer 2: OUT = A_hat @ (H @ W2) + b2 ----
    out = propagate_fused(a_hat_bf16, h, w2, b2, tm=tm, tk=tk,
                          apply_relu=False, out_dtype=jnp.float32, vmem_budget=budget)
    return out


# ----------------------------------------------------------------------------- glue
def build_normalized_adj(edge_index, num_nodes):
    """Dense GCN normalization: A_hat = D^{-1/2} (A + I) D^{-1/2}.

    .set() for edges and the diagonal so duplicate edges / self-loops don't
    double-count (binary-adjacency semantics).
    TODO(synk): builds a dense f32 (N,N) on device — fine for the demo, go sparse /
                build directly in bf16 for production graph sizes.
    """
    src, dst = edge_index[0], edge_index[1]
    a = jnp.zeros((num_nodes, num_nodes), jnp.float32)
    a = a.at[dst, src].set(1.0)                               # message src -> dst
    idx = jnp.arange(num_nodes)
    a = a.at[idx, idx].set(1.0)                               # self-loops
    deg = a.sum(axis=1)
    d_inv_sqrt = jnp.where(deg > 0, 1.0 / jnp.sqrt(deg), 0.0)
    return d_inv_sqrt[:, None] * a * d_inv_sqrt[None, :]


def _pad2d(a, shape):
    return jnp.pad(a, ((0, shape[0] - a.shape[0]), (0, shape[1] - a.shape[1])))


def reference_forward(a_hat_bf16, x_bf16, w1, b1, w2, b2):
    """Pure-JAX reference following the same bf16-input / f32-accumulate path."""
    hi = jax.lax.Precision.HIGHEST
    f32 = lambda t: t.astype(jnp.float32)
    rebf = lambda t: t.astype(jnp.bfloat16).astype(jnp.float32)
    a = f32(a_hat_bf16)
    xw1 = rebf(jnp.dot(f32(x_bf16), f32(w1), precision=hi))
    h = rebf(jnp.maximum(jnp.dot(a, xw1, precision=hi) + b1, 0.0))
    hw2 = rebf(jnp.dot(h, f32(w2), precision=hi))
    return jnp.dot(a, hw2, precision=hi) + b2


# ----------------------------------------------------------------------------- demo
if __name__ == "__main__":
    key = jax.random.PRNGKey(0)

    # Small-but-tileable synthetic graph (original module loads the Elliptic dataset).
    num_nodes = 512            # multiple of 128 so row/reduction tiles divide evenly
    num_edges = 2048
    in_channels = 64
    hidden = 16
    num_classes = 3

    k_x, k_src, k_dst, k_w1, k_w2 = jax.random.split(key, 5)

    x = jax.random.normal(k_x, (num_nodes, in_channels), jnp.float32)
    edge_index = jnp.stack(
        [
            jax.random.randint(k_src, (num_edges,), 0, num_nodes),
            jax.random.randint(k_dst, (num_edges,), 0, num_nodes),
        ],
        axis=0,
    )

    def glorot(k, fan_in, fan_out):
        limit = jnp.sqrt(6.0 / (fan_in + fan_out))
        return jax.random.uniform(k, (fan_in, fan_out), jnp.float32, -limit, limit)

    w1 = glorot(k_w1, in_channels, hidden)          # GCNConv(in, 16)
    b1 = jnp.zeros((1, hidden), jnp.float32)
    w2 = glorot(k_w2, hidden, num_classes)          # GCNConv(16, C)
    b2 = jnp.zeros((1, num_classes), jnp.float32)

    a_hat = build_normalized_adj(edge_index, num_nodes)
    a_bf16 = a_hat.astype(jnp.bfloat16)             # halve HBM traffic of dominant tensor

    # Inputs: X keeps its natural feature dim (64); only OUTPUT feature dims are
    # lane-padded to 128 (zero bias padding keeps padded columns exactly zero).
    x_bf16 = x.astype(jnp.bfloat16)
    w1_p = _pad2d(w1, (in_channels, LANE)).astype(jnp.bfloat16)
    b1_p = _pad2d(b1, (1, LANE))
    w2_p = _pad2d(w2, (LANE, LANE)).astype(jnp.bfloat16)
    b2_p = _pad2d(b2, (1, LANE))

    fwd = jax.jit(gcn_forward)
    out_p = fwd(a_bf16, x_bf16, w1_p, b1_p, w2_p, b2_p)
    jax.block_until_ready(out_p)
    out = out_p[:, :num_classes]

    out_ref = reference_forward(a_bf16, x_bf16, w1_p, b1_p, w2_p, b2_p)[:, :num_classes]
    assert out.shape == (num_nodes, num_classes)
    assert jnp.allclose(out, out_ref, atol=1e-2, rtol=1e-2), float(
        jnp.max(jnp.abs(out - out_ref))
    )

    print("KERNEL_OK")
</pallas_src>

<mosaic_0001>
module attributes {stable_mosaic.version = 11 : i64} {
  func.func @_fused_propagate_kernel(%arg0: i32, %arg1: i32, %arg2: memref<256x512xbf16, #tpu.memory_space<vmem>>, %arg3: memref<512x128xbf16, #tpu.memory_space<vmem>>, %arg4: memref<128x128xbf16, #tpu.memory_space<vmem>>, %arg5: memref<1x128xf32, #tpu.memory_space<vmem>>, %arg6: memref<256x128xf32, #tpu.memory_space<vmem>>, %arg7: memref<256x128xf32, #tpu.memory_space<vmem>>) attributes {dimension_semantics = [#tpu.dimension_semantics<parallel>, #tpu.dimension_semantics<arbitrary>], iteration_bounds = array<i64: 2, 1>, scalar_prefetch = 0 : i64, scratch_operands = 1 : i64, tpu.core_type = #tpu.core_type<tc>, window_params = [{transform_indices = @transform_0, window_bounds = array<i64: 256, 512>}, {pipeline_mode = #tpu.pipeline_mode<synchronous>, transform_indices = @transform_1, window_bounds = array<i64: 512, 128>}, {pipeline_mode = #tpu.pipeline_mode<synchronous>, transform_indices = @transform_2, window_bounds = array<i64: 128, 128>}, {pipeline_mode = #tpu.pipeline_mode<synchronous>, transform_indices = @transform_3, window_bounds = array<i64: 1, 128>}, {transform_indices = @transform_4, window_bounds = array<i64: 256, 128>}]} {
    %c0_i32 = arith.constant 0 : i32
    %0 = arith.cmpi eq, %arg1, %c0_i32 : i32
    %1 = arith.extui %0 : i1 to i32
    %c0_i32_0 = arith.constant 0 : i32
    %2 = arith.cmpi ne, %1, %c0_i32_0 : i32
    scf.if %2 {
      %cst_12 = arith.constant 0.000000e+00 : f32
      %18 = vector.broadcast %cst_12 : f32 to vector<256x128xf32>
      %c0_13 = arith.constant 0 : index
      %c0_14 = arith.constant 0 : index
      %19 = vector.load %arg7[%c0_13, %c0_14] : memref<256x128xf32, #tpu.memory_space<vmem>>, vector<256x128xf32>
      tpu.vector_store %arg7[%c0_13, %c0_14], %18 {strides = array<i32>} : memref<256x128xf32, #tpu.memory_space<vmem>>, vector<256x128xf32>,
    } else {
    }
    %c512_i32 = arith.constant 512 : i32
    %3 = arith.muli %arg1, %c512_i32 : i32
    %4 = tpu.assume_multiple %3, 512 : i32
    %5 = arith.index_cast %4 : i32 to index
    %c0 = arith.constant 0 : index
    %6 = vector.load %arg3[%5, %c0] : memref<512x128xbf16, #tpu.memory_space<vmem>>, vector<512x128xbf16>
    %c0_1 = arith.constant 0 : index
    %c0_2 = arith.constant 0 : index
    %7 = vector.load %arg4[%c0_1, %c0_2] : memref<128x128xbf16, #tpu.memory_space<vmem>>, vector<128x128xbf16>
    %cst = arith.constant dense<0.000000e+00> : vector<512x128xf32>
    %8 = tpu.matmul %6, %7, %cst {dimension_numbers = #tpu.dot_dimension_numbers<[1], [0], [0], [1], [0, 0, 1, 1], [], []>} : vector<512x128xbf16>, vector<128x128xbf16>, vector<512x128xf32> -> vector<512x128xf32>
    %9 = arith.truncf %8 : vector<512x128xf32> to vector<512x128xbf16>
    %c0_3 = arith.constant 0 : index
    %c0_4 = arith.constant 0 : index
    %10 = vector.load %arg7[%c0_3, %c0_4] : memref<256x128xf32, #tpu.memory_space<vmem>>, vector<256x128xf32>
    %c0_5 = arith.constant 0 : index
    %c0_6 = arith.constant 0 : index
    %11 = vector.load %arg2[%c0_5, %c0_6] : memref<256x512xbf16, #tpu.memory_space<vmem>>, vector<256x512xbf16>
    %cst_7 = arith.constant dense<0.000000e+00> : vector<256x128xf32>
    %12 = tpu.matmul %11, %9, %cst_7 {dimension_numbers = #tpu.dot_dimension_numbers<[1], [0], [0], [1], [0, 0, 1, 1], [], []>} : vector<256x512xbf16>, vector<512x128xbf16>, vector<256x128xf32> -> vector<256x128xf32>
    %13 = arith.addf %10, %12 : vector<256x128xf32>
    %c0_8 = arith.constant 0 : index
    %c0_9 = arith.constant 0 : index
    %14 = vector.load %arg7[%c0_8, %c0_9] : memref<256x128xf32, #tpu.memory_space<vmem>>, vector<256x128xf32>
    tpu.vector_store %arg7[%c0_8, %c0_9], %13 {strides = array<i32>} : memref<256x128xf32, #tpu.memory_space<vmem>>, vector<256x128xf32>,
    %c0_i32_10 = arith.constant 0 : i32
    %15 = arith.cmpi eq, %arg1, %c0_i32_10 : i32
    %16 = arith.extui %15 : i1 to i32
    %c0_i32_11 = arith.constant 0 : i32
    %17 = arith.cmpi ne, %16, %c0_i32_11 : i32
    scf.if %17 {
      %c0_12 = arith.constant 0 : index
      %c0_13 = arith.constant 0 : index
      %18 = vector.load %arg7[%c0_12, %c0_13] : memref<256x128xf32, #tpu.memory_space<vmem>>, vector<256x128xf32>
      %c0_14 = arith.constant 0 : index
      %c0_15 = arith.constant 0 : index
      %19 = vector.load %arg5[%c0_14, %c0_15] : memref<1x128xf32, #tpu.memory_space<vmem>>, vector<1x128xf32>
      %20 = vector.broadcast %19 : vector<1x128xf32> to vector<256x128xf32>
      %21 = arith.addf %18, %20 : vector<256x128xf32>
      %c0_16 = arith.constant 0 : index
      %c0_17 = arith.constant 0 : index
      %22 = vector.load %arg6[%c0_16, %c0_17] : memref<256x128xf32, #tpu.memory_space<vmem>>, vector<256x128xf32>
      tpu.vector_store %arg6[%c0_16, %c0_17], %21 {strides = array<i32>} : memref<256x128xf32, #tpu.memory_space<vmem>>, vector<256x128xf32>,
    } else {
    }
    return
  }
  func.func @transform_0(%arg0: i32, %arg1: i32) -> (i32, i32) {
    %c0_i32 = arith.constant 0 : i32
    return %arg0, %arg1 : i32, i32
  }
  func.func @transform_1(%arg0: i32, %arg1: i32) -> (i32, i32) {
    %c0_i32 = arith.constant 0 : i32
    %c0_i32_0 = arith.constant 0 : i32
    %c0_i32_1 = arith.constant 0 : i32
    return %c0_i32, %c0_i32_0 : i32, i32
  }
  func.func @transform_2(%arg0: i32, %arg1: i32) -> (i32, i32) {
    %c0_i32 = arith.constant 0 : i32
    %c0_i32_0 = arith.constant 0 : i32
    %c0_i32_1 = arith.constant 0 : i32
    return %c0_i32, %c0_i32_0 : i32, i32
  }
  func.func @transform_3(%arg0: i32, %arg1: i32) -> (i32, i32) {
    %c0_i32 = arith.constant 0 : i32
    %c0_i32_0 = arith.constant 0 : i32
    %c0_i32_1 = arith.constant 0 : i32
    return %c0_i32, %c0_i32_0 : i32, i32
  }
  func.func @transform_4(%arg0: i32, %arg1: i32) -> (i32, i32) {
    %c0_i32 = arith.constant 0 : i32
    %c0_i32_0 = arith.constant 0 : i32
    return %arg0, %c0_i32 : i32, i32
  }
}

module attributes {stable_mosaic.version = 11 : i64} {
  func.func @_fused_propagate_kernel(%arg0: i32, %arg1: i32, %arg2: memref<256x512xbf16, #tpu.memory_space<vmem>>, %arg3: memref<512x64xbf16, #tpu.memory_space<vmem>>, %arg4: memref<64x128xbf16, #tpu.memory_space<vmem>>, %arg5: memref<1x128xf32, #tpu.memory_space<vmem>>, %arg6: memref<256x128xbf16, #tpu.memory_space<vmem>>, %arg7: memref<256x128xf32, #tpu.memory_space<vmem>>) attributes {dimension_semantics = [#tpu.dimension_semantics<parallel>, #tpu.dimension_semantics<arbitrary>], iteration_bounds = array<i64: 2, 1>, scalar_prefetch = 0 : i64, scratch_operands = 1 : i64, tpu.core_type = #tpu.core_type<tc>, window_params = [{transform_indices = @transform_0, window_bounds = array<i64: 256, 512>}, {pipeline_mode = #tpu.pipeline_mode<synchronous>, transform_indices = @transform_1, window_bounds = array<i64: 512, 64>}, {pipeline_mode = #tpu.pipeline_mode<synchronous>, transform_indices = @transform_2, window_bounds = array<i64: 64, 128>}, {pipeline_mode = #tpu.pipeline_mode<synchronous>, transform_indices = @transform_3, window_bounds = array<i64: 1, 128>}, {transform_indices = @transform_4, window_bounds = array<i64: 256, 128>}]} {
    %c0_i32 = arith.constant 0 : i32
    %0 = arith.cmpi eq, %arg1, %c0_i32 : i32
    %1 = arith.extui %0 : i1 to i32
    %c0_i32_0 = arith.constant 0 : i32
    %2 = arith.cmpi ne, %1, %c0_i32_0 : i32
    scf.if %2 {
      %cst_12 = arith.constant 0.000000e+00 : f32
      %18 = vector.broadcast %cst_12 : f32 to vector<256x128xf32>
      %c0_13 = arith.constant 0 : index
      %c0_14 = arith.constant 0 : index
      %19 = vector.load %arg7[%c0_13, %c0_14] : memref<256x128xf32, #tpu.memory_space<vmem>>, vector<256x128xf32>
      tpu.vector_store %arg7[%c0_13, %c0_14], %18 {strides = array<i32>} : memref<256x128xf32, #tpu.memory_space<vmem>>, vector<256x128xf32>,
    } else {
    }
    %c512_i32 = arith.constant 512 : i32
    %3 = arith.muli %arg1, %c512_i32 : i32
    %4 = tpu.assume_multiple %3, 512 : i32
    %5 = arith.index_cast %4 : i32 to index
    %c0 = arith.constant 0 : index
    %6 = vector.load %arg3[%5, %c0] : memref<512x64xbf16, #tpu.memory_space<vmem>>, vector<512x64xbf16>
    %c0_1 = arith.constant 0 : index
    %c0_2 = arith.constant 0 : index
    %7 = vector.load %arg4[%c0_1, %c0_2] : memref<64x128xbf16, #tpu.memory_space<vmem>>, vector<64x128xbf16>
    %cst = arith.constant dense<0.000000e+00> : vector<512x128xf32>
    %8 = tpu.matmul %6, %7, %cst {dimension_numbers = #tpu.dot_dimension_numbers<[1], [0], [0], [1], [0, 0, 1, 1], [], []>} : vector<512x64xbf16>, vector<64x128xbf16>, vector<512x128xf32> -> vector<512x128xf32>
    %9 = arith.truncf %8 : vector<512x128xf32> to vector<512x128xbf16>
    %c0_3 = arith.constant 0 : index
    %c0_4 = arith.constant 0 : index
    %10 = vector.load %arg7[%c0_3, %c0_4] : memref<256x128xf32, #tpu.memory_space<vmem>>, vector<256x128xf32>
    %c0_5 = arith.constant 0 : index
    %c0_6 = arith.constant 0 : index
    %11 = vector.load %arg2[%c0_5, %c0_6] : memref<256x512xbf16, #tpu.memory_space<vmem>>, vector<256x512xbf16>
    %cst_7 = arith.constant dense<0.000000e+00> : vector<256x128xf32>
    %12 = tpu.matmul %11, %9, %cst_7 {dimension_numbers = #tpu.dot_dimension_numbers<[1], [0], [0], [1], [0, 0, 1, 1], [], []>} : vector<256x512xbf16>, vector<512x128xbf16>, vector<256x128xf32> -> vector<256x128xf32>
    %13 = arith.addf %10, %12 : vector<256x128xf32>
    %c0_8 = arith.constant 0 : index
    %c0_9 = arith.constant 0 : index
    %14 = vector.load %arg7[%c0_8, %c0_9] : memref<256x128xf32, #tpu.memory_space<vmem>>, vector<256x128xf32>
    tpu.vector_store %arg7[%c0_8, %c0_9], %13 {strides = array<i32>} : memref<256x128xf32, #tpu.memory_space<vmem>>, vector<256x128xf32>,
    %c0_i32_10 = arith.constant 0 : i32
    %15 = arith.cmpi eq, %arg1, %c0_i32_10 : i32
    %16 = arith.extui %15 : i1 to i32
    %c0_i32_11 = arith.constant 0 : i32
    %17 = arith.cmpi ne, %16, %c0_i32_11 : i32
    scf.if %17 {
      %c0_12 = arith.constant 0 : index
      %c0_13 = arith.constant 0 : index
      %18 = vector.load %arg7[%c0_12, %c0_13] : memref<256x128xf32, #tpu.memory_space<vmem>>, vector<256x128xf32>
      %c0_14 = arith.constant 0 : index
      %c0_15 = arith.constant 0 : index
      %19 = vector.load %arg5[%c0_14, %c0_15] : memref<1x128xf32, #tpu.memory_space<vmem>>, vector<1x128xf32>
      %20 = vector.broadcast %19 : vector<1x128xf32> to vector<256x128xf32>
      %21 = arith.addf %18, %20 : vector<256x128xf32>
      %cst_16 = arith.constant 0.000000e+00 : f32
      %22 = vector.broadcast %cst_16 : f32 to vector<256x128xf32>
      %23 = arith.maximumf %21, %22 : vector<256x128xf32>
      %24 = arith.truncf %23 : vector<256x128xf32> to vector<256x128xbf16>
      %c0_17 = arith.constant 0 : index
      %c0_18 = arith.constant 0 : index
      %25 = vector.load %arg6[%c0_17, %c0_18] : memref<256x128xbf16, #tpu.memory_space<vmem>>, vector<256x128xbf16>
      tpu.vector_store %arg6[%c0_17, %c0_18], %24 {strides = array<i32>} : memref<256x128xbf16, #tpu.memory_space<vmem>>, vector<256x128xbf16>,
    } else {
    }
    return
  }
  func.func @transform_0(%arg0: i32, %arg1: i32) -> (i32, i32) {
    %c0_i32 = arith.constant 0 : i32
    return %arg0, %arg1 : i32, i32
  }
  func.func @transform_1(%arg0: i32, %arg1: i32) -> (i32, i32) {
    %c0_i32 = arith.constant 0 : i32
    %c0_i32_0 = arith.constant 0 : i32
    %c0_i32_1 = arith.constant 0 : i32
    return %c0_i32, %c0_i32_0 : i32, i32
  }
  func.func @transform_2(%arg0: i32, %arg1: i32) -> (i32, i32) {
    %c0_i32 = arith.constant 0 : i32
    %c0_i32_0 = arith.constant 0 : i32
    %c0_i32_1 = arith.constant 0 : i32
    return %c0_i32, %c0_i32_0 : i32, i32
  }
  func.func @transform_3(%arg0: i32, %arg1: i32) -> (i32, i32) {
    %c0_i32 = arith.constant 0 : i32
    %c0_i32_0 = arith.constant 0 : i32
    %c0_i32_1 = arith.constant 0 : i32
    return %c0_i32, %c0_i32_0 : i32, i32
  }
  func.func @transform_4(%arg0: i32, %arg1: i32) -> (i32, i32) {
    %c0_i32 = arith.constant 0 : i32
    %c0_i32_0 = arith.constant 0 : i32
    return %arg0, %c0_i32 : i32, i32
  }
}

</mosaic_0001>

<llo_original>
// kernel: gcn_forward.3
$region0: #{gcn_forward.3}
  #allocation0 [shape = 'u32[]', space=smem, size = 0x4, offset = 0x4, fixed_abs, tag = 'smem constant byte address 0x4 - core index']
  #allocation1 [shape = 'u32[144,128]{1,0:T(1,128)}', space=vmem, size = 0x12000, scoped, tag = 'internal scratch']
  #allocation2 [shape = 'f32[256,128]{1,0:T(8,128)}', space=vmem, size = 0x20000, scoped, tag = 'scratch operand']
  %s0 = inlined_call_operand.vmem [shape: bf16[512,512], index: 0, kind: input, shape index: {}]
  %s1 = inlined_call_operand.vmem [shape: bf16[512,128], index: 1, kind: input, shape index: {}]
  %s2 = inlined_call_operand.vmem [shape: bf16[128,128], index: 2, kind: input, shape index: {}]
  %s3 = inlined_call_operand.vmem [shape: f32[1,128], index: 3, kind: input, shape index: {}]
  %s4 = inlined_call_operand.hbm [shape: f32[512,128], index: 4, kind: output, shape index: {}]
  %s5 = sld [smem:[#allocation0]]
  $region57: #{gcn_forward.3} parent=0
    _
  %s7 = ssub.s32 1, %s5
  %s8 = scalar_select 0, %s7, %s5
  $region1: #{gcn_forward.3} parent=0
    #allocation3 [shape = 'u8[262144]{0}', space=vmem, size = 0x40000, scoped, tag = 'output window, operand 0']
    #allocation4 [shape = 's32[2]{0}', space=sflag, size = 0x8, scoped, tag = 'scoped memory for gcn_forward.3']
    %9 = vsyncpa [#allocation4], 0
    %s10 = scalar_lea.sflag [#allocation4], 1
    %11 = vsyncpa %s10, 0
    loop: start=0, step=1, limit=4
    $region2: #{gcn_forward.3} parent=1 // loop_pre_header
      _
    $region3: #{gcn_forward.3} parent=1 // loop_header
      %s13 = sphi 0, %s17
      %p14 = scmp.ge.s32.totalorder %s13, 4
      %s20 = sphi 0, %s32
      %s21 = sphi 0, %s28
      %s22 = sphi 0, %s20
      %s23 = sphi 0, %s21
      %s24 = sphi 0, %s22
      %s25 = sphi 0, %s23
      %s37 = sphi 0, %s39
      %s40 = sphi 0, %s37
      %s41 = sphi 0, %s40
      %s57 = sphi 0, %s41
      %s61 = sphi 0, %s61
      %s63 = sphi 0, %s61
      %s64 = sphi 0, %s63
      %s78 = sphi 0, %s64
      %s82 = sphi 0, %s82
      %s84 = sphi 0, %s82
      %s85 = sphi 0, %s84
      %s99 = sphi 0, %s85
      %s103 = sphi 0, %s103
      %s105 = sphi 0, %s103
      %s106 = sphi 0, %s105
      %s120 = sphi 0, %s106
      %s126 = sphi 0, %s128
      %s129 = sphi 0, %s126
      %s130 = sphi 0, %s129
      %s146 = sphi 0, %s130
    $region4: #{gcn_forward.3} parent=1 // loop_header_branch
      %16 = sbr.rel (%p14) target = $region8
    $region5: #{gcn_forward.3} parent=1 // loop_body
      %s18 = ssub.s32 %s13, 1
      %s19 = ssub.s32 %s13, 2
      %s26 = sadd.s32 1, %s21
      %p27 = scmp.ge.s32.totalorder %s26, 1
      %s28 = scalar_select %p27, 0, %s26
      %s29 = sadd.s32 1, %s20
      %s30 = scalar_select %p27, %s29, %s20
      %p31 = scmp.ge.s32.totalorder %s30, 2
      %s32 = scalar_select %p31, 0, %s30
      %s33 = ssub.s32 %s20, %s32
      %s34 = ssub.s32 %s21, %s28
      %s35 = sor.u32 %s33, %s34
      %p36 = scmp.eq.s32.totalorder %s35, 0
      %s38 = sadd.s32 %s37, 1
      %s39 = scalar_select %p36, %s37, %s38
      %p42 = pneg %p36
      %p43 = scmp.eq.s32.totalorder %s13, 1
      %p44 = por %p42, %p43
      %p45 = scmp.ne.s32.totalorder %s37, %s40
      %p46 = scmp.eq.s32.totalorder %s13, 0
      %p47 = por %p45, %p46
      %p48 = scmp.ne.s32.totalorder %s37, %s40
      %p49 = scmp.eq.s32.totalorder %s18, 1
      %p50 = por %p48, %p49
      %p51 = scmp.ne.s32.totalorder %s40, %s41
      %p52 = scmp.eq.s32.totalorder %s18, 0
      %p53 = por %p51, %p52
      %p54 = scmp.ne.s32.totalorder %s40, %s41
      %p55 = scmp.eq.s32.totalorder %s19, 1
      %p56 = por %p54, %p55
      %p58 = scmp.ne.s32.totalorder %s41, %s57
      %p59 = scmp.eq.s32.totalorder %s19, 0
      %p60 = por %p58, %p59
      %s62 = sadd.s32 %s61, 1
      %p65 = scmp.eq.s32.totalorder %s13, 1
      %p66 = scmp.ne.s32.totalorder %s61, %s63
      %p67 = scmp.eq.s32.totalorder %s13, 0
      %p68 = por %p66, %p67
      %p69 = scmp.ne.s32.totalorder %s61, %s63
      %p70 = scmp.eq.s32.totalorder %s18, 1
      %p71 = por %p69, %p70
      %p72 = scmp.ne.s32.totalorder %s63, %s64
      %p73 = scmp.eq.s32.totalorder %s18, 0
      %p74 = por %p72, %p73
      %p75 = scmp.ne.s32.totalorder %s63, %s64
      %p76 = scmp.eq.s32.totalorder %s19, 1
      %p77 = por %p75, %p76
      %p79 = scmp.ne.s32.totalorder %s64, %s78
      %p80 = scmp.eq.s32.totalorder %s19, 0
      %p81 = por %p79, %p80
      %s83 = sadd.s32 %s82, 1
      %p86 = scmp.eq.s32.totalorder %s13, 1
      %p87 = scmp.ne.s32.totalorder %s82, %s84
      %p88 = scmp.eq.s32.totalorder %s13, 0
      %p89 = por %p87, %p88
      %p90 = scmp.ne.s32.totalorder %s82, %s84
      %p91 = scmp.eq.s32.totalorder %s18, 1
      %p92 = por %p90, %p91
      %p93 = scmp.ne.s32.totalorder %s84, %s85
      %p94 = scmp.eq.s32.totalorder %s18, 0
      %p95 = por %p93, %p94
      %p96 = scmp.ne.s32.totalorder %s84, %s85
      %p97 = scmp.eq.s32.totalorder %s19, 1
      %p98 = por %p96, %p97
      %p100 = scmp.ne.s32.totalorder %s85, %s99
      %p101 = scmp.eq.s32.totalorder %s19, 0
      %p102 = por %p100, %p101
      %s104 = sadd.s32 %s103, 1
      %p107 = scmp.eq.s32.totalorder %s13, 1
      %p108 = scmp.ne.s32.totalorder %s103, %s105
      %p109 = scmp.eq.s32.totalorder %s13, 0
      %p110 = por %p108, %p109
      %p111 = scmp.ne.s32.totalorder %s103, %s105
      %p112 = scmp.eq.s32.totalorder %s18, 1
      %p113 = por %p111, %p112
      %p114 = scmp.ne.s32.totalorder %s105, %s106
      %p115 = scmp.eq.s32.totalorder %s18, 0
      %p116 = por %p114, %p115
      %p117 = scmp.ne.s32.totalorder %s105, %s106
      %p118 = scmp.eq.s32.totalorder %s19, 1
      %p119 = por %p117, %p118
      %p121 = scmp.ne.s32.totalorder %s106, %s120
      %p122 = scmp.eq.s32.totalorder %s19, 0
      %p123 = por %p121, %p122
      %s124 = ssub.s32 %s20, %s32
      %p125 = scmp.eq.s32.totalorder %s124, 0
      %s127 = sadd.s32 %s126, 1
      %s128 = scalar_select %p125, %s126, %s127
      %p131 = pneg %p125
      %p132 = scmp.eq.s32.totalorder %s13, 1
      %p133 = por %p131, %p132
      %p134 = scmp.ne.s32.totalorder %s126, %s129
      %p135 = scmp.eq.s32.totalorder %s13, 0
      %p136 = por %p134, %p135
      %p137 = scmp.ne.s32.totalorder %s126, %s129
      %p138 = scmp.eq.s32.totalorder %s18, 1
      %p139 = por %p137, %p138
      %p140 = scmp.ne.s32.totalorder %s129, %s130
      %p141 = scmp.eq.s32.totalorder %s18, 0
      %p142 = por %p140, %p141
      %p143 = scmp.ne.s32.totalorder %s129, %s130
      %p144 = scmp.eq.s32.totalorder %s19, 1
      %p145 = por %p143, %p144
      %p147 = scmp.ne.s32.totalorder %s130, %s146
      %p148 = scmp.eq.s32.totalorder %s19, 0
      %p149 = por %p147, %p148
      %p150 = scmp.le.s32.totalorder 1, %s13
      %p151 = scmp.lt.s32.totalorder %s13, 3
      %p152 = pnand %p150, %p151
      %p153 = pneg %p152
      // Predicated region
      $region9: #{gcn_forward.3} parent=5 // pred_check
        _
      $region10: #{gcn_forward.3} parent=5 // pred_check_branch
        %155 = sbr.rel (%p152) target = $region12
      $region11: #{gcn_forward.3} parent=5 // pred_region
        %s156 = ssub.s32 %s13, 1
        // Predicated region
        $region13: #{gcn_forward.3} parent=11 // pred_check
          %p157 = pneg %p74
        $region14: #{gcn_forward.3} parent=11 // pred_check_branch
          %159 = sbr.rel (%p157) target = $region16
        $region15: #{gcn_forward.3} parent=11 // pred_region
          _
        $region16: #{gcn_forward.3} parent=11 // pred_fallthru
          _
        // Predicated region
        $region17: #{gcn_forward.3} parent=11 // pred_check
          %p160 = pneg %p95
        $region18: #{gcn_forward.3} parent=11 // pred_check_branch
          %162 = sbr.rel (%p160) target = $region20
        $region19: #{gcn_forward.3} parent=11 // pred_region
          _
        $region20: #{gcn_forward.3} parent=11 // pred_fallthru
          _
        // Predicated region
        $region21: #{gcn_forward.3} parent=11 // pred_check
          %p163 = pneg %p116
        $region22: #{gcn_forward.3} parent=11 // pred_check_branch
          %165 = sbr.rel (%p163) target = $region24
        $region23: #{gcn_forward.3} parent=11 // pred_region
          _
        $region24: #{gcn_forward.3} parent=11 // pred_fallthru
          _
      $region12: #{gcn_forward.3} parent=5 // pred_fallthru
        _
      %p166 = scmp.lt.s32.totalorder %s13, 2
      // Predicated region
      $region25: #{gcn_forward.3} parent=5 // pred_check
        %p167 = pneg %p166
      $region26: #{gcn_forward.3} parent=5 // pred_check_branch
        %169 = sbr.rel (%p167) target = $region28
      $region27: #{gcn_forward.3} parent=5 // pred_region
        // Predicated region
        $region29: #{gcn_forward.3} parent=27 // pred_check
          %p170 = pneg %p47
        $region30: #{gcn_forward.3} parent=27 // pred_check_branch
          %172 = sbr.rel (%p170) target = $region32
        $region31: #{gcn_forward.3} parent=27 // pred_region
          %s173 = smul.u32 32, %s20
          %s174 = smul.u32 4, %s21
          %p175 = scmp.lt.s32.totalorder %s173, 63
          %s176 = scalar_select %p175, %s173, 63
          %p177 = scmp.lt.s32.totalorder %s174, 3
          %s178 = scalar_select %p177, %s174, 3
          %s179 = smul.addr %s176, 4
          %s180 = sadd.s32 %s178, %s179
          %s181 = smul.addr %s180, 4
          %s182 = scalar_lea.vmem %s0, %s181
          %s183 = smul.u32 32, %s20
          %s184 = smul.u32 4, %s21
        $region32: #{gcn_forward.3} parent=27 // pred_fallthru
          _
      $region28: #{gcn_forward.3} parent=5 // pred_fallthru
        _
      %p185 = scmp.le.s32.totalorder 1, %s13
      %p186 = scmp.lt.s32.totalorder %s13, 3
      %p187 = pnand %p185, %p186
      %p188 = pneg %p187
      // Predicated region
      $region33: #{gcn_forward.3} parent=5 // pred_check
        _
      $region34: #{gcn_forward.3} parent=5 // pred_check_branch
        %190 = sbr.rel (%p187) target = $region36
      $region35: #{gcn_forward.3} parent=5 // pred_region
        %s191 = ssub.s32 %s13, 1
        %s192 = smul.u32 32, %s22
        %s193 = smul.u32 4, %s23
        %p194 = scmp.lt.s32.totalorder %s192, 63
        %s195 = scalar_select %p194, %s192, 63
        %p196 = scmp.lt.s32.totalorder %s193, 3
        %s197 = scalar_select %p196, %s193, 3
        %s198 = smul.addr %s195, 4
        %s199 = sadd.s32 %s197, %s198
        %s200 = smul.addr %s199, 4
        %s201 = scalar_lea.vmem %s0, %s200
        %p202 = pneg %p53
        %p203 = pneg %p50
        %p204 = pneg %p74
        %p205 = pneg %p71
        %p206 = pneg %p95
        %p207 = pneg %p92
        %p208 = pneg %p116
        %p209 = pneg %p113
        %p210 = pneg %p142
        %p211 = pneg %p139
        %s212 = sand.u32 %s129, 1
        %s213 = scalar_lea.sflag [#allocation4], %s212
        %s214 = sand.u32 %s129, 1
        %s215 = smul.addr %s214, 256
        %s216 = scalar_lea.vmem [#allocation3], %s215
        %s217 = smul.u32 32, %s22
        %s218 = smul.u32 4, %s23
        %p219 = scmp.lt.s32.totalorder %s217, 63
        %s220 = scalar_select %p219, %s217, 63
        %p221 = scmp.lt.s32.totalorder %s218, 3
        %s222 = scalar_select %p221, %s218, 3
        %s223 = smul.addr %s220, 4
        %s224 = sadd.s32 %s222, %s223
        %s225 = smul.addr %s224, 4
        %s226 = scalar_lea.vmem %s0, %s225
        %s227 = smul.u32 32, %s22
        %s228 = smul.u32 4, %s23
        %s229 = smul.u32 32, %s22
        %p231 = scmp.eq.s32.totalorder %s23, 0
        // Predicated region
        $region37: #{gcn_forward.3} parent=35 // pred_check
          %p232 = pneg %p231
        $region38: #{gcn_forward.3} parent=35 // pred_check_branch
          %234 = sbr.rel (%p232) target = $region40
        $region39: #{gcn_forward.3} parent=35 // pred_region
          %235 = vst [vmem:[#allocation2] sm:$0xff] 0.0
          %236 = vst [vmem:[#allocation2 + $0x8] sm:$0xff] 0.0
          %237 = vst [vmem:[#allocation2 + $0x10] sm:$0xff] 0.0
          %238 = vst [vmem:[#allocation2 + $0x18] sm:$0xff] 0.0
          %239 = vst [vmem:[#allocation2 + $0x20] sm:$0xff] 0.0
          %240 = vst [vmem:[#allocation2 + $0x28] sm:$0xff] 0.0
          %241 = vst [vmem:[#allocation2 + $0x30] sm:$0xff] 0.0
          %242 = vst [vmem:[#allocation2 + $0x38] sm:$0xff] 0.0
          %243 = vst [vmem:[#allocation2 + $0x40] sm:$0xff] 0.0
          %244 = vst [vmem:[#allocation2 + $0x48] sm:$0xff] 0.0
          %245 = vst [vmem:[#allocation2 + $0x50] sm:$0xff] 0.0
          %246 = vst [vmem:[#allocation2 + $0x58] sm:$0xff] 0.0
          %247 = vst [vmem:[#allocation2 + $0x60] sm:$0xff] 0.0
          %248 = vst [vmem:[#allocation2 + $0x68] sm:$0xff] 0.0
          %249 = vst [vmem:[#allocation2 + $0x70] sm:$0xff] 0.0
          %250 = vst [vmem:[#allocation2 + $0x78] sm:$0xff] 0.0
          %251 = vst [vmem:[#allocation2 + $0x80] sm:$0xff] 0.0
          %252 = vst [vmem:[#allocation2 + $0x88] sm:$0xff] 0.0
          %253 = vst [vmem:[#allocation2 + $0x90] sm:$0xff] 0.0
          %254 = vst [vmem:[#allocation2 + $0x98] sm:$0xff] 0.0
          %255 = vst [vmem:[#allocation2 + $0xa0] sm:$0xff] 0.0
          %256 = vst [vmem:[#allocation2 + $0xa8] sm:$0xff] 0.0
          %257 = vst [vmem:[#allocation2 + $0xb0] sm:$0xff] 0.0
          %258 = vst [vmem:[#allocation2 + $0xb8] sm:$0xff] 0.0
          %259 = vst [vmem:[#allocation2 + $0xc0] sm:$0xff] 0.0
          %260 = vst [vmem:[#allocation2 + $0xc8] sm:$0xff] 0.0
          %261 = vst [vmem:[#allocation2 + $0xd0] sm:$0xff] 0.0
          %262 = vst [vmem:[#allocation2 + $0xd8] sm:$0xff] 0.0
          %263 = vst [vmem:[#allocation2 + $0xe0] sm:$0xff] 0.0
          %264 = vst [vmem:[#allocation2 + $0xe8] sm:$0xff] 0.0
          %265 = vst [vmem:[#allocation2 + $0xf0] sm:$0xff] 0.0
          %266 = vst [vmem:[#allocation2 + $0xf8] sm:$0xff] 0.0
        $region40: #{gcn_forward.3} parent=35 // pred_fallthru
          _
        %s267 = smul.u32 %s23, 512
        %s268 = sshra.s32 %s267, 3
        %s269 = sand.u32 %s267, 7
        %s270 = smul.addr %s268, 4
        %s271 = scalar_lea.vmem %s1, %s270
        %v272 = vld [vmem:[%s271] sm:$0xf]
        %v273 = vld [vmem:[%s271 + $0x4] sm:$0xf]
        %v274 = vld [vmem:[%s271 + $0x8] sm:$0xf]
        %v275 = vld [vmem:[%s271 + $0xc] sm:$0xf]
        %v276 = vld [vmem:[%s271 + $0x10] sm:$0xf]
        %v277 = vld [vmem:[%s271 + $0x14] sm:$0xf]
        %v278 = vld [vmem:[%s271 + $0x18] sm:$0xf]
        %v279 = vld [vmem:[%s271 + $0x1c] sm:$0xf]
        %v280 = vld [vmem:[%s271 + $0x20] sm:$0xf]
        %v281 = vld [vmem:[%s271 + $0x24] sm:$0xf]
        %v282 = vld [vmem:[%s271 + $0x28] sm:$0xf]
        %v283 = vld [vmem:[%s271 + $0x2c] sm:$0xf]
        %v284 = vld [vmem:[%s271 + $0x30] sm:$0xf]
        %v285 = vld [vmem:[%s271 + $0x34] sm:$0xf]
        %v286 = vld [vmem:[%s271 + $0x38] sm:$0xf]
        %v287 = vld [vmem:[%s271 + $0x3c] sm:$0xf]
        %v288 = vld [vmem:[%s271 + $0x40] sm:$0xf]
        %v289 = vld [vmem:[%s271 + $0x44] sm:$0xf]
        %v290 = vld [vmem:[%s271 + $0x48] sm:$0xf]
        %v291 = vld [vmem:[%s271 + $0x4c] sm:$0xf]
        %v292 = vld [vmem:[%s271 + $0x50] sm:$0xf]
        %v293 = vld [vmem:[%s271 + $0x54] sm:$0xf]
        %v294 = vld [vmem:[%s271 + $0x58] sm:$0xf]
        %v295 = vld [vmem:[%s271 + $0x5c] sm:$0xf]
        %v296 = vld [vmem:[%s271 + $0x60] sm:$0xf]
        %v297 = vld [vmem:[%s271 + $0x64] sm:$0xf]
        %v298 = vld [vmem:[%s271 + $0x68] sm:$0xf]
        %v299 = vld [vmem:[%s271 + $0x6c] sm:$0xf]
        %v300 = vld [vmem:[%s271 + $0x70] sm:$0xf]
        %v301 = vld [vmem:[%s271 + $0x74] sm:$0xf]
        %v302 = vld [vmem:[%s271 + $0x78] sm:$0xf]
        %v303 = vld [vmem:[%s271 + $0x7c] sm:$0xf]
        %v304 = vld [vmem:[%s271 + $0x80] sm:$0xf]
        %v305 = vld [vmem:[%s271 + $0x84] sm:$0xf]
        %v306 = vld [vmem:[%s271 + $0x88] sm:$0xf]
        %v307 = vld [vmem:[%s271 + $0x8c] sm:$0xf]
        %v308 = vld [vmem:[%s271 + $0x90] sm:$0xf]
        %v309 = vld [vmem:[%s271 + $0x94] sm:$0xf]
        %v310 = vld [vmem:[%s271 + $0x98] sm:$0xf]
        %v311 = vld [vmem:[%s271 + $0x9c] sm:$0xf]
        %v312 = vld [vmem:[%s271 + $0xa0] sm:$0xf]
        %v313 = vld [vmem:[%s271 + $0xa4] sm:$0xf]
        %v314 = vld [vmem:[%s271 + $0xa8] sm:$0xf]
        %v315 = vld [vmem:[%s271 + $0xac] sm:$0xf]
        %v316 = vld [vmem:[%s271 + $0xb0] sm:$0xf]
        %v317 = vld [vmem:[%s271 + $0xb4] sm:$0xf]
        %v318 = vld [vmem:[%s271 + $0xb8] sm:$0xf]
        %v319 = vld [vmem:[%s271 + $0xbc] sm:$0xf]
        %v320 = vld [vmem:[%s271 + $0xc0] sm:$0xf]
        %v321 = vld [vmem:[%s271 + $0xc4] sm:$0xf]
        %v322 = vld [vmem:[%s271 + $0xc8] sm:$0xf]
        %v323 = vld [vmem:[%s271 + $0xcc] sm:$0xf]
        %v324 = vld [vmem:[%s271 + $0xd0] sm:$0xf]
        %v325 = vld [vmem:[%s271 + $0xd4] sm:$0xf]
        %v326 = vld [vmem:[%s271 + $0xd8] sm:$0xf]
        %v327 = vld [vmem:[%s271 + $0xdc] sm:$0xf]
        %v328 = vld [vmem:[%s271 + $0xe0] sm:$0xf]
        %v329 = vld [vmem:[%s271 + $0xe4] sm:$0xf]
        %v330 = vld [vmem:[%s271 + $0xe8] sm:$0xf]
        %v331 = vld [vmem:[%s271 + $0xec] sm:$0xf]
        %v332 = vld [vmem:[%s271 + $0xf0] sm:$0xf]
        %v333 = vld [vmem:[%s271 + $0xf4] sm:$0xf]
        %v334 = vld [vmem:[%s271 + $0xf8] sm:$0xf]
        %v335 = vld [vmem:[%s271 + $0xfc] sm:$0xf]
        %v336 = vld [vmem:[%s2] sm:$0xf]
        %v337 = vld [vmem:[%s2 + $0x4] sm:$0xf]
        %v338 = vld [vmem:[%s2 + $0x8] sm:$0xf]
        %v339 = vld [vmem:[%s2 + $0xc] sm:$0xf]
        %v340 = vld [vmem:[%s2 + $0x10] sm:$0xf]
        %v341 = vld [vmem:[%s2 + $0x14] sm:$0xf]
        %v342 = vld [vmem:[%s2 + $0x18] sm:$0xf]
        %v343 = vld [vmem:[%s2 + $0x1c] sm:$0xf]
        %v344 = vld [vmem:[%s2 + $0x20] sm:$0xf]
        %v345 = vld [vmem:[%s2 + $0x24] sm:$0xf]
        %v346 = vld [vmem:[%s2 + $0x28] sm:$0xf]
        %v347 = vld [vmem:[%s2 + $0x2c] sm:$0xf]
        %v348 = vld [vmem:[%s2 + $0x30] sm:$0xf]
        %v349 = vld [vmem:[%s2 + $0x34] sm:$0xf]
        %v350 = vld [vmem:[%s2 + $0x38] sm:$0xf]
        %v351 = vld [vmem:[%s2 + $0x3c] sm:$0xf]
        %v416 = vunpack.c.l.b16 %v272
        %v417 = vunpack.c.l.b16 %v273
        %v418 = vunpack.c.l.b16 %v274
        %v419 = vunpack.c.l.b16 %v275
        %v420 = vunpack.c.l.b16 %v276
        %v421 = vunpack.c.l.b16 %v277
        %v422 = vunpack.c.l.b16 %v278
        %v423 = vunpack.c.l.b16 %v279
        %v424 = vunpack.c.l.b16 %v280
        %v425 = vunpack.c.l.b16 %v281
        %v426 = vunpack.c.l.b16 %v282
        %v427 = vunpack.c.l.b16 %v283
        %v428 = vunpack.c.l.b16 %v284
        %v429 = vunpack.c.l.b16 %v285
        %v430 = vunpack.c.l.b16 %v286
        %v431 = vunpack.c.l.b16 %v287
        %v432 = vunpack.c.l.b16 %v288
        %v433 = vunpack.c.l.b16 %v289
        %v434 = vunpack.c.l.b16 %v290
        %v435 = vunpack.c.l.b16 %v291
        %v436 = vunpack.c.l.b16 %v292
        %v437 = vunpack.c.l.b16 %v293
        %v438 = vunpack.c.l.b16 %v294
        %v439 = vunpack.c.l.b16 %v295
        %v440 = vunpack.c.l.b16 %v296
        %v441 = vunpack.c.l.b16 %v297
        %v442 = vunpack.c.l.b16 %v298
        %v443 = vunpack.c.l.b16 %v299
        %v444 = vunpack.c.l.b16 %v300
        %v445 = vunpack.c.l.b16 %v301
        %v446 = vunpack.c.l.b16 %v302
        %v447 = vunpack.c.l.b16 %v303
        %v448 = vunpack.c.l.b16 %v304
        %v449 = vunpack.c.l.b16 %v305
        %v450 = vunpack.c.l.b16 %v306
        %v451 = vunpack.c.l.b16 %v307
        %v452 = vunpack.c.l.b16 %v308
        %v453 = vunpack.c.l.b16 %v309
        %v454 = vunpack.c.l.b16 %v310
        %v455 = vunpack.c.l.b16 %v311
        %v456 = vunpack.c.l.b16 %v312
        %v457 = vunpack.c.l.b16 %v313
        %v458 = vunpack.c.l.b16 %v314
        %v459 = vunpack.c.l.b16 %v315
        %v460 = vunpack.c.l.b16 %v316
        %v461 = vunpack.c.l.b16 %v317
        %v462 = vunpack.c.l.b16 %v318
        %v463 = vunpack.c.l.b16 %v319
        %v464 = vunpack.c.l.b16 %v320
        %v465 = vunpack.c.l.b16 %v321
        %v466 = vunpack.c.l.b16 %v322
        %v467 = vunpack.c.l.b16 %v323
        %v468 = vunpack.c.l.b16 %v324
        %v469 = vunpack.c.l.b16 %v325
        %v470 = vunpack.c.l.b16 %v326
        %v471 = vunpack.c.l.b16 %v327
        %v472 = vunpack.c.l.b16 %v328
        %v473 = vunpack.c.l.b16 %v329
        %v474 = vunpack.c.l.b16 %v330
        %v475 = vunpack.c.l.b16 %v331
        %v476 = vunpack.c.l.b16 %v332
        %v477 = vunpack.c.l.b16 %v333
        %v478 = vunpack.c.l.b16 %v334
        %v479 = vunpack.c.l.b16 %v335
        %v480 = vpack.c.b16 %v417, %v416
        %v481 = vpack.c.b16 %v419, %v418
        %v482 = vpack.c.b16 %v421, %v420
        %v483 = vpack.c.b16 %v423, %v422
        %v484 = vpack.c.b16 %v425, %v424
        %v485 = vpack.c.b16 %v427, %v426
        %v486 = vpack.c.b16 %v429, %v428
        %v487 = vpack.c.b16 %v431, %v430
        %v488 = vpack.c.b16 %v433, %v432
        %v489 = vpack.c.b16 %v435, %v434
        %v490 = vpack.c.b16 %v437, %v436
        %v491 = vpack.c.b16 %v439, %v438
        %v492 = vpack.c.b16 %v441, %v440
        %v493 = vpack.c.b16 %v443, %v442
        %v494 = vpack.c.b16 %v445, %v444
        %v495 = vpack.c.b16 %v447, %v446
        %v496 = vpack.c.b16 %v449, %v448
        %v497 = vpack.c.b16 %v451, %v450
        %v498 = vpack.c.b16 %v453, %v452
        %v499 = vpack.c.b16 %v455, %v454
        %v500 = vpack.c.b16 %v457, %v456
        %v501 = vpack.c.b16 %v459, %v458
        %v502 = vpack.c.b16 %v461, %v460
        %v503 = vpack.c.b16 %v463, %v462
        %v504 = vpack.c.b16 %v465, %v464
        %v505 = vpack.c.b16 %v467, %v466
        %v506 = vpack.c.b16 %v469, %v468
        %v507 = vpack.c.b16 %v471, %v470
        %v508 = vpack.c.b16 %v473, %v472
        %v509 = vpack.c.b16 %v475, %v474
        %v510 = vpack.c.b16 %v477, %v476
        %v511 = vpack.c.b16 %v479, %v478
        %v560 = vunpack.c.l.b16 %v336
        %v561 = vunpack.c.l.b16 %v337
        %v562 = vunpack.c.l.b16 %v338
        %v563 = vunpack.c.l.b16 %v339
        %v564 = vunpack.c.l.b16 %v340
        %v565 = vunpack.c.l.b16 %v341
        %v566 = vunpack.c.l.b16 %v342
        %v567 = vunpack.c.l.b16 %v343
        %v568 = vunpack.c.l.b16 %v344
        %v569 = vunpack.c.l.b16 %v345
        %v570 = vunpack.c.l.b16 %v346
        %v571 = vunpack.c.l.b16 %v347
        %v572 = vunpack.c.l.b16 %v348
        %v573 = vunpack.c.l.b16 %v349
        %v574 = vunpack.c.l.b16 %v350
        %v575 = vunpack.c.l.b16 %v351
        %v576 = vpack.c.b16 %v561, %v560
        %v577 = vpack.c.b16 %v563, %v562
        %v578 = vpack.c.b16 %v565, %v564
        %v579 = vpack.c.b16 %v567, %v566
        %v580 = vpack.c.b16 %v569, %v568
        %v581 = vpack.c.b16 %v571, %v570
        %v582 = vpack.c.b16 %v573, %v572
        %v583 = vpack.c.b16 %v575, %v574
        %592 = vmatprep.subr.bf16.mxu0 0
        %593 = vmatpush1.bf16.msra.mxu0 %v576
        %594 = vmatprep.subr.bf16.mxu0 0
        %595 = vmatpush1.bf16.msra.mxu0 %v577
        %596 = vmatprep.subr.bf16.mxu0 0
        %597 = vmatpush1.bf16.msra.mxu0 %v578
        %598 = vmatprep.subr.bf16.mxu0 0
        %599 = vmatpush1.bf16.msra.mxu0 %v579
        %600 = vmatprep.subr.bf16.mxu0 0
        %601 = vmatpush1.bf16.msra.mxu0 %v580
        %602 = vmatprep.subr.bf16.mxu0 0
        %603 = vmatpush1.bf16.msra.mxu0 %v581
        %604 = vmatprep.subr.bf16.mxu0 0
        %605 = vmatpush1.bf16.msra.mxu0 %v582
        %606 = vmatprep.subr.bf16.mxu0 0
        %607 = vmatpush1.bf16.msra.mxu0 %v583
        %608 = vmatprep.subr.bf16.mxu0 0
        %609 = vmatpush1.bf16.msra.mxu0 0
        %610 = vmatprep.subr.bf16.mxu0 0
        %611 = vmatpush1.bf16.msra.mxu0 0
        %612 = vmatprep.subr.bf16.mxu0 0
        %613 = vmatpush1.bf16.msra.mxu0 0
        %614 = vmatprep.subr.bf16.mxu0 0
        %615 = vmatpush1.bf16.msra.mxu0 0
        %616 = vmatprep.subr.bf16.mxu0 0
        %617 = vmatpush1.bf16.msra.mxu0 0
        %618 = vmatprep.subr.bf16.mxu0 0
        %619 = vmatpush1.bf16.msra.mxu0 0
        %620 = vmatprep.subr.bf16.mxu0 0
        %621 = vmatpush1.bf16.msra.mxu0 0
        %622 = vmatprep.subr.bf16.mxu0 0
        %623 = vmatpush1.bf16.msra.mxu0 0
        %624 = vmatprep.mubr.bf16.mxu0 0
        %625 = vmatmul.mubr.bf16.gmra.mrb[0].mxu0 %v480
        %v626 = vpop.f32.mrb[0].mxu0
        %v627 = vadd.f32 0.0, %v626
        %v628 = vpop.f32.mrb[0].mxu0
        %v629 = vpop.f32.mrb[0].mxu0
        %v630 = vadd.f32 0.0, %v629
        %v631 = vpop.f32.mrb[0].mxu0
        %632 = vmatprep.mubr.bf16.mxu0 0
        %633 = vmatmul.mubr.bf16.gmra.mrb[0].mxu0 %v481
        %v634 = vpop.f32.mrb[0].mxu0
        %v635 = vadd.f32 0.0, %v634
        %v636 = vpop.f32.mrb[0].mxu0
        %v637 = vpop.f32.mrb[0].mxu0
        %v638 = vadd.f32 0.0, %v637
        %v639 = vpop.f32.mrb[0].mxu0
        %640 = vmatprep.mubr.bf16.mxu0 0
        %641 = vmatmul.mubr.bf16.gmra.mrb[0].mxu0 %v482
        %v642 = vpop.f32.mrb[0].mxu0
        %v643 = vadd.f32 0.0, %v642
        %v644 = vpop.f32.mrb[0].mxu0
        %v645 = vpop.f32.mrb[0].mxu0
        %v646 = vadd.f32 0.0, %v645
        %v647 = vpop.f32.mrb[0].mxu0
        %648 = vmatprep.mubr.bf16.mxu0 0
        %649 = vmatmul.mubr.bf16.gmra.mrb[0].mxu0 %v483
        %v650 = vpop.f32.mrb[0].mxu0
        %v651 = vadd.f32 0.0, %v650
        %v652 = vpop.f32.mrb[0].mxu0
        %v653 = vpop.f32.mrb[0].mxu0
        %v654 = vadd.f32 0.0, %v653
        %v655 = vpop.f32.mrb[0].mxu0
        %656 = vmatprep.mubr.bf16.mxu0 0
        %657 = vmatmul.mubr.bf16.gmra.mrb[0].mxu0 %v484
        %v658 = vpop.f32.mrb[0].mxu0
        %v659 = vadd.f32 0.0, %v658
        %v660 = vpop.f32.mrb[0].mxu0
        %v661 = vpop.f32.mrb[0].mxu0
        %v662 = vadd.f32 0.0, %v661
        %v663 = vpop.f32.mrb[0].mxu0
        %664 = vmatprep.mubr.bf16.mxu0 0
        %665 = vmatmul.mubr.bf16.gmra.mrb[0].mxu0 %v485
        %v666 = vpop.f32.mrb[0].mxu0
        %v667 = vadd.f32 0.0, %v666
        %v668 = vpop.f32.mrb[0].mxu0
        %v669 = vpop.f32.mrb[0].mxu0
        %v670 = vadd.f32 0.0, %v669
        %v671 = vpop.f32.mrb[0].mxu0
        %672 = vmatprep.mubr.bf16.mxu0 0
        %673 = vmatmul.mubr.bf16.gmra.mrb[0].mxu0 %v486
        %v674 = vpop.f32.mrb[0].mxu0
        %v675 = vadd.f32 0.0, %v674
        %v676 = vpop.f32.mrb[0].mxu0
        %v677 = vpop.f32.mrb[0].mxu0
        %v678 = vadd.f32 0.0, %v677
        %v679 = vpop.f32.mrb[0].mxu0
        %680 = vmatprep.mubr.bf16.mxu0 0
        %681 = vmatmul.mubr.bf16.gmra.mrb[0].mxu0 %v487
        %v682 = vpop.f32.mrb[0].mxu0
        %v683 = vadd.f32 0.0, %v682
        %v684 = vpop.f32.mrb[0].mxu0
        %v685 = vpop.f32.mrb[0].mxu0
        %v686 = vadd.f32 0.0, %v685
        %v687 = vpop.f32.mrb[0].mxu0
        %688 = vmatprep.mubr.bf16.mxu0 0
        %689 = vmatmul.mubr.bf16.gmra.mrb[0].mxu0 %v488
        %v690 = vpop.f32.mrb[0].mxu0
        %v691 = vadd.f32 0.0, %v690
        %v692 = vpop.f32.mrb[0].mxu0
        %v693 = vpop.f32.mrb[0].mxu0
        %v694 = vadd.f32 0.0, %v693
        %v695 = vpop.f32.mrb[0].mxu0
        %696 = vmatprep.mubr.bf16.mxu0 0
        %697 = vmatmul.mubr.bf16.gmra.mrb[0].mxu0 %v489
        %v698 = vpop.f32.mrb[0].mxu0
        %v699 = vadd.f32 0.0, %v698
        %v700 = vpop.f32.mrb[0].mxu0
        %v701 = vpop.f32.mrb[0].mxu0
        %v702 = vadd.f32 0.0, %v701
        %v703 = vpop.f32.mrb[0].mxu0
        %704 = vmatprep.mubr.bf16.mxu0 0
        %705 = vmatmul.mubr.bf16.gmra.mrb[0].mxu0 %v490
        %v706 = vpop.f32.mrb[0].mxu0
        %v707 = vadd.f32 0.0, %v706
        %v708 = vpop.f32.mrb[0].mxu0
        %v709 = vpop.f32.mrb[0].mxu0
        %v710 = vadd.f32 0.0, %v709
        %v711 = vpop.f32.mrb[0].mxu0
        %712 = vmatprep.mubr.bf16.mxu0 0
        %713 = vmatmul.mubr.bf16.gmra.mrb[0].mxu0 %v491
        %v714 = vpop.f32.mrb[0].mxu0
        %v715 = vadd.f32 0.0, %v714
        %v716 = vpop.f32.mrb[0].mxu0
        %v717 = vpop.f32.mrb[0].mxu0
        %v718 = vadd.f32 0.0, %v717
        %v719 = vpop.f32.mrb[0].mxu0
        %720 = vmatprep.mubr.bf16.mxu0 0
        %721 = vmatmul.mubr.bf16.gmra.mrb[0].mxu0 %v492
        %v722 = vpop.f32.mrb[0].mxu0
        %v723 = vadd.f32 0.0, %v722
        %v724 = vpop.f32.mrb[0].mxu0
        %v725 = vpop.f32.mrb[0].mxu0
        %v726 = vadd.f32 0.0, %v725
        %v727 = vpop.f32.mrb[0].mxu0
        %728 = vmatprep.mubr.bf16.mxu0 0
        %729 = vmatmul.mubr.bf16.gmra.mrb[0].mxu0 %v493
        %v730 = vpop.f32.mrb[0].mxu0
        %v731 = vadd.f32 0.0, %v730
        %v732 = vpop.f32.mrb[0].mxu0
        %v733 = vpop.f32.mrb[0].mxu0
        %v734 = vadd.f32 0.0, %v733
        %v735 = vpop.f32.mrb[0].mxu0
        %736 = vmatprep.mubr.bf16.mxu0 0
        %737 = vmatmul.mubr.bf16.gmra.mrb[0].mxu0 %v494
        %v738 = vpop.f32.mrb[0].mxu0
        %v739 = vadd.f32 0.0, %v738
        %v740 = vpop.f32.mrb[0].mxu0
        %v741 = vpop.f32.mrb[0].mxu0
        %v742 = vadd.f32 0.0, %v741
        %v743 = vpop.f32.mrb[0].mxu0
        %744 = vmatprep.mubr.bf16.mxu0 0
        %745 = vmatmul.mubr.bf16.gmra.mrb[0].mxu0 %v495
        %v746 = vpop.f32.mrb[0].mxu0
        %v747 = vadd.f32 0.0, %v746
        %v748 = vpop.f32.mrb[0].mxu0
        %v749 = vpop.f32.mrb[0].mxu0
        %v750 = vadd.f32 0.0, %v749
        %v751 = vpop.f32.mrb[0].mxu0
        %752 = vmatprep.mubr.bf16.mxu0 0
        %753 = vmatmul.mubr.bf16.gmra.mrb[0].mxu0 %v496
        %v754 = vpop.f32.mrb[0].mxu0
        %v755 = vadd.f32 0.0, %v754
        %v756 = vpop.f32.mrb[0].mxu0
        %v757 = vpop.f32.mrb[0].mxu0
        %v758 = vadd.f32 0.0, %v757
        %v759 = vpop.f32.mrb[0].mxu0
        %760 = vmatprep.mubr.bf16.mxu0 0
        %761 = vmatmul.mubr.bf16.gmra.mrb[0].mxu0 %v497
        %v762 = vpop.f32.mrb[0].mxu0
        %v763 = vadd.f32 0.0, %v762
        %v764 = vpop.f32.mrb[0].mxu0
        %v765 = vpop.f32.mrb[0].mxu0
        %v766 = vadd.f32 0.0, %v765
        %v767 = vpop.f32.mrb[0].mxu0
        %768 = vmatprep.mubr.bf16.mxu0 0
        %769 = vmatmul.mubr.bf16.gmra.mrb[0].mxu0 %v498
        %v770 = vpop.f32.mrb[0].mxu0
        %v771 = vadd.f32 0.0, %v770
        %v772 = vpop.f32.mrb[0].mxu0
        %v773 = vpop.f32.mrb[0].mxu0
        %v774 = vadd.f32 0.0, %v773
        %v775 = vpop.f32.mrb[0].mxu0
        %776 = vmatprep.mubr.bf16.mxu0 0
        %777 = vmatmul.mubr.bf16.gmra.mrb[0].mxu0 %v499
        %v778 = vpop.f32.mrb[0].mxu0
        %v779 = vadd.f32 0.0, %v778
        %v780 = vpop.f32.mrb[0].mxu0
        %v781 = vpop.f32.mrb[0].mxu0
        %v782 = vadd.f32 0.0, %v781
        %v783 = vpop.f32.mrb[0].mxu0
        %784 = vmatprep.mubr.bf16.mxu0 0
        %785 = vmatmul.mubr.bf16.gmra.mrb[0].mxu0 %v500
        %v786 = vpop.f32.mrb[0].mxu0
        %v787 = vadd.f32 0.0, %v786
        %v788 = vpop.f32.mrb[0].mxu0
        %v789 = vpop.f32.mrb[0].mxu0
        %v790 = vadd.f32 0.0, %v789
        %v791 = vpop.f32.mrb[0].mxu0
        %792 = vmatprep.mubr.bf16.mxu0 0
        %793 = vmatmul.mubr.bf16.gmra.mrb[0].mxu0 %v501
        %v794 = vpop.f32.mrb[0].mxu0
        %v795 = vadd.f32 0.0, %v794
        %v796 = vpop.f32.mrb[0].mxu0
        %v797 = vpop.f32.mrb[0].mxu0
        %v798 = vadd.f32 0.0, %v797
        %v799 = vpop.f32.mrb[0].mxu0
        %800 = vmatprep.mubr.bf16.mxu0 0
        %801 = vmatmul.mubr.bf16.gmra.mrb[0].mxu0 %v502
        %v802 = vpop.f32.mrb[0].mxu0
        %v803 = vadd.f32 0.0, %v802
        %v804 = vpop.f32.mrb[0].mxu0
        %v805 = vpop.f32.mrb[0].mxu0
        %v806 = vadd.f32 0.0, %v805
        %v807 = vpop.f32.mrb[0].mxu0
        %808 = vmatprep.mubr.bf16.mxu0 0
        %809 = vmatmul.mubr.bf16.gmra.mrb[0].mxu0 %v503
        %v810 = vpop.f32.mrb[0].mxu0
        %v811 = vadd.f32 0.0, %v810
        %v812 = vpop.f32.mrb[0].mxu0
        %v813 = vpop.f32.mrb[0].mxu0
        %v814 = vadd.f32 0.0, %v813
        %v815 = vpop.f32.mrb[0].mxu0
        %816 = vmatprep.mubr.bf16.mxu0 0
        %817 = vmatmul.mubr.bf16.gmra.mrb[0].mxu0 %v504
        %v818 = vpop.f32.mrb[0].mxu0
        %v819 = vadd.f32 0.0, %v818
        %v820 = vpop.f32.mrb[0].mxu0
        %v821 = vpop.f32.mrb[0].mxu0
        %v822 = vadd.f32 0.0, %v821
        %v823 = vpop.f32.mrb[0].mxu0
        %824 = vmatprep.mubr.bf16.mxu0 0
        %825 = vmatmul.mubr.bf16.gmra.mrb[0].mxu0 %v505
        %v826 = vpop.f32.mrb[0].mxu0
        %v827 = vadd.f32 0.0, %v826
        %v828 = vpop.f32.mrb[0].mxu0
        %v829 = vpop.f32.mrb[0].mxu0
        %v830 = vadd.f32 0.0, %v829
        %v831 = vpop.f32.mrb[0].mxu0
        %832 = vmatprep.mubr.bf16.mxu0 0
        %833 = vmatmul.mubr.bf16.gmra.mrb[0].mxu0 %v506
        %v834 = vpop.f32.mrb[0].mxu0
        %v835 = vadd.f32 0.0, %v834
        %v836 = vpop.f32.mrb[0].mxu0
        %v837 = vpop.f32.mrb[0].mxu0
        %v838 = vadd.f32 0.0, %v837
        %v839 = vpop.f32.mrb[0].mxu0
        %840 = vmatprep.mubr.bf16.mxu0 0
        %841 = vmatmul.mubr.bf16.gmra.mrb[0].mxu0 %v507
        %v842 = vpop.f32.mrb[0].mxu0
        %v843 = vadd.f32 0.0, %v842
        %v844 = vpop.f32.mrb[0].mxu0
        %v845 = vpop.f32.mrb[0].mxu0
        %v846 = vadd.f32 0.0, %v845
        %v847 = vpop.f32.mrb[0].mxu0
        %848 = vmatprep.mubr.bf16.mxu0 0
        %849 = vmatmul.mubr.bf16.gmra.mrb[0].mxu0 %v508
        %v850 = vpop.f32.mrb[0].mxu0
        %v851 = vadd.f32 0.0, %v850
        %v852 = vpop.f32.mrb[0].mxu0
        %v853 = vpop.f32.mrb[0].mxu0
        %v854 = vadd.f32 0.0, %v853
        %v855 = vpop.f32.mrb[0].mxu0
        %856 = vmatprep.mubr.bf16.mxu0 0
        %857 = vmatmul.mubr.bf16.gmra.mrb[0].mxu0 %v509
        %v858 = vpop.f32.mrb[0].mxu0
        %v859 = vadd.f32 0.0, %v858
        %v860 = vpop.f32.mrb[0].mxu0
        %v861 = vpop.f32.mrb[0].mxu0
        %v862 = vadd.f32 0.0, %v861
        %v863 = vpop.f32.mrb[0].mxu0
        %864 = vmatprep.mubr.bf16.mxu0 0
        %865 = vmatmul.mubr.bf16.gmra.mrb[0].mxu0 %v510
        %v866 = vpop.f32.mrb[0].mxu0
        %v867 = vadd.f32 0.0, %v866
        %v868 = vpop.f32.mrb[0].mxu0
        %v869 = vpop.f32.mrb[0].mxu0
        %v870 = vadd.f32 0.0, %v869
        %v871 = vpop.f32.mrb[0].mxu0
        %872 = vmatprep.mubr.bf16.mxu0 0
        %873 = vmatmul.mubr.bf16.gmra.mrb[0].mxu0 %v511
        %v874 = vpop.f32.mrb[0].mxu0
        %v875 = vadd.f32 0.0, %v874
        %v876 = vpop.f32.mrb[0].mxu0
        %v877 = vpop.f32.mrb[0].mxu0
        %v878 = vadd.f32 0.0, %v877
        %v879 = vpop.f32.mrb[0].mxu0
        %880 = vdwg.mxu0
        %v881 = vpack.c.bf16 %v630, %v627
        %v882 = vpack.c.bf16 %v638, %v635
        %v883 = vpack.c.bf16 %v646, %v643
        %v884 = vpack.c.bf16 %v654, %v651
        %v885 = vpack.c.bf16 %v662, %v659
        %v886 = vpack.c.bf16 %v670, %v667
        %v887 = vpack.c.bf16 %v678, %v675
        %v888 = vpack.c.bf16 %v686, %v683
        %v889 = vpack.c.bf16 %v694, %v691
        %v890 = vpack.c.bf16 %v702, %v699
        %v891 = vpack.c.bf16 %v710, %v707
        %v892 = vpack.c.bf16 %v718, %v715
        %v893 = vpack.c.bf16 %v726, %v723
        %v894 = vpack.c.bf16 %v734, %v731
        %v895 = vpack.c.bf16 %v742, %v739
        %v896 = vpack.c.bf16 %v750, %v747
        %v897 = vpack.c.bf16 %v758, %v755
        %v898 = vpack.c.bf16 %v766, %v763
        %v899 = vpack.c.bf16 %v774, %v771
        %v900 = vpack.c.bf16 %v782, %v779
        %v901 = vpack.c.bf16 %v790, %v787
        %v902 = vpack.c.bf16 %v798, %v795
        %v903 = vpack.c.bf16 %v806, %v803
        %v904 = vpack.c.bf16 %v814, %v811
        %v905 = vpack.c.bf16 %v822, %v819
        %v906 = vpack.c.bf16 %v830, %v827
        %v907 = vpack.c.bf16 %v838, %v835
        %v908 = vpack.c.bf16 %v846, %v843
        %v909 = vpack.c.bf16 %v854, %v851
        %v910 = vpack.c.bf16 %v862, %v859
        %v911 = vpack.c.bf16 %v870, %v867
        %v912 = vpack.c.bf16 %v878, %v875
        %v913 = vld [vmem:[#allocation2] sm:$0xff]
        %v914 = vld [vmem:[#allocation2 + $0x8] sm:$0xff]
        %v915 = vld [vmem:[#allocation2 + $0x10] sm:$0xff]
        %v916 = vld [vmem:[#allocation2 + $0x18] sm:$0xff]
        %v917 = vld [vmem:[#allocation2 + $0x20] sm:$0xff]
        %v918 = vld [vmem:[#allocation2 + $0x28] sm:$0xff]
        %v919 = vld [vmem:[#allocation2 + $0x30] sm:$0xff]
        %v920 = vld [vmem:[#allocation2 + $0x38] sm:$0xff]
        %v921 = vld [vmem:[#allocation2 + $0x40] sm:$0xff]
        %v922 = vld [vmem:[#allocation2 + $0x48] sm:$0xff]
        %v923 = vld [vmem:[#allocation2 + $0x50] sm:$0xff]
        %v924 = vld [vmem:[#allocation2 + $0x58] sm:$0xff]
        %v925 = vld [vmem:[#allocation2 + $0x60] sm:$0xff]
        %v926 = vld [vmem:[#allocation2 + $0x68] sm:$0xff]
        %v927 = vld [vmem:[#allocation2 + $0x70] sm:$0xff]
        %v928 = vld [vmem:[#allocation2 + $0x78] sm:$0xff]
        %v929 = vld [vmem:[#allocation2 + $0x80] sm:$0xff]
        %v930 = vld [vmem:[#allocation2 + $0x88] sm:$0xff]
        %v931 = vld [vmem:[#allocation2 + $0x90] sm:$0xff]
        %v932 = vld [vmem:[#allocation2 + $0x98] sm:$0xff]
        %v933 = vld [vmem:[#allocation2 + $0xa0] sm:$0xff]
        %v934 = vld [vmem:[#allocation2 + $0xa8] sm:$0xff]
        %v935 = vld [vmem:[#allocation2 + $0xb0] sm:$0xff]
        %v936 = vld [vmem:[#allocation2 + $0xb8] sm:$0xff]
        %v937 = vld [vmem:[#allocation2 + $0xc0] sm:$0xff]
        %v938 = vld [vmem:[#allocation2 + $0xc8] sm:$0xff]
        %v939 = vld [vmem:[#allocation2 + $0xd0] sm:$0xff]
        %v940 = vld [vmem:[#allocation2 + $0xd8] sm:$0xff]
        %v941 = vld [vmem:[#allocation2 + $0xe0] sm:$0xff]
        %v942 = vld [vmem:[#allocation2 + $0xe8] sm:$0xff]
        %v943 = vld [vmem:[#allocation2 + $0xf0] sm:$0xff]
        %v944 = vld [vmem:[#allocation2 + $0xf8] sm:$0xff]
        %v945 = vld [vmem:[%s226] sm:$0xff]
        %v946 = vld [vmem:[%s226 + $0x8] sm:$0xff]
        %v947 = vld [vmem:[%s226 + $0x10] sm:$0xff]
        %v948 = vld [vmem:[%s226 + $0x18] sm:$0xff]
        %v949 = vld [vmem:[%s226 + $0x20] sm:$0xff]
        %v950 = vld [vmem:[%s226 + $0x28] sm:$0xff]
        %v951 = vld [vmem:[%s226 + $0x30] sm:$0xff]
        %v952 = vld [vmem:[%s226 + $0x38] sm:$0xff]
        %v953 = vld [vmem:[%s226 + $0x40] sm:$0xff]
        %v954 = vld [vmem:[%s226 + $0x48] sm:$0xff]
        %v955 = vld [vmem:[%s226 + $0x50] sm:$0xff]
        %v956 = vld [vmem:[%s226 + $0x58] sm:$0xff]
        %v957 = vld [vmem:[%s226 + $0x60] sm:$0xff]
        %v958 = vld [vmem:[%s226 + $0x68] sm:$0xff]
        %v959 = vld [vmem:[%s226 + $0x70] sm:$0xff]
        %v960 = vld [vmem:[%s226 + $0x78] sm:$0xff]
        %v961 = vld [vmem:[%s226 + $0x80] sm:$0xff]
        %v962 = vld [vmem:[%s226 + $0x88] sm:$0xff]
        %v963 = vld [vmem:[%s226 + $0x90] sm:$0xff]
        %v964 = vld [vmem:[%s226 + $0x98] sm:$0xff]
        %v965 = vld [vmem:[%s226 + $0xa0] sm:$0xff]
        %v966 = vld [vmem:[%s226 + $0xa8] sm:$0xff]
        %v967 = vld [vmem:[%s226 + $0xb0] sm:$0xff]
        %v968 = vld [vmem:[%s226 + $0xb8] sm:$0xff]
        %v969 = vld [vmem:[%s226 + $0xc0] sm:$0xff]
        %v970 = vld [vmem:[%s226 + $0xc8] sm:$0xff]
        %v971 = vld [vmem:[%s226 + $0xd0] sm:$0xff]
        %v972 = vld [vmem:[%s226 + $0xd8] sm:$0xff]
        %v973 = vld [vmem:[%s226 + $0xe0] sm:$0xff]
        %v974 = vld [vmem:[%s226 + $0xe8] sm:$0xff]
        %v975 = vld [vmem:[%s226 + $0xf0] sm:$0xff]
        %v976 = vld [vmem:[%s226 + $0xf8] sm:$0xff]
        %v977 = vld [vmem:[%s226 + $0x100] sm:$0xff]
        %v978 = vld [vmem:[%s226 + $0x108] sm:$0xff]
        %v979 = vld [vmem:[%s226 + $0x110] sm:$0xff]
        %v980 = vld [vmem:[%s226 + $0x118] sm:$0xff]
        %v981 = vld [vmem:[%s226 + $0x120] sm:$0xff]
        %v982 = vld [vmem:[%s226 + $0x128] sm:$0xff]
        %v983 = vld [vmem:[%s226 + $0x130] sm:$0xff]
        %v984 = vld [vmem:[%s226 + $0x138] sm:$0xff]
        %v985 = vld [vmem:[%s226 + $0x140] sm:$0xff]
        %v986 = vld [vmem:[%s226 + $0x148] sm:$0xff]
        %v987 = vld [vmem:[%s226 + $0x150] sm:$0xff]
        %v988 = vld [vmem:[%s226 + $0x158] sm:$0xff]
        %v989 = vld [vmem:[%s226 + $0x160] sm:$0xff]
        %v990 = vld [vmem:[%s226 + $0x168] sm:$0xff]
        %v991 = vld [vmem:[%s226 + $0x170] sm:$0xff]
        %v992 = vld [vmem:[%s226 + $0x178] sm:$0xff]
        %v993 = vld [vmem:[%s226 + $0x180] sm:$0xff]
        %v994 = vld [vmem:[%s226 + $0x188] sm:$0xff]
        %v995 = vld [vmem:[%s226 + $0x190] sm:$0xff]
        %v996 = vld [vmem:[%s226 + $0x198] sm:$0xff]
        %v997 = vld [vmem:[%s226 + $0x1a0] sm:$0xff]
        %v998 = vld [vmem:[%s226 + $0x1a8] sm:$0xff]
        %v999 = vld [vmem:[%s226 + $0x1b0] sm:$0xff]
        %v1000 = vld [vmem:[%s226 + $0x1b8] sm:$0xff]
        %v1001 = vld [vmem:[%s226 + $0x1c0] sm:$0xff]
        %v1002 = vld [vmem:[%s226 + $0x1c8] sm:$0xff]
        %v1003 = vld [vmem:[%s226 + $0x1d0] sm:$0xff]
        %v1004 = vld [vmem:[%s226 + $0x1d8] sm:$0xff]
        %v1005 = vld [vmem:[%s226 + $0x1e0] sm:$0xff]
        %v1006 = vld [vmem:[%s226 + $0x1e8] sm:$0xff]
        %v1007 = vld [vmem:[%s226 + $0x1f0] sm:$0xff]
        %v1008 = vld [vmem:[%s226 + $0x1f8] sm:$0xff]
        %v1073 = vunpack.c.l.b16 %v945
        %v1074 = vunpack.c.h.b16 %v945
        %v1075 = vunpack.c.l.b16 %v946
        %v1076 = vunpack.c.h.b16 %v946
        %v1077 = vunpack.c.l.b16 %v947
        %v1078 = vunpack.c.h.b16 %v947
        %v1079 = vunpack.c.l.b16 %v948
        %v1080 = vunpack.c.h.b16 %v948
        %v1081 = vunpack.c.l.b16 %v949
        %v1082 = vunpack.c.h.b16 %v949
        %v1083 = vunpack.c.l.b16 %v950
        %v1084 = vunpack.c.h.b16 %v950
        %v1085 = vunpack.c.l.b16 %v951
        %v1086 = vunpack.c.h.b16 %v951
        %v1087 = vunpack.c.l.b16 %v952
        %v1088 = vunpack.c.h.b16 %v952
        %v1089 = vunpack.c.l.b16 %v953
        %v1090 = vunpack.c.h.b16 %v953
        %v1091 = vunpack.c.l.b16 %v954
        %v1092 = vunpack.c.h.b16 %v954
        %v1093 = vunpack.c.l.b16 %v955
        %v1094 = vunpack.c.h.b16 %v955
        %v1095 = vunpack.c.l.b16 %v956
        %v1096 = vunpack.c.h.b16 %v956
        %v1097 = vunpack.c.l.b16 %v957
        %v1098 = vunpack.c.h.b16 %v957
        %v1099 = vunpack.c.l.b16 %v958
        %v1100 = vunpack.c.h.b16 %v958
        %v1101 = vunpack.c.l.b16 %v959
        %v1102 = vunpack.c.h.b16 %v959
        %v1103 = vunpack.c.l.b16 %v960
        %v1104 = vunpack.c.h.b16 %v960
        %v1105 = vunpack.c.l.b16 %v961
        %v1106 = vunpack.c.h.b16 %v961
        %v1107 = vunpack.c.l.b16 %v962
        %v1108 = vunpack.c.h.b16 %v962
        %v1109 = vunpack.c.l.b16 %v963
        %v1110 = vunpack.c.h.b16 %v963
        %v1111 = vunpack.c.l.b16 %v964
        %v1112 = vunpack.c.h.b16 %v964
        %v1113 = vunpack.c.l.b16 %v965
        %v1114 = vunpack.c.h.b16 %v965
        %v1115 = vunpack.c.l.b16 %v966
        %v1116 = vunpack.c.h.b16 %v966
        %v1117 = vunpack.c.l.b16 %v967
        %v1118 = vunpack.c.h.b16 %v967
        %v1119 = vunpack.c.l.b16 %v968
        %v1120 = vunpack.c.h.b16 %v968
        %v1121 = vunpack.c.l.b16 %v969
        %v1122 = vunpack.c.h.b16 %v969
        %v1123 = vunpack.c.l.b16 %v970
        %v1124 = vunpack.c.h.b16 %v970
        %v1125 = vunpack.c.l.b16 %v971
        %v1126 = vunpack.c.h.b16 %v971
        %v1127 = vunpack.c.l.b16 %v972
        %v1128 = vunpack.c.h.b16 %v972
        %v1129 = vunpack.c.l.b16 %v973
        %v1130 = vunpack.c.h.b16 %v973
        %v1131 = vunpack.c.l.b16 %v974
        %v1132 = vunpack.c.h.b16 %v974
        %v1133 = vunpack.c.l.b16 %v975
        %v1134 = vunpack.c.h.b16 %v975
        %v1135 = vunpack.c.l.b16 %v976
        %v1136 = vunpack.c.h.b16 %v976
        %v1137 = vunpack.c.l.b16 %v977
        %v1138 = vunpack.c.h.b16 %v977
        %v1139 = vunpack.c.l.b16 %v978
        %v1140 = vunpack.c.h.b16 %v978
        %v1141 = vunpack.c.l.b16 %v979
        %v1142 = vunpack.c.h.b16 %v979
        %v1143 = vunpack.c.l.b16 %v980
        %v1144 = vunpack.c.h.b16 %v980
        %v1145 = vunpack.c.l.b16 %v981
        %v1146 = vunpack.c.h.b16 %v981
        %v1147 = vunpack.c.l.b16 %v982
        %v1148 = vunpack.c.h.b16 %v982
        %v1149 = vunpack.c.l.b16 %v983
        %v1150 = vunpack.c.h.b16 %v983
        %v1151 = vunpack.c.l.b16 %v984
        %v1152 = vunpack.c.h.b16 %v984
        %v1153 = vunpack.c.l.b16 %v985
        %v1154 = vunpack.c.h.b16 %v985
        %v1155 = vunpack.c.l.b16 %v986
        %v1156 = vunpack.c.h.b16 %v986
        %v1157 = vunpack.c.l.b16 %v987
        %v1158 = vunpack.c.h.b16 %v987
        %v1159 = vunpack.c.l.b16 %v988
        %v1160 = vunpack.c.h.b16 %v988
        %v1161 = vunpack.c.l.b16 %v989
        %v1162 = vunpack.c.h.b16 %v989
        %v1163 = vunpack.c.l.b16 %v990
        %v1164 = vunpack.c.h.b16 %v990
        %v1165 = vunpack.c.l.b16 %v991
        %v1166 = vunpack.c.h.b16 %v991
        %v1167 = vunpack.c.l.b16 %v992
        %v1168 = vunpack.c.h.b16 %v992
        %v1169 = vunpack.c.l.b16 %v993
        %v1170 = vunpack.c.h.b16 %v993
        %v1171 = vunpack.c.l.b16 %v994
        %v1172 = vunpack.c.h.b16 %v994
        %v1173 = vunpack.c.l.b16 %v995
        %v1174 = vunpack.c.h.b16 %v995
        %v1175 = vunpack.c.l.b16 %v996
        %v1176 = vunpack.c.h.b16 %v996
        %v1177 = vunpack.c.l.b16 %v997
        %v1178 = vunpack.c.h.b16 %v997
        %v1179 = vunpack.c.l.b16 %v998
        %v1180 = vunpack.c.h.b16 %v998
        %v1181 = vunpack.c.l.b16 %v999
        %v1182 = vunpack.c.h.b16 %v999
        %v1183 = vunpack.c.l.b16 %v1000
        %v1184 = vunpack.c.h.b16 %v1000
        %v1185 = vunpack.c.l.b16 %v1001
        %v1186 = vunpack.c.h.b16 %v1001
        %v1187 = vunpack.c.l.b16 %v1002
        %v1188 = vunpack.c.h.b16 %v1002
        %v1189 = vunpack.c.l.b16 %v1003
        %v1190 = vunpack.c.h.b16 %v1003
        %v1191 = vunpack.c.l.b16 %v1004
        %v1192 = vunpack.c.h.b16 %v1004
        %v1193 = vunpack.c.l.b16 %v1005
        %v1194 = vunpack.c.h.b16 %v1005
        %v1195 = vunpack.c.l.b16 %v1006
        %v1196 = vunpack.c.h.b16 %v1006
        %v1197 = vunpack.c.l.b16 %v1007
        %v1198 = vunpack.c.h.b16 %v1007
        %v1199 = vunpack.c.l.b16 %v1008
        %v1200 = vunpack.c.h.b16 %v1008
        %v1201 = vpack.c.b16 %v1077, %v1073
        %v1202 = vpack.c.b16 %v1078, %v1074
        %v1203 = vpack.c.b16 %v1079, %v1075
        %v1204 = vpack.c.b16 %v1080, %v1076
        %v1205 = vpack.c.b16 %v1085, %v1081
        %v1206 = vpack.c.b16 %v1086, %v1082
        %v1207 = vpack.c.b16 %v1087, %v1083
        %v1208 = vpack.c.b16 %v1088, %v1084
        %v1209 = vpack.c.b16 %v1093, %v1089
        %v1210 = vpack.c.b16 %v1094, %v1090
        %v1211 = vpack.c.b16 %v1095, %v1091
        %v1212 = vpack.c.b16 %v1096, %v1092
        %v1213 = vpack.c.b16 %v1101, %v1097
        %v1214 = vpack.c.b16 %v1102, %v1098
        %v1215 = vpack.c.b16 %v1103, %v1099
        %v1216 = vpack.c.b16 %v1104, %v1100
        %v1217 = vpack.c.b16 %v1109, %v1105
        %v1218 = vpack.c.b16 %v1110, %v1106
        %v1219 = vpack.c.b16 %v1111, %v1107
        %v1220 = vpack.c.b16 %v1112, %v1108
        %v1221 = vpack.c.b16 %v1117, %v1113
        %v1222 = vpack.c.b16 %v1118, %v1114
        %v1223 = vpack.c.b16 %v1119, %v1115
        %v1224 = vpack.c.b16 %v1120, %v1116
        %v1225 = vpack.c.b16 %v1125, %v1121
        %v1226 = vpack.c.b16 %v1126, %v1122
        %v1227 = vpack.c.b16 %v1127, %v1123
        %v1228 = vpack.c.b16 %v1128, %v1124
        %v1229 = vpack.c.b16 %v1133, %v1129
        %v1230 = vpack.c.b16 %v1134, %v1130
        %v1231 = vpack.c.b16 %v1135, %v1131
        %v1232 = vpack.c.b16 %v1136, %v1132
        %v1233 = vpack.c.b16 %v1141, %v1137
        %v1234 = vpack.c.b16 %v1142, %v1138
        %v1235 = vpack.c.b16 %v1143, %v1139
        %v1236 = vpack.c.b16 %v1144, %v1140
        %v1237 = vpack.c.b16 %v1149, %v1145
        %v1238 = vpack.c.b16 %v1150, %v1146
        %v1239 = vpack.c.b16 %v1151, %v1147
        %v1240 = vpack.c.b16 %v1152, %v1148
        %v1241 = vpack.c.b16 %v1157, %v1153
        %v1242 = vpack.c.b16 %v1158, %v1154
        %v1243 = vpack.c.b16 %v1159, %v1155
        %v1244 = vpack.c.b16 %v1160, %v1156
        %v1245 = vpack.c.b16 %v1165, %v1161
        %v1246 = vpack.c.b16 %v1166, %v1162
        %v1247 = vpack.c.b16 %v1167, %v1163
        %v1248 = vpack.c.b16 %v1168, %v1164
        %v1249 = vpack.c.b16 %v1173, %v1169
        %v1250 = vpack.c.b16 %v1174, %v1170
        %v1251 = vpack.c.b16 %v1175, %v1171
        %v1252 = vpack.c.b16 %v1176, %v1172
        %v1253 = vpack.c.b16 %v1181, %v1177
        %v1254 = vpack.c.b16 %v1182, %v1178
        %v1255 = vpack.c.b16 %v1183, %v1179
        %v1256 = vpack.c.b16 %v1184, %v1180
        %v1257 = vpack.c.b16 %v1189, %v1185
        %v1258 = vpack.c.b16 %v1190, %v1186
        %v1259 = vpack.c.b16 %v1191, %v1187
        %v1260 = vpack.c.b16 %v1192, %v1188
        %v1261 = vpack.c.b16 %v1197, %v1193
        %v1262 = vpack.c.b16 %v1198, %v1194
        %v1263 = vpack.c.b16 %v1199, %v1195
        %v1264 = vpack.c.b16 %v1200, %v1196
        %1329 = vmatprep.subr.bf16.mxu0 0
        %1330 = vmatpush1.bf16.msra.mxu0 %v881
        %1331 = vmatprep.subr.bf16.mxu0 0
        %1332 = vmatpush1.bf16.msra.mxu0 %v882
        %1333 = vmatprep.subr.bf16.mxu0 0
        %1334 = vmatpush1.bf16.msra.mxu0 %v883
        %1335 = vmatprep.subr.bf16.mxu0 0
        %1336 = vmatpush1.bf16.msra.mxu0 %v884
        %1337 = vmatprep.subr.bf16.mxu0 0
        %1338 = vmatpush1.bf16.msra.mxu0 %v885
        %1339 = vmatprep.subr.bf16.mxu0 0
        %1340 = vmatpush1.bf16.msra.mxu0 %v886
        %1341 = vmatprep.subr.bf16.mxu0 0
        %1342 = vmatpush1.bf16.msra.mxu0 %v887
        %1343 = vmatprep.subr.bf16.mxu0 0
        %1344 = vmatpush1.bf16.msra.mxu0 %v888
        %1345 = vmatprep.subr.bf16.mxu0 0
        %1346 = vmatpush1.bf16.msra.mxu0 %v889
        %1347 = vmatprep.subr.bf16.mxu0 0
        %1348 = vmatpush1.bf16.msra.mxu0 %v890
        %1349 = vmatprep.subr.bf16.mxu0 0
        %1350 = vmatpush1.bf16.msra.mxu0 %v891
        %1351 = vmatprep.subr.bf16.mxu0 0
        %1352 = vmatpush1.bf16.msra.mxu0 %v892
        %1353 = vmatprep.subr.bf16.mxu0 0
        %1354 = vmatpush1.bf16.msra.mxu0 %v893
        %1355 = vmatprep.subr.bf16.mxu0 0
        %1356 = vmatpush1.bf16.msra.mxu0 %v894
        %1357 = vmatprep.subr.bf16.mxu0 0
        %1358 = vmatpush1.bf16.msra.mxu0 %v895
        %1359 = vmatprep.subr.bf16.mxu0 0
        %1360 = vmatpush1.bf16.msra.mxu0 %v896
        %1361 = vmatprep.mubr.bf16.mxu0 %v1202
        %1362 = vmatmul.mubr.bf16.gmra.mrb[0].mxu0 %v1201
        %v1363 = vpop.f32.mrb[0].mxu0
        %v1364 = vadd.f32 0.0, %v1363
        %v1365 = vpop.f32.mrb[0].mxu0
        %v1366 = vpop.f32.mrb[0].mxu0
        %v1367 = vadd.f32 0.0, %v1366
        %v1368 = vpop.f32.mrb[0].mxu0
        %1369 = vmatprep.mubr.bf16.mxu0 %v1206
        %1370 = vmatmul.mubr.bf16.gmra.mrb[0].mxu0 %v1205
        %v1371 = vpop.f32.mrb[0].mxu0
        %v1372 = vadd.f32 0.0, %v1371
        %v1373 = vpop.f32.mrb[0].mxu0
        %v1374 = vpop.f32.mrb[0].mxu0
        %v1375 = vadd.f32 0.0, %v1374
        %v1376 = vpop.f32.mrb[0].mxu0
        %1377 = vmatprep.mubr.bf16.mxu0 %v1210
        %1378 = vmatmul.mubr.bf16.gmra.mrb[0].mxu0 %v1209
        %v1379 = vpop.f32.mrb[0].mxu0
        %v1380 = vadd.f32 0.0, %v1379
        %v1381 = vpop.f32.mrb[0].mxu0
        %v1382 = vpop.f32.mrb[0].mxu0
        %v1383 = vadd.f32 0.0, %v1382
        %v1384 = vpop.f32.mrb[0].mxu0
        %1385 = vmatprep.mubr.bf16.mxu0 %v1214
        %1386 = vmatmul.mubr.bf16.gmra.mrb[0].mxu0 %v1213
        %v1387 = vpop.f32.mrb[0].mxu0
        %v1388 = vadd.f32 0.0, %v1387
        %v1389 = vpop.f32.mrb[0].mxu0
        %v1390 = vpop.f32.mrb[0].mxu0
        %v1391 = vadd.f32 0.0, %v1390
        %v1392 = vpop.f32.mrb[0].mxu0
        %1393 = vmatprep.mubr.bf16.mxu0 %v1218
        %1394 = vmatmul.mubr.bf16.gmra.mrb[0].mxu0 %v1217
        %v1395 = vpop.f32.mrb[0].mxu0
        %v1396 = vadd.f32 0.0, %v1395
        %v1397 = vpop.f32.mrb[0].mxu0
        %v1398 = vpop.f32.mrb[0].mxu0
        %v1399 = vadd.f32 0.0, %v1398
        %v1400 = vpop.f32.mrb[0].mxu0
        %1401 = vmatprep.mubr.bf16.mxu0 %v1222
        %1402 = vmatmul.mubr.bf16.gmra.mrb[0].mxu0 %v1221
        %v1403 = vpop.f32.mrb[0].mxu0
        %v1404 = vadd.f32 0.0, %v1403
        %v1405 = vpop.f32.mrb[0].mxu0
        %v1406 = vpop.f32.mrb[0].mxu0
        %v1407 = vadd.f32 0.0, %v1406
        %v1408 = vpop.f32.mrb[0].mxu0
        %1409 = vmatprep.mubr.bf16.mxu0 %v1226
        %1410 = vmatmul.mubr.bf16.gmra.mrb[0].mxu0 %v1225
        %v1411 = vpop.f32.mrb[0].mxu0
        %v1412 = vadd.f32 0.0, %v1411
        %v1413 = vpop.f32.mrb[0].mxu0
        %v1414 = vpop.f32.mrb[0].mxu0
        %v1415 = vadd.f32 0.0, %v1414
        %v1416 = vpop.f32.mrb[0].mxu0
        %1417 = vmatprep.mubr.bf16.mxu0 %v1230
        %1418 = vmatmul.mubr.bf16.gmra.mrb[0].mxu0 %v1229
        %v1419 = vpop.f32.mrb[0].mxu0
        %v1420 = vadd.f32 0.0, %v1419
        %v1421 = vpop.f32.mrb[0].mxu0
        %v1422 = vpop.f32.mrb[0].mxu0
        %v1423 = vadd.f32 0.0, %v1422
        %v1424 = vpop.f32.mrb[0].mxu0
        %1425 = vmatprep.mubr.bf16.mxu0 %v1234
        %1426 = vmatmul.mubr.bf16.gmra.mrb[0].mxu0 %v1233
        %v1427 = vpop.f32.mrb[0].mxu0
        %v1428 = vadd.f32 0.0, %v1427
        %v1429 = vpop.f32.mrb[0].mxu0
        %v1430 = vpop.f32.mrb[0].mxu0
        %v1431 = vadd.f32 0.0, %v1430
        %v1432 = vpop.f32.mrb[0].mxu0
        %1433 = vmatprep.mubr.bf16.mxu0 %v1238
        %1434 = vmatmul.mubr.bf16.gmra.mrb[0].mxu0 %v1237
        %v1435 = vpop.f32.mrb[0].mxu0
        %v1436 = vadd.f32 0.0, %v1435
        %v1437 = vpop.f32.mrb[0].mxu0
        %v1438 = vpop.f32.mrb[0].mxu0
        %v1439 = vadd.f32 0.0, %v1438
        %v1440 = vpop.f32.mrb[0].mxu0
        %1441 = vmatprep.mubr.bf16.mxu0 %v1242
        %1442 = vmatmul.mubr.bf16.gmra.mrb[0].mxu0 %v1241
        %v1443 = vpop.f32.mrb[0].mxu0
        %v1444 = vadd.f32 0.0, %v1443
        %v1445 = vpop.f32.mrb[0].mxu0
        %v1446 = vpop.f32.mrb[0].mxu0
        %v1447 = vadd.f32 0.0, %v1446
        %v1448 = vpop.f32.mrb[0].mxu0
        %1449 = vmatprep.mubr.bf16.mxu0 %v1246
        %1450 = vmatmul.mubr.bf16.gmra.mrb[0].mxu0 %v1245
        %v1451 = vpop.f32.mrb[0].mxu0
        %v1452 = vadd.f32 0.0, %v1451
        %v1453 = vpop.f32.mrb[0].mxu0
        %v1454 = vpop.f32.mrb[0].mxu0
        %v1455 = vadd.f32 0.0, %v1454
        %v1456 = vpop.f32.mrb[0].mxu0
        %1457 = vmatprep.mubr.bf16.mxu0 %v1250
        %1458 = vmatmul.mubr.bf16.gmra.mrb[0].mxu0 %v1249
        %v1459 = vpop.f32.mrb[0].mxu0
        %v1460 = vadd.f32 0.0, %v1459
        %v1461 = vpop.f32.mrb[0].mxu0
        %v1462 = vpop.f32.mrb[0].mxu0
        %v1463 = vadd.f32 0.0, %v1462
        %v1464 = vpop.f32.mrb[0].mxu0
        %1465 = vmatprep.mubr.bf16.mxu0 %v1254
        %1466 = vmatmul.mubr.bf16.gmra.mrb[0].mxu0 %v1253
        %v1467 = vpop.f32.mrb[0].mxu0
        %v1468 = vadd.f32 0.0, %v1467
        %v1469 = vpop.f32.mrb[0].mxu0
        %v1470 = vpop.f32.mrb[0].mxu0
        %v1471 = vadd.f32 0.0, %v1470
        %v1472 = vpop.f32.mrb[0].mxu0
        %1473 = vmatprep.mubr.bf16.mxu0 %v1258
        %1474 = vmatmul.mubr.bf16.gmra.mrb[0].mxu0 %v1257
        %v1475 = vpop.f32.mrb[0].mxu0
        %v1476 = vadd.f32 0.0, %v1475
        %v1477 = vpop.f32.mrb[0].mxu0
        %v1478 = vpop.f32.mrb[0].mxu0
        %v1479 = vadd.f32 0.0, %v1478
        %v1480 = vpop.f32.mrb[0].mxu0
        %1481 = vmatprep.mubr.bf16.mxu0 %v1262
        %1482 = vmatmul.mubr.bf16.gmra.mrb[0].mxu0 %v1261
        %v1483 = vpop.f32.mrb[0].mxu0
        %v1484 = vadd.f32 0.0, %v1483
        %v1485 = vpop.f32.mrb[0].mxu0
        %v1486 = vpop.f32.mrb[0].mxu0
        %v1487 = vadd.f32 0.0, %v1486
        %v1488 = vpop.f32.mrb[0].mxu0
        %1489 = vdwg.mxu0
        %1490 = vmatprep.subr.bf16.mxu0 0
        %1491 = vmatpush1.bf16.msra.mxu0 %v897
        %1492 = vmatprep.subr.bf16.mxu0 0
        %1493 = vmatpush1.bf16.msra.mxu0 %v898
        %1494 = vmatprep.subr.bf16.mxu0 0
        %1495 = vmatpush1.bf16.msra.mxu0 %v899
        %1496 = vmatprep.subr.bf16.mxu0 0
        %1497 = vmatpush1.bf16.msra.mxu0 %v900
        %1498 = vmatprep.subr.bf16.mxu0 0
        %1499 = vmatpush1.bf16.msra.mxu0 %v901
        %1500 = vmatprep.subr.bf16.mxu0 0
        %1501 = vmatpush1.bf16.msra.mxu0 %v902
        %1502 = vmatprep.subr.bf16.mxu0 0
        %1503 = vmatpush1.bf16.msra.mxu0 %v903
        %1504 = vmatprep.subr.bf16.mxu0 0
        %1505 = vmatpush1.bf16.msra.mxu0 %v904
        %1506 = vmatprep.subr.bf16.mxu0 0
        %1507 = vmatpush1.bf16.msra.mxu0 %v905
        %1508 = vmatprep.subr.bf16.mxu0 0
        %1509 = vmatpush1.bf16.msra.mxu0 %v906
        %1510 = vmatprep.subr.bf16.mxu0 0
        %1511 = vmatpush1.bf16.msra.mxu0 %v907
        %1512 = vmatprep.subr.bf16.mxu0 0
        %1513 = vmatpush1.bf16.msra.mxu0 %v908
        %1514 = vmatprep.subr.bf16.mxu0 0
        %1515 = vmatpush1.bf16.msra.mxu0 %v909
        %1516 = vmatprep.subr.bf16.mxu0 0
        %1517 = vmatpush1.bf16.msra.mxu0 %v910
        %1518 = vmatprep.subr.bf16.mxu0 0
        %1519 = vmatpush1.bf16.msra.mxu0 %v911
        %1520 = vmatprep.subr.bf16.mxu0 0
        %1521 = vmatpush1.bf16.msra.mxu0 %v912
        %1522 = vmatprep.mubr.bf16.mxu0 %v1204
        %1523 = vmatmul.mubr.bf16.gmra.mrb[0].mxu0 %v1203
        %v1524 = vpop.f32.mrb[0].mxu0
        %v1525 = vadd.f32 %v1364, %v1524
        %v1526 = vpop.f32.mrb[0].mxu0
        %v1527 = vpop.f32.mrb[0].mxu0
        %v1528 = vadd.f32 %v1367, %v1527
        %v1529 = vpop.f32.mrb[0].mxu0
        %1530 = vmatprep.mubr.bf16.mxu0 %v1208
        %1531 = vmatmul.mubr.bf16.gmra.mrb[0].mxu0 %v1207
        %v1532 = vpop.f32.mrb[0].mxu0
        %v1533 = vadd.f32 %v1372, %v1532
        %v1534 = vpop.f32.mrb[0].mxu0
        %v1535 = vpop.f32.mrb[0].mxu0
        %v1536 = vadd.f32 %v1375, %v1535
        %v1537 = vpop.f32.mrb[0].mxu0
        %1538 = vmatprep.mubr.bf16.mxu0 %v1212
        %1539 = vmatmul.mubr.bf16.gmra.mrb[0].mxu0 %v1211
        %v1540 = vpop.f32.mrb[0].mxu0
        %v1541 = vadd.f32 %v1380, %v1540
        %v1542 = vpop.f32.mrb[0].mxu0
        %v1543 = vpop.f32.mrb[0].mxu0
        %v1544 = vadd.f32 %v1383, %v1543
        %v1545 = vpop.f32.mrb[0].mxu0
        %1546 = vmatprep.mubr.bf16.mxu0 %v1216
        %1547 = vmatmul.mubr.bf16.gmra.mrb[0].mxu0 %v1215
        %v1548 = vpop.f32.mrb[0].mxu0
        %v1549 = vadd.f32 %v1388, %v1548
        %v1550 = vpop.f32.mrb[0].mxu0
        %v1551 = vpop.f32.mrb[0].mxu0
        %v1552 = vadd.f32 %v1391, %v1551
        %v1553 = vpop.f32.mrb[0].mxu0
        %1554 = vmatprep.mubr.bf16.mxu0 %v1220
        %1555 = vmatmul.mubr.bf16.gmra.mrb[0].mxu0 %v1219
        %v1556 = vpop.f32.mrb[0].mxu0
        %v1557 = vadd.f32 %v1396, %v1556
        %v1558 = vpop.f32.mrb[0].mxu0
        %v1559 = vpop.f32.mrb[0].mxu0
        %v1560 = vadd.f32 %v1399, %v1559
        %v1561 = vpop.f32.mrb[0].mxu0
        %1562 = vmatprep.mubr.bf16.mxu0 %v1224
        %1563 = vmatmul.mubr.bf16.gmra.mrb[0].mxu0 %v1223
        %v1564 = vpop.f32.mrb[0].mxu0
        %v1565 = vadd.f32 %v1404, %v1564
        %v1566 = vpop.f32.mrb[0].mxu0
        %v1567 = vpop.f32.mrb[0].mxu0
        %v1568 = vadd.f32 %v1407, %v1567
        %v1569 = vpop.f32.mrb[0].mxu0
        %1570 = vmatprep.mubr.bf16.mxu0 %v1228
        %1571 = vmatmul.mubr.bf16.gmra.mrb[0].mxu0 %v1227
        %v1572 = vpop.f32.mrb[0].mxu0
        %v1573 = vadd.f32 %v1412, %v1572
        %v1574 = vpop.f32.mrb[0].mxu0
        %v1575 = vpop.f32.mrb[0].mxu0
        %v1576 = vadd.f32 %v1415, %v1575
        %v1577 = vpop.f32.mrb[0].mxu0
        %1578 = vmatprep.mubr.bf16.mxu0 %v1232
        %1579 = vmatmul.mubr.bf16.gmra.mrb[0].mxu0 %v1231
        %v1580 = vpop.f32.mrb[0].mxu0
        %v1581 = vadd.f32 %v1420, %v1580
        %v1582 = vpop.f32.mrb[0].mxu0
        %v1583 = vpop.f32.mrb[0].mxu0
        %v1584 = vadd.f32 %v1423, %v1583
        %v1585 = vpop.f32.mrb[0].mxu0
        %1586 = vmatprep.mubr.bf16.mxu0 %v1236
        %1587 = vmatmul.mubr.bf16.gmra.mrb[0].mxu0 %v1235
        %v1588 = vpop.f32.mrb[0].mxu0
        %v1589 = vadd.f32 %v1428, %v1588
        %v1590 = vpop.f32.mrb[0].mxu0
        %v1591 = vpop.f32.mrb[0].mxu0
        %v1592 = vadd.f32 %v1431, %v1591
        %v1593 = vpop.f32.mrb[0].mxu0
        %1594 = vmatprep.mubr.bf16.mxu0 %v1240
        %1595 = vmatmul.mubr.bf16.gmra.mrb[0].mxu0 %v1239
        %v1596 = vpop.f32.mrb[0].mxu0
        %v1597 = vadd.f32 %v1436, %v1596
        %v1598 = vpop.f32.mrb[0].mxu0
        %v1599 = vpop.f32.mrb[0].mxu0
        %v1600 = vadd.f32 %v1439, %v1599
        %v1601 = vpop.f32.mrb[0].mxu0
        %1602 = vmatprep.mubr.bf16.mxu0 %v1244
        %1603 = vmatmul.mubr.bf16.gmra.mrb[0].mxu0 %v1243
        %v1604 = vpop.f32.mrb[0].mxu0
        %v1605 = vadd.f32 %v1444, %v1604
        %v1606 = vpop.f32.mrb[0].mxu0
        %v1607 = vpop.f32.mrb[0].mxu0
        %v1608 = vadd.f32 %v1447, %v1607
        %v1609 = vpop.f32.mrb[0].mxu0
        %1610 = vmatprep.mubr.bf16.mxu0 %v1248
        %1611 = vmatmul.mubr.bf16.gmra.mrb[0].mxu0 %v1247
        %v1612 = vpop.f32.mrb[0].mxu0
        %v1613 = vadd.f32 %v1452, %v1612
        %v1614 = vpop.f32.mrb[0].mxu0
        %v1615 = vpop.f32.mrb[0].mxu0
        %v1616 = vadd.f32 %v1455, %v1615
        %v1617 = vpop.f32.mrb[0].mxu0
        %1618 = vmatprep.mubr.bf16.mxu0 %v1252
        %1619 = vmatmul.mubr.bf16.gmra.mrb[0].mxu0 %v1251
        %v1620 = vpop.f32.mrb[0].mxu0
        %v1621 = vadd.f32 %v1460, %v1620
        %v1622 = vpop.f32.mrb[0].mxu0
        %v1623 = vpop.f32.mrb[0].mxu0
        %v1624 = vadd.f32 %v1463, %v1623
        %v1625 = vpop.f32.mrb[0].mxu0
        %1626 = vmatprep.mubr.bf16.mxu0 %v1256
        %1627 = vmatmul.mubr.bf16.gmra.mrb[0].mxu0 %v1255
        %v1628 = vpop.f32.mrb[0].mxu0
        %v1629 = vadd.f32 %v1468, %v1628
        %v1630 = vpop.f32.mrb[0].mxu0
        %v1631 = vpop.f32.mrb[0].mxu0
        %v1632 = vadd.f32 %v1471, %v1631
        %v1633 = vpop.f32.mrb[0].mxu0
        %1634 = vmatprep.mubr.bf16.mxu0 %v1260
        %1635 = vmatmul.mubr.bf16.gmra.mrb[0].mxu0 %v1259
        %v1636 = vpop.f32.mrb[0].mxu0
        %v1637 = vadd.f32 %v1476, %v1636
        %v1638 = vpop.f32.mrb[0].mxu0
        %v1639 = vpop.f32.mrb[0].mxu0
        %v1640 = vadd.f32 %v1479, %v1639
        %v1641 = vpop.f32.mrb[0].mxu0
        %1642 = vmatprep.mubr.bf16.mxu0 %v1264
        %1643 = vmatmul.mubr.bf16.gmra.mrb[0].mxu0 %v1263
        %v1644 = vpop.f32.mrb[0].mxu0
        %v1645 = vadd.f32 %v1484, %v1644
        %v1646 = vpop.f32.mrb[0].mxu0
        %v1647 = vpop.f32.mrb[0].mxu0
        %v1648 = vadd.f32 %v1487, %v1647
        %v1649 = vpop.f32.mrb[0].mxu0
        %1650 = vdwg.mxu0
        %v1651 = vadd.f32 %v913, %v1525
        %v1652 = vadd.f32 %v914, %v1528
        %v1653 = vadd.f32 %v915, %v1533
        %v1654 = vadd.f32 %v916, %v1536
        %v1655 = vadd.f32 %v917, %v1541
        %v1656 = vadd.f32 %v918, %v1544
        %v1657 = vadd.f32 %v919, %v1549
        %v1658 = vadd.f32 %v920, %v1552
        %v1659 = vadd.f32 %v921, %v1557
        %v1660 = vadd.f32 %v922, %v1560
        %v1661 = vadd.f32 %v923, %v1565
        %v1662 = vadd.f32 %v924, %v1568
        %v1663 = vadd.f32 %v925, %v1573
        %v1664 = vadd.f32 %v926, %v1576
        %v1665 = vadd.f32 %v927, %v1581
        %v1666 = vadd.f32 %v928, %v1584
        %v1667 = vadd.f32 %v929, %v1589
        %v1668 = vadd.f32 %v930, %v1592
        %v1669 = vadd.f32 %v931, %v1597
        %v1670 = vadd.f32 %v932, %v1600
        %v1671 = vadd.f32 %v933, %v1605
        %v1672 = vadd.f32 %v934, %v1608
        %v1673 = vadd.f32 %v935, %v1613
        %v1674 = vadd.f32 %v936, %v1616
        %v1675 = vadd.f32 %v937, %v1621
        %v1676 = vadd.f32 %v938, %v1624
        %v1677 = vadd.f32 %v939, %v1629
        %v1678 = vadd.f32 %v940, %v1632
        %v1679 = vadd.f32 %v941, %v1637
        %v1680 = vadd.f32 %v942, %v1640
        %v1681 = vadd.f32 %v943, %v1645
        %v1682 = vadd.f32 %v944, %v1648
        %1683 = vst [vmem:[#allocation2] sm:$0xff] %v1651
        %1684 = vst [vmem:[#allocation2 + $0x8] sm:$0xff] %v1652
        %1685 = vst [vmem:[#allocation2 + $0x10] sm:$0xff] %v1653
        %1686 = vst [vmem:[#allocation2 + $0x18] sm:$0xff] %v1654
        %1687 = vst [vmem:[#allocation2 + $0x20] sm:$0xff] %v1655
        %1688 = vst [vmem:[#allocation2 + $0x28] sm:$0xff] %v1656
        %1689 = vst [vmem:[#allocation2 + $0x30] sm:$0xff] %v1657
        %1690 = vst [vmem:[#allocation2 + $0x38] sm:$0xff] %v1658
        %1691 = vst [vmem:[#allocation2 + $0x40] sm:$0xff] %v1659
        %1692 = vst [vmem:[#allocation2 + $0x48] sm:$0xff] %v1660
        %1693 = vst [vmem:[#allocation2 + $0x50] sm:$0xff] %v1661
        %1694 = vst [vmem:[#allocation2 + $0x58] sm:$0xff] %v1662
        %1695 = vst [vmem:[#allocation2 + $0x60] sm:$0xff] %v1663
        %1696 = vst [vmem:[#allocation2 + $0x68] sm:$0xff] %v1664
        %1697 = vst [vmem:[#allocation2 + $0x70] sm:$0xff] %v1665
        %1698 = vst [vmem:[#allocation2 + $0x78] sm:$0xff] %v1666
        %1699 = vst [vmem:[#allocation2 + $0x80] sm:$0xff] %v1667
        %1700 = vst [vmem:[#allocation2 + $0x88] sm:$0xff] %v1668
        %1701 = vst [vmem:[#allocation2 + $0x90] sm:$0xff] %v1669
        %1702 = vst [vmem:[#allocation2 + $0x98] sm:$0xff] %v1670
        %1703 = vst [vmem:[#allocation2 + $0xa0] sm:$0xff] %v1671
        %1704 = vst [vmem:[#allocation2 + $0xa8] sm:$0xff] %v1672
        %1705 = vst [vmem:[#allocation2 + $0xb0] sm:$0xff] %v1673
        %1706 = vst [vmem:[#allocation2 + $0xb8] sm:$0xff] %v1674
        %1707 = vst [vmem:[#allocation2 + $0xc0] sm:$0xff] %v1675
        %1708 = vst [vmem:[#allocation2 + $0xc8] sm:$0xff] %v1676
        %1709 = vst [vmem:[#allocation2 + $0xd0] sm:$0xff] %v1677
        %1710 = vst [vmem:[#allocation2 + $0xd8] sm:$0xff] %v1678
        %1711 = vst [vmem:[#allocation2 + $0xe0] sm:$0xff] %v1679
        %1712 = vst [vmem:[#allocation2 + $0xe8] sm:$0xff] %v1680
        %1713 = vst [vmem:[#allocation2 + $0xf0] sm:$0xff] %v1681
        %1714 = vst [vmem:[#allocation2 + $0xf8] sm:$0xff] %v1682
        // Predicated region
        $region41: #{gcn_forward.3} parent=35 // pred_check
          %p1715 = pneg %p231
        $region42: #{gcn_forward.3} parent=35 // pred_check_branch
          %1717 = sbr.rel (%p1715) target = $region44
        $region43: #{gcn_forward.3} parent=35 // pred_region
          %v1718 = vld [vmem:[#allocation2] sm:$0xff]
          %v1719 = vld [vmem:[#allocation2 + $0x8] sm:$0xff]
          %v1720 = vld [vmem:[#allocation2 + $0x10] sm:$0xff]
          %v1721 = vld [vmem:[#allocation2 + $0x18] sm:$0xff]
          %v1722 = vld [vmem:[#allocation2 + $0x20] sm:$0xff]
          %v1723 = vld [vmem:[#allocation2 + $0x28] sm:$0xff]
          %v1724 = vld [vmem:[#allocation2 + $0x30] sm:$0xff]
          %v1725 = vld [vmem:[#allocation2 + $0x38] sm:$0xff]
          %v1726 = vld [vmem:[#allocation2 + $0x40] sm:$0xff]
          %v1727 = vld [vmem:[#allocation2 + $0x48] sm:$0xff]
          %v1728 = vld [vmem:[#allocation2 + $0x50] sm:$0xff]
          %v1729 = vld [vmem:[#allocation2 + $0x58] sm:$0xff]
          %v1730 = vld [vmem:[#allocation2 + $0x60] sm:$0xff]
          %v1731 = vld [vmem:[#allocation2 + $0x68] sm:$0xff]
          %v1732 = vld [vmem:[#allocation2 + $0x70] sm:$0xff]
          %v1733 = vld [vmem:[#allocation2 + $0x78] sm:$0xff]
          %v1734 = vld [vmem:[#allocation2 + $0x80] sm:$0xff]
          %v1735 = vld [vmem:[#allocation2 + $0x88] sm:$0xff]
          %v1736 = vld [vmem:[#allocation2 + $0x90] sm:$0xff]
          %v1737 = vld [vmem:[#allocation2 + $0x98] sm:$0xff]
          %v1738 = vld [vmem:[#allocation2 + $0xa0] sm:$0xff]
          %v1739 = vld [vmem:[#allocation2 + $0xa8] sm:$0xff]
          %v1740 = vld [vmem:[#allocation2 + $0xb0] sm:$0xff]
          %v1741 = vld [vmem:[#allocation2 + $0xb8] sm:$0xff]
          %v1742 = vld [vmem:[#allocation2 + $0xc0] sm:$0xff]
          %v1743 = vld [vmem:[#allocation2 + $0xc8] sm:$0xff]
          %v1744 = vld [vmem:[#allocation2 + $0xd0] sm:$0xff]
          %v1745 = vld [vmem:[#allocation2 + $0xd8] sm:$0xff]
          %v1746 = vld [vmem:[#allocation2 + $0xe0] sm:$0xff]
          %v1747 = vld [vmem:[#allocation2 + $0xe8] sm:$0xff]
          %v1748 = vld [vmem:[#allocation2 + $0xf0] sm:$0xff]
          %v1749 = vld [vmem:[#allocation2 + $0xf8] sm:$0xff]
          %v1750 = vld [vmem:[%s3] sm:$0x1]
          %v1752 = vlaneseq
          %v1753 = vshrl.u32 %v1752, 7
          %v1754 = vsub.s32 0, %v1753
          %v1755 = vrot.slane %v1750, %v1754
          %v1757 = vadd.f32 %v1718, %v1755
          %v1758 = vadd.f32 %v1719, %v1755
          %v1759 = vadd.f32 %v1720, %v1755
          %v1760 = vadd.f32 %v1721, %v1755
          %v1761 = vadd.f32 %v1722, %v1755
          %v1762 = vadd.f32 %v1723, %v1755
          %v1763 = vadd.f32 %v1724, %v1755
          %v1764 = vadd.f32 %v1725, %v1755
          %v1765 = vadd.f32 %v1726, %v1755
          %v1766 = vadd.f32 %v1727, %v1755
          %v1767 = vadd.f32 %v1728, %v1755
          %v1768 = vadd.f32 %v1729, %v1755
          %v1769 = vadd.f32 %v1730, %v1755
          %v1770 = vadd.f32 %v1731, %v1755
          %v1771 = vadd.f32 %v1732, %v1755
          %v1772 = vadd.f32 %v1733, %v1755
          %v1773 = vadd.f32 %v1734, %v1755
          %v1774 = vadd.f32 %v1735, %v1755
          %v1775 = vadd.f32 %v1736, %v1755
          %v1776 = vadd.f32 %v1737, %v1755
          %v1777 = vadd.f32 %v1738, %v1755
          %v1778 = vadd.f32 %v1739, %v1755
          %v1779 = vadd.f32 %v1740, %v1755
          %v1780 = vadd.f32 %v1741, %v1755
          %v1781 = vadd.f32 %v1742, %v1755
          %v1782 = vadd.f32 %v1743, %v1755
          %v1783 = vadd.f32 %v1744, %v1755
          %v1784 = vadd.f32 %v1745, %v1755
          %v1785 = vadd.f32 %v1746, %v1755
          %v1786 = vadd.f32 %v1747, %v1755
          %v1787 = vadd.f32 %v1748, %v1755
          %v1788 = vadd.f32 %v1749, %v1755
          %1789 = vst [vmem:[%s216] sm:$0xff] %v1757
          %1790 = vst [vmem:[%s216 + $0x8] sm:$0xff] %v1758
          %1791 = vst [vmem:[%s216 + $0x10] sm:$0xff] %v1759
          %1792 = vst [vmem:[%s216 + $0x18] sm:$0xff] %v1760
          %1793 = vst [vmem:[%s216 + $0x20] sm:$0xff] %v1761
          %1794 = vst [vmem:[%s216 + $0x28] sm:$0xff] %v1762
          %1795 = vst [vmem:[%s216 + $0x30] sm:$0xff] %v1763
          %1796 = vst [vmem:[%s216 + $0x38] sm:$0xff] %v1764
          %1797 = vst [vmem:[%s216 + $0x40] sm:$0xff] %v1765
          %1798 = vst [vmem:[%s216 + $0x48] sm:$0xff] %v1766
          %1799 = vst [vmem:[%s216 + $0x50] sm:$0xff] %v1767
          %1800 = vst [vmem:[%s216 + $0x58] sm:$0xff] %v1768
          %1801 = vst [vmem:[%s216 + $0x60] sm:$0xff] %v1769
          %1802 = vst [vmem:[%s216 + $0x68] sm:$0xff] %v1770
          %1803 = vst [vmem:[%s216 + $0x70] sm:$0xff] %v1771
          %1804 = vst [vmem:[%s216 + $0x78] sm:$0xff] %v1772
          %1805 = vst [vmem:[%s216 + $0x80] sm:$0xff] %v1773
          %1806 = vst [vmem:[%s216 + $0x88] sm:$0xff] %v1774
          %1807 = vst [vmem:[%s216 + $0x90] sm:$0xff] %v1775
          %1808 = vst [vmem:[%s216 + $0x98] sm:$0xff] %v1776
          %1809 = vst [vmem:[%s216 + $0xa0] sm:$0xff] %v1777
          %1810 = vst [vmem:[%s216 + $0xa8] sm:$0xff] %v1778
          %1811 = vst [vmem:[%s216 + $0xb0] sm:$0xff] %v1779
          %1812 = vst [vmem:[%s216 + $0xb8] sm:$0xff] %v1780
          %1813 = vst [vmem:[%s216 + $0xc0] sm:$0xff] %v1781
          %1814 = vst [vmem:[%s216 + $0xc8] sm:$0xff] %v1782
          %1815 = vst [vmem:[%s216 + $0xd0] sm:$0xff] %v1783
          %1816 = vst [vmem:[%s216 + $0xd8] sm:$0xff] %v1784
          %1817 = vst [vmem:[%s216 + $0xe0] sm:$0xff] %v1785
          %1818 = vst [vmem:[%s216 + $0xe8] sm:$0xff] %v1786
          %1819 = vst [vmem:[%s216 + $0xf0] sm:$0xff] %v1787
          %1820 = vst [vmem:[%s216 + $0xf8] sm:$0xff] %v1788
        $region44: #{gcn_forward.3} parent=35 // pred_fallthru
          _
        %s1821 = sand.u32 %s129, 1
        %s1822 = scalar_lea.sflag [#allocation4], %s1821
        %s1823 = sand.u32 %s129, 1
        %s1824 = smul.addr %s1823, 256
        %s1825 = scalar_lea.vmem [#allocation3], %s1824
        // Predicated region
        $region45: #{gcn_forward.3} parent=35 // pred_check
          %p1826 = pneg %p139
        $region46: #{gcn_forward.3} parent=35 // pred_check_branch
          %1828 = sbr.rel (%p1826) target = $region48
        $region47: #{gcn_forward.3} parent=35 // pred_region
          %s1829 = smul.u32 32, %s22
          %s1831 = ssub.s32 4096, 4096
          %1832 = vsyncadd %s1822, %s1831
          %s1833 = smul.addr %s1829, 128
          %s1834 = scalar_lea.hbm %s4, %s1833
          %s1835 = sshll.u32 %s1825, 4
          %s1836 = int_to_ptr.vmem [resolvable:$true] %s1835
          %1841 = dma.vmem_to_hbm [thread:$0]  %s1836, 4096, %s1834, %s1822, 128, 128, 8
        $region48: #{gcn_forward.3} parent=35 // pred_fallthru
          _
      $region36: #{gcn_forward.3} parent=5 // pred_fallthru
        _
      %p1842 = scmp.le.s32.totalorder 2, %s13
      // Predicated region
      $region49: #{gcn_forward.3} parent=5 // pred_check
        %p1843 = pneg %p1842
      $region50: #{gcn_forward.3} parent=5 // pred_check_branch
        %1845 = sbr.rel (%p1843) target = $region52
      $region51: #{gcn_forward.3} parent=5 // pred_region
        %s1846 = ssub.s32 %s13, 2
        // Predicated region
        $region53: #{gcn_forward.3} parent=51 // pred_check
          %p1847 = pneg %p145
        $region54: #{gcn_forward.3} parent=51 // pred_check_branch
          %1849 = sbr.rel (%p1847) target = $region56
        $region55: #{gcn_forward.3} parent=51 // pred_region
          %s1850 = sand.u32 %s130, 1
          %s1851 = scalar_lea.sflag [#allocation4], %s1850
          %s1852 = sand.u32 %s130, 1
          %s1853 = smul.addr %s1852, 256
          %s1854 = scalar_lea.vmem [#allocation3], %s1853
          %1855 = dma.done %s1851, 4096
        $region56: #{gcn_forward.3} parent=51 // pred_fallthru
          _
      $region52: #{gcn_forward.3} parent=5 // pred_fallthru
        _
    $region6: #{gcn_forward.3} parent=1 // loop_footer
      %s17 = sadd.s32 1, %s13
    $region7: #{gcn_forward.3} parent=1 // loop_footer_branch
      %12 = sbr.rel target = $region3
    $region8: #{gcn_forward.3} parent=1 // loop_exit
      _
    %1856 = vsyncpa [#allocation4], 1
    %s1857 = scalar_lea.sflag [#allocation4], 1
    %1858 = vsyncpa %s1857, 1

// kernel: gcn_forward.2
$region0: #{gcn_forward.2}
  #allocation0 [shape = 'u32[]', space=smem, size = 0x4, offset = 0x4, fixed_abs, tag = 'smem constant byte address 0x4 - core index']
  #allocation1 [shape = 'u32[144,128]{1,0:T(1,128)}', space=vmem, size = 0x12000, scoped, tag = 'internal scratch']
  #allocation2 [shape = 'f32[256,128]{1,0:T(8,128)}', space=vmem, size = 0x20000, scoped, tag = 'scratch operand']
  %s0 = inlined_call_operand.hbm [shape: bf16[512,512], index: 0, kind: input, shape index: {}]
  %s1 = inlined_call_operand.vmem [shape: bf16[512,64], index: 1, kind: input, shape index: {}]
  %s2 = inlined_call_operand.hbm [shape: bf16[64,128], index: 2, kind: input, shape index: {}]
  %s3 = inlined_call_operand.hbm [shape: f32[1,128], index: 3, kind: input, shape index: {}]
  %s4 = inlined_call_operand.vmem [shape: bf16[512,128], index: 4, kind: output, shape index: {}]
  %s5 = sld [smem:[#allocation0]]
  $region69: #{gcn_forward.2} parent=0
    _
  %s7 = ssub.s32 1, %s5
  %s8 = scalar_select 0, %s7, %s5
  $region1: #{gcn_forward.2} parent=0
    #allocation3 [shape = 'u8[524288]{0}', space=vmem, size = 0x80000, scoped, tag = 'input window, operand 0']
    #allocation4 [shape = 's32[2]{0}', space=sflag, size = 0x8, scoped, tag = 'scoped memory for gcn_forward.2']
    #allocation5 [shape = 'u8[16384]{0}', space=vmem, size = 0x4000, scoped, tag = 'input window, operand 2, single buffered']
    #allocation6 [shape = 's32[1]{0}', space=sflag, size = 0x4, scoped, tag = 'scoped memory for gcn_forward.2']
    #allocation7 [shape = 'u8[512]{0}', space=vmem, size = 0x400, scoped, tag = 'input window, operand 3, single buffered']
    %9 = vsyncpa [#allocation4], 0
    %s10 = scalar_lea.sflag [#allocation4], 1
    %11 = vsyncpa %s10, 0
    %12 = vsyncpa [#allocation6], 0
    loop: start=0, step=1, limit=4
    $region2: #{gcn_forward.2} parent=1 // loop_pre_header
      _
    $region3: #{gcn_forward.2} parent=1 // loop_header
      %s14 = sphi 0, %s18
      %p15 = scmp.ge.s32.totalorder %s14, 4
      %s21 = sphi 0, %s33
      %s22 = sphi 0, %s29
      %s23 = sphi 0, %s21
      %s24 = sphi 0, %s22
      %s25 = sphi 0, %s23
      %s26 = sphi 0, %s24
      %s38 = sphi 0, %s40
      %s41 = sphi 0, %s38
      %s42 = sphi 0, %s41
      %s58 = sphi 0, %s42
      %s62 = sphi 0, %s62
      %s64 = sphi 0, %s62
      %s65 = sphi 0, %s64
      %s79 = sphi 0, %s65
      %s83 = sphi 0, %s83
      %s85 = sphi 0, %s83
      %s86 = sphi 0, %s85
      %s100 = sphi 0, %s86
      %s104 = sphi 0, %s104
      %s106 = sphi 0, %s104
      %s107 = sphi 0, %s106
      %s121 = sphi 0, %s107
      %s127 = sphi 0, %s129
      %s130 = sphi 0, %s127
      %s131 = sphi 0, %s130
      %s147 = sphi 0, %s131
    $region4: #{gcn_forward.2} parent=1 // loop_header_branch
      %17 = sbr.rel (%p15) target = $region8
    $region5: #{gcn_forward.2} parent=1 // loop_body
      %s19 = ssub.s32 %s14, 1
      %s20 = ssub.s32 %s14, 2
      %s27 = sadd.s32 1, %s22
      %p28 = scmp.ge.s32.totalorder %s27, 1
      %s29 = scalar_select %p28, 0, %s27
      %s30 = sadd.s32 1, %s21
      %s31 = scalar_select %p28, %s30, %s21
      %p32 = scmp.ge.s32.totalorder %s31, 2
      %s33 = scalar_select %p32, 0, %s31
      %s34 = ssub.s32 %s21, %s33
      %s35 = ssub.s32 %s22, %s29
      %s36 = sor.u32 %s34, %s35
      %p37 = scmp.eq.s32.totalorder %s36, 0
      %s39 = sadd.s32 %s38, 1
      %s40 = scalar_select %p37, %s38, %s39
      %p43 = pneg %p37
      %p44 = scmp.eq.s32.totalorder %s14, 1
      %p45 = por %p43, %p44
      %p46 = scmp.ne.s32.totalorder %s38, %s41
      %p47 = scmp.eq.s32.totalorder %s14, 0
      %p48 = por %p46, %p47
      %p49 = scmp.ne.s32.totalorder %s38, %s41
      %p50 = scmp.eq.s32.totalorder %s19, 1
      %p51 = por %p49, %p50
      %p52 = scmp.ne.s32.totalorder %s41, %s42
      %p53 = scmp.eq.s32.totalorder %s19, 0
      %p54 = por %p52, %p53
      %p55 = scmp.ne.s32.totalorder %s41, %s42
      %p56 = scmp.eq.s32.totalorder %s20, 1
      %p57 = por %p55, %p56
      %p59 = scmp.ne.s32.totalorder %s42, %s58
      %p60 = scmp.eq.s32.totalorder %s20, 0
      %p61 = por %p59, %p60
      %s63 = sadd.s32 %s62, 1
      %p66 = scmp.eq.s32.totalorder %s14, 1
      %p67 = scmp.ne.s32.totalorder %s62, %s64
      %p68 = scmp.eq.s32.totalorder %s14, 0
      %p69 = por %p67, %p68
      %p70 = scmp.ne.s32.totalorder %s62, %s64
      %p71 = scmp.eq.s32.totalorder %s19, 1
      %p72 = por %p70, %p71
      %p73 = scmp.ne.s32.totalorder %s64, %s65
      %p74 = scmp.eq.s32.totalorder %s19, 0
      %p75 = por %p73, %p74
      %p76 = scmp.ne.s32.totalorder %s64, %s65
      %p77 = scmp.eq.s32.totalorder %s20, 1
      %p78 = por %p76, %p77
      %p80 = scmp.ne.s32.totalorder %s65, %s79
      %p81 = scmp.eq.s32.totalorder %s20, 0
      %p82 = por %p80, %p81
      %s84 = sadd.s32 %s83, 1
      %p87 = scmp.eq.s32.totalorder %s14, 1
      %p88 = scmp.ne.s32.totalorder %s83, %s85
      %p89 = scmp.eq.s32.totalorder %s14, 0
      %p90 = por %p88, %p89
      %p91 = scmp.ne.s32.totalorder %s83, %s85
      %p92 = scmp.eq.s32.totalorder %s19, 1
      %p93 = por %p91, %p92
      %p94 = scmp.ne.s32.totalorder %s85, %s86
      %p95 = scmp.eq.s32.totalorder %s19, 0
      %p96 = por %p94, %p95
      %p97 = scmp.ne.s32.totalorder %s85, %s86
      %p98 = scmp.eq.s32.totalorder %s20, 1
      %p99 = por %p97, %p98
      %p101 = scmp.ne.s32.totalorder %s86, %s100
      %p102 = scmp.eq.s32.totalorder %s20, 0
      %p103 = por %p101, %p102
      %s105 = sadd.s32 %s104, 1
      %p108 = scmp.eq.s32.totalorder %s14, 1
      %p109 = scmp.ne.s32.totalorder %s104, %s106
      %p110 = scmp.eq.s32.totalorder %s14, 0
      %p111 = por %p109, %p110
      %p112 = scmp.ne.s32.totalorder %s104, %s106
      %p113 = scmp.eq.s32.totalorder %s19, 1
      %p114 = por %p112, %p113
      %p115 = scmp.ne.s32.totalorder %s106, %s107
      %p116 = scmp.eq.s32.totalorder %s19, 0
      %p117 = por %p115, %p116
      %p118 = scmp.ne.s32.totalorder %s106, %s107
      %p119 = scmp.eq.s32.totalorder %s20, 1
      %p120 = por %p118, %p119
      %p122 = scmp.ne.s32.totalorder %s107, %s121
      %p123 = scmp.eq.s32.totalorder %s20, 0
      %p124 = por %p122, %p123
      %s125 = ssub.s32 %s21, %s33
      %p126 = scmp.eq.s32.totalorder %s125, 0
      %s128 = sadd.s32 %s127, 1
      %s129 = scalar_select %p126, %s127, %s128
      %p132 = pneg %p126
      %p133 = scmp.eq.s32.totalorder %s14, 1
      %p134 = por %p132, %p133
      %p135 = scmp.ne.s32.totalorder %s127, %s130
      %p136 = scmp.eq.s32.totalorder %s14, 0
      %p137 = por %p135, %p136
      %p138 = scmp.ne.s32.totalorder %s127, %s130
      %p139 = scmp.eq.s32.totalorder %s19, 1
      %p140 = por %p138, %p139
      %p141 = scmp.ne.s32.totalorder %s130, %s131
      %p142 = scmp.eq.s32.totalorder %s19, 0
      %p143 = por %p141, %p142
      %p144 = scmp.ne.s32.totalorder %s130, %s131
      %p145 = scmp.eq.s32.totalorder %s20, 1
      %p146 = por %p144, %p145
      %p148 = scmp.ne.s32.totalorder %s131, %s147
      %p149 = scmp.eq.s32.totalorder %s20, 0
      %p150 = por %p148, %p149
      %p151 = scmp.le.s32.totalorder 1, %s14
      %p152 = scmp.lt.s32.totalorder %s14, 3
      %p153 = pnand %p151, %p152
      %p154 = pneg %p153
      // Predicated region
      $region9: #{gcn_forward.2} parent=5 // pred_check
        _
      $region10: #{gcn_forward.2} parent=5 // pred_check_branch
        %156 = sbr.rel (%p153) target = $region12
      $region11: #{gcn_forward.2} parent=5 // pred_region
        %s157 = ssub.s32 %s14, 1
        // Predicated region
        $region13: #{gcn_forward.2} parent=11 // pred_check
          %p158 = pneg %p75
        $region14: #{gcn_forward.2} parent=11 // pred_check_branch
          %160 = sbr.rel (%p158) target = $region16
        $region15: #{gcn_forward.2} parent=11 // pred_region
          _
        $region16: #{gcn_forward.2} parent=11 // pred_fallthru
          _
        // Predicated region
        $region17: #{gcn_forward.2} parent=11 // pred_check
          %p161 = pneg %p96
        $region18: #{gcn_forward.2} parent=11 // pred_check_branch
          %163 = sbr.rel (%p161) target = $region20
        $region19: #{gcn_forward.2} parent=11 // pred_region
          %s165 = ssub.s32 512, 512
          %166 = vsyncadd [#allocation6], %s165
          %s167 = sshll.u32 [#allocation5], 4
          %s168 = int_to_ptr.vmem [resolvable:$true] %s167
          %173 = dma.hbm_to_vmem [thread:$0]  %s2, 512, %s168, [#allocation6], 64, 64, 4
        $region20: #{gcn_forward.2} parent=11 // pred_fallthru
          _
        // Predicated region
        $region21: #{gcn_forward.2} parent=11 // pred_check
          %p174 = pneg %p117
        $region22: #{gcn_forward.2} parent=11 // pred_check_branch
          %176 = sbr.rel (%p174) target = $region24
        $region23: #{gcn_forward.2} parent=11 // pred_region
          %s178 = ssub.s32 16, 16
          %179 = vsyncadd [#allocation6], %s178
          %s181 = sshll.u32 [#allocation7], 4
          %s182 = int_to_ptr.vmem [resolvable:$true] %s181
          %184 = dma.hbm_to_vmem [thread:$0]  %s3, 16, %s182, [#allocation6]
        $region24: #{gcn_forward.2} parent=11 // pred_fallthru
          _
      $region12: #{gcn_forward.2} parent=5 // pred_fallthru
        _
      %p185 = scmp.lt.s32.totalorder %s14, 2
      // Predicated region
      $region25: #{gcn_forward.2} parent=5 // pred_check
        %p186 = pneg %p185
      $region26: #{gcn_forward.2} parent=5 // pred_check_branch
        %188 = sbr.rel (%p186) target = $region28
      $region27: #{gcn_forward.2} parent=5 // pred_region
        // Predicated region
        $region29: #{gcn_forward.2} parent=27 // pred_check
          %p189 = pneg %p48
        $region30: #{gcn_forward.2} parent=27 // pred_check_branch
          %191 = sbr.rel (%p189) target = $region32
        $region31: #{gcn_forward.2} parent=27 // pred_region
          %s192 = sand.u32 %s38, 1
          %s193 = scalar_lea.sflag [#allocation4], %s192
          %s194 = sand.u32 %s38, 1
          %s195 = smul.addr %s194, 512
          %s196 = scalar_lea.vmem [#allocation3], %s195
          %s197 = smul.u32 32, %s21
          %s198 = smul.u32 4, %s22
          %s200 = ssub.s32 8192, 8192
          %201 = vsyncadd %s193, %s200
          %s202 = smul.addr %s197, 4
          %s203 = sadd.s32 %s198, %s202
          %s204 = smul.addr %s203, 64
          %s205 = scalar_lea.hbm %s0, %s204
          %s206 = sshll.u32 %s196, 4
          %s207 = int_to_ptr.vmem [resolvable:$true] %s206
          %212 = dma.hbm_to_vmem [thread:$0]  %s205, 8192, %s207, %s193, 256, 256, 16
        $region32: #{gcn_forward.2} parent=27 // pred_fallthru
          _
      $region28: #{gcn_forward.2} parent=5 // pred_fallthru
        _
      %p213 = scmp.le.s32.totalorder 1, %s14
      %p214 = scmp.lt.s32.totalorder %s14, 3
      %p215 = pnand %p213, %p214
      %p216 = pneg %p215
      // Predicated region
      $region33: #{gcn_forward.2} parent=5 // pred_check
        _
      $region34: #{gcn_forward.2} parent=5 // pred_check_branch
        %218 = sbr.rel (%p215) target = $region36
      $region35: #{gcn_forward.2} parent=5 // pred_region
        %s219 = ssub.s32 %s14, 1
        %s220 = sand.u32 %s41, 1
        %s221 = scalar_lea.sflag [#allocation4], %s220
        %s222 = sand.u32 %s41, 1
        %s223 = smul.addr %s222, 512
        %s224 = scalar_lea.vmem [#allocation3], %s223
        // Predicated region
        $region37: #{gcn_forward.2} parent=35 // pred_check
          %p225 = pneg %p54
        $region38: #{gcn_forward.2} parent=35 // pred_check_branch
          %227 = sbr.rel (%p225) target = $region40
        $region39: #{gcn_forward.2} parent=35 // pred_region
          %228 = dma.done %s221, 8192
        $region40: #{gcn_forward.2} parent=35 // pred_fallthru
          _
        // Predicated region
        $region41: #{gcn_forward.2} parent=35 // pred_check
          %p229 = pneg %p96
        $region42: #{gcn_forward.2} parent=35 // pred_check_branch
          %231 = sbr.rel (%p229) target = $region44
        $region43: #{gcn_forward.2} parent=35 // pred_region
          %232 = dma.done [#allocation6], 512
        $region44: #{gcn_forward.2} parent=35 // pred_fallthru
          _
        // Predicated region
        $region45: #{gcn_forward.2} parent=35 // pred_check
          %p233 = pneg %p117
        $region46: #{gcn_forward.2} parent=35 // pred_check_branch
          %235 = sbr.rel (%p233) target = $region48
        $region47: #{gcn_forward.2} parent=35 // pred_region
          %236 = dma.done [#allocation6], 16
        $region48: #{gcn_forward.2} parent=35 // pred_fallthru
          _
        %s237 = sand.u32 %s41, 1
        %s238 = scalar_lea.sflag [#allocation4], %s237
        %s239 = sand.u32 %s41, 1
        %s240 = smul.addr %s239, 512
        %s241 = scalar_lea.vmem [#allocation3], %s240
        %p242 = pneg %p54
        %p243 = pneg %p51
        %p244 = pneg %p75
        %p245 = pneg %p72
        %p246 = pneg %p96
        %p247 = pneg %p93
        %p248 = pneg %p117
        %p249 = pneg %p114
        %p250 = pneg %p143
        %p251 = pneg %p140
        %s252 = smul.u32 32, %s23
        %p253 = scmp.lt.s32.totalorder %s252, 63
        %s254 = scalar_select %p253, %s252, 63
        %s255 = smul.addr %s254, 4
        %s256 = scalar_lea.vmem %s4, %s255
        %s257 = smul.u32 32, %s23
        %s258 = smul.u32 4, %s24
        %s259 = smul.u32 32, %s23
        %p260 = scmp.lt.s32.totalorder %s259, 63
        %s261 = scalar_select %p260, %s259, 63
        %s262 = smul.addr %s261, 4
        %s263 = scalar_lea.vmem %s4, %s262
        %s264 = smul.u32 32, %s23
        %p266 = scmp.eq.s32.totalorder %s24, 0
        // Predicated region
        $region49: #{gcn_forward.2} parent=35 // pred_check
          %p267 = pneg %p266
        $region50: #{gcn_forward.2} parent=35 // pred_check_branch
          %269 = sbr.rel (%p267) target = $region52
        $region51: #{gcn_forward.2} parent=35 // pred_region
          %270 = vst [vmem:[#allocation2] sm:$0xff] 0.0
          %271 = vst [vmem:[#allocation2 + $0x8] sm:$0xff] 0.0
          %272 = vst [vmem:[#allocation2 + $0x10] sm:$0xff] 0.0
          %273 = vst [vmem:[#allocation2 + $0x18] sm:$0xff] 0.0
          %274 = vst [vmem:[#allocation2 + $0x20] sm:$0xff] 0.0
          %275 = vst [vmem:[#allocation2 + $0x28] sm:$0xff] 0.0
          %276 = vst [vmem:[#allocation2 + $0x30] sm:$0xff] 0.0
          %277 = vst [vmem:[#allocation2 + $0x38] sm:$0xff] 0.0
          %278 = vst [vmem:[#allocation2 + $0x40] sm:$0xff] 0.0
          %279 = vst [vmem:[#allocation2 + $0x48] sm:$0xff] 0.0
          %280 = vst [vmem:[#allocation2 + $0x50] sm:$0xff] 0.0
          %281 = vst [vmem:[#allocation2 + $0x58] sm:$0xff] 0.0
          %282 = vst [vmem:[#allocation2 + $0x60] sm:$0xff] 0.0
          %283 = vst [vmem:[#allocation2 + $0x68] sm:$0xff] 0.0
          %284 = vst [vmem:[#allocation2 + $0x70] sm:$0xff] 0.0
          %285 = vst [vmem:[#allocation2 + $0x78] sm:$0xff] 0.0
          %286 = vst [vmem:[#allocation2 + $0x80] sm:$0xff] 0.0
          %287 = vst [vmem:[#allocation2 + $0x88] sm:$0xff] 0.0
          %288 = vst [vmem:[#allocation2 + $0x90] sm:$0xff] 0.0
          %289 = vst [vmem:[#allocation2 + $0x98] sm:$0xff] 0.0
          %290 = vst [vmem:[#allocation2 + $0xa0] sm:$0xff] 0.0
          %291 = vst [vmem:[#allocation2 + $0xa8] sm:$0xff] 0.0
          %292 = vst [vmem:[#allocation2 + $0xb0] sm:$0xff] 0.0
          %293 = vst [vmem:[#allocation2 + $0xb8] sm:$0xff] 0.0
          %294 = vst [vmem:[#allocation2 + $0xc0] sm:$0xff] 0.0
          %295 = vst [vmem:[#allocation2 + $0xc8] sm:$0xff] 0.0
          %296 = vst [vmem:[#allocation2 + $0xd0] sm:$0xff] 0.0
          %297 = vst [vmem:[#allocation2 + $0xd8] sm:$0xff] 0.0
          %298 = vst [vmem:[#allocation2 + $0xe0] sm:$0xff] 0.0
          %299 = vst [vmem:[#allocation2 + $0xe8] sm:$0xff] 0.0
          %300 = vst [vmem:[#allocation2 + $0xf0] sm:$0xff] 0.0
          %301 = vst [vmem:[#allocation2 + $0xf8] sm:$0xff] 0.0
        $region52: #{gcn_forward.2} parent=35 // pred_fallthru
          _
        %s302 = smul.u32 %s24, 512
        %s303 = sshra.s32 %s302, 3
        %s304 = sand.u32 %s302, 7
        %s305 = smul.addr %s303, 4
        %s306 = scalar_lea.vmem %s1, %s305
        %v307 = vld [vmem:[%s306] sm:$0xf]
        %v308 = vld [vmem:[%s306 + $0x4] sm:$0xf]
        %v309 = vld [vmem:[%s306 + $0x8] sm:$0xf]
        %v310 = vld [vmem:[%s306 + $0xc] sm:$0xf]
        %v311 = vld [vmem:[%s306 + $0x10] sm:$0xf]
        %v312 = vld [vmem:[%s306 + $0x14] sm:$0xf]
        %v313 = vld [vmem:[%s306 + $0x18] sm:$0xf]
        %v314 = vld [vmem:[%s306 + $0x1c] sm:$0xf]
        %v315 = vld [vmem:[%s306 + $0x20] sm:$0xf]
        %v316 = vld [vmem:[%s306 + $0x24] sm:$0xf]
        %v317 = vld [vmem:[%s306 + $0x28] sm:$0xf]
        %v318 = vld [vmem:[%s306 + $0x2c] sm:$0xf]
        %v319 = vld [vmem:[%s306 + $0x30] sm:$0xf]
        %v320 = vld [vmem:[%s306 + $0x34] sm:$0xf]
        %v321 = vld [vmem:[%s306 + $0x38] sm:$0xf]
        %v322 = vld [vmem:[%s306 + $0x3c] sm:$0xf]
        %v323 = vld [vmem:[%s306 + $0x40] sm:$0xf]
        %v324 = vld [vmem:[%s306 + $0x44] sm:$0xf]
        %v325 = vld [vmem:[%s306 + $0x48] sm:$0xf]
        %v326 = vld [vmem:[%s306 + $0x4c] sm:$0xf]
        %v327 = vld [vmem:[%s306 + $0x50] sm:$0xf]
        %v328 = vld [vmem:[%s306 + $0x54] sm:$0xf]
        %v329 = vld [vmem:[%s306 + $0x58] sm:$0xf]
        %v330 = vld [vmem:[%s306 + $0x5c] sm:$0xf]
        %v331 = vld [vmem:[%s306 + $0x60] sm:$0xf]
        %v332 = vld [vmem:[%s306 + $0x64] sm:$0xf]
        %v333 = vld [vmem:[%s306 + $0x68] sm:$0xf]
        %v334 = vld [vmem:[%s306 + $0x6c] sm:$0xf]
        %v335 = vld [vmem:[%s306 + $0x70] sm:$0xf]
        %v336 = vld [vmem:[%s306 + $0x74] sm:$0xf]
        %v337 = vld [vmem:[%s306 + $0x78] sm:$0xf]
        %v338 = vld [vmem:[%s306 + $0x7c] sm:$0xf]
        %v339 = vld [vmem:[%s306 + $0x80] sm:$0xf]
        %v340 = vld [vmem:[%s306 + $0x84] sm:$0xf]
        %v341 = vld [vmem:[%s306 + $0x88] sm:$0xf]
        %v342 = vld [vmem:[%s306 + $0x8c] sm:$0xf]
        %v343 = vld [vmem:[%s306 + $0x90] sm:$0xf]
        %v344 = vld [vmem:[%s306 + $0x94] sm:$0xf]
        %v345 = vld [vmem:[%s306 + $0x98] sm:$0xf]
        %v346 = vld [vmem:[%s306 + $0x9c] sm:$0xf]
        %v347 = vld [vmem:[%s306 + $0xa0] sm:$0xf]
        %v348 = vld [vmem:[%s306 + $0xa4] sm:$0xf]
        %v349 = vld [vmem:[%s306 + $0xa8] sm:$0xf]
        %v350 = vld [vmem:[%s306 + $0xac] sm:$0xf]
        %v351 = vld [vmem:[%s306 + $0xb0] sm:$0xf]
        %v352 = vld [vmem:[%s306 + $0xb4] sm:$0xf]
        %v353 = vld [vmem:[%s306 + $0xb8] sm:$0xf]
        %v354 = vld [vmem:[%s306 + $0xbc] sm:$0xf]
        %v355 = vld [vmem:[%s306 + $0xc0] sm:$0xf]
        %v356 = vld [vmem:[%s306 + $0xc4] sm:$0xf]
        %v357 = vld [vmem:[%s306 + $0xc8] sm:$0xf]
        %v358 = vld [vmem:[%s306 + $0xcc] sm:$0xf]
        %v359 = vld [vmem:[%s306 + $0xd0] sm:$0xf]
        %v360 = vld [vmem:[%s306 + $0xd4] sm:$0xf]
        %v361 = vld [vmem:[%s306 + $0xd8] sm:$0xf]
        %v362 = vld [vmem:[%s306 + $0xdc] sm:$0xf]
        %v363 = vld [vmem:[%s306 + $0xe0] sm:$0xf]
        %v364 = vld [vmem:[%s306 + $0xe4] sm:$0xf]
        %v365 = vld [vmem:[%s306 + $0xe8] sm:$0xf]
        %v366 = vld [vmem:[%s306 + $0xec] sm:$0xf]
        %v367 = vld [vmem:[%s306 + $0xf0] sm:$0xf]
        %v368 = vld [vmem:[%s306 + $0xf4] sm:$0xf]
        %v369 = vld [vmem:[%s306 + $0xf8] sm:$0xf]
        %v370 = vld [vmem:[%s306 + $0xfc] sm:$0xf]
        %v371 = vld [vmem:[#allocation5] sm:$0xf]
        %v372 = vld [vmem:[#allocation5 + $0x4] sm:$0xf]
        %v373 = vld [vmem:[#allocation5 + $0x8] sm:$0xf]
        %v374 = vld [vmem:[#allocation5 + $0xc] sm:$0xf]
        %v375 = vld [vmem:[#allocation5 + $0x10] sm:$0xf]
        %v376 = vld [vmem:[#allocation5 + $0x14] sm:$0xf]
        %v377 = vld [vmem:[#allocation5 + $0x18] sm:$0xf]
        %v378 = vld [vmem:[#allocation5 + $0x1c] sm:$0xf]
        %v443 = vunpack.c.l.b16 %v307
        %v444 = vunpack.c.l.b16 %v308
        %v445 = vunpack.c.l.b16 %v309
        %v446 = vunpack.c.l.b16 %v310
        %v447 = vunpack.c.l.b16 %v311
        %v448 = vunpack.c.l.b16 %v312
        %v449 = vunpack.c.l.b16 %v313
        %v450 = vunpack.c.l.b16 %v314
        %v451 = vunpack.c.l.b16 %v315
        %v452 = vunpack.c.l.b16 %v316
        %v453 = vunpack.c.l.b16 %v317
        %v454 = vunpack.c.l.b16 %v318
        %v455 = vunpack.c.l.b16 %v319
        %v456 = vunpack.c.l.b16 %v320
        %v457 = vunpack.c.l.b16 %v321
        %v458 = vunpack.c.l.b16 %v322
        %v459 = vunpack.c.l.b16 %v323
        %v460 = vunpack.c.l.b16 %v324
        %v461 = vunpack.c.l.b16 %v325
        %v462 = vunpack.c.l.b16 %v326
        %v463 = vunpack.c.l.b16 %v327
        %v464 = vunpack.c.l.b16 %v328
        %v465 = vunpack.c.l.b16 %v329
        %v466 = vunpack.c.l.b16 %v330
        %v467 = vunpack.c.l.b16 %v331
        %v468 = vunpack.c.l.b16 %v332
        %v469 = vunpack.c.l.b16 %v333
        %v470 = vunpack.c.l.b16 %v334
        %v471 = vunpack.c.l.b16 %v335
        %v472 = vunpack.c.l.b16 %v336
        %v473 = vunpack.c.l.b16 %v337
        %v474 = vunpack.c.l.b16 %v338
        %v475 = vunpack.c.l.b16 %v339
        %v476 = vunpack.c.l.b16 %v340
        %v477 = vunpack.c.l.b16 %v341
        %v478 = vunpack.c.l.b16 %v342
        %v479 = vunpack.c.l.b16 %v343
        %v480 = vunpack.c.l.b16 %v344
        %v481 = vunpack.c.l.b16 %v345
        %v482 = vunpack.c.l.b16 %v346
        %v483 = vunpack.c.l.b16 %v347
        %v484 = vunpack.c.l.b16 %v348
        %v485 = vunpack.c.l.b16 %v349
        %v486 = vunpack.c.l.b16 %v350
        %v487 = vunpack.c.l.b16 %v351
        %v488 = vunpack.c.l.b16 %v352
        %v489 = vunpack.c.l.b16 %v353
        %v490 = vunpack.c.l.b16 %v354
        %v491 = vunpack.c.l.b16 %v355
        %v492 = vunpack.c.l.b16 %v356
        %v493 = vunpack.c.l.b16 %v357
        %v494 = vunpack.c.l.b16 %v358
        %v495 = vunpack.c.l.b16 %v359
        %v496 = vunpack.c.l.b16 %v360
        %v497 = vunpack.c.l.b16 %v361
        %v498 = vunpack.c.l.b16 %v362
        %v499 = vunpack.c.l.b16 %v363
        %v500 = vunpack.c.l.b16 %v364
        %v501 = vunpack.c.l.b16 %v365
        %v502 = vunpack.c.l.b16 %v366
        %v503 = vunpack.c.l.b16 %v367
        %v504 = vunpack.c.l.b16 %v368
        %v505 = vunpack.c.l.b16 %v369
        %v506 = vunpack.c.l.b16 %v370
        %v507 = vpack.c.b16 %v444, %v443
        %v508 = vpack.c.b16 %v446, %v445
        %v509 = vpack.c.b16 %v448, %v447
        %v510 = vpack.c.b16 %v450, %v449
        %v511 = vpack.c.b16 %v452, %v451
        %v512 = vpack.c.b16 %v454, %v453
        %v513 = vpack.c.b16 %v456, %v455
        %v514 = vpack.c.b16 %v458, %v457
        %v515 = vpack.c.b16 %v460, %v459
        %v516 = vpack.c.b16 %v462, %v461
        %v517 = vpack.c.b16 %v464, %v463
        %v518 = vpack.c.b16 %v466, %v465
        %v519 = vpack.c.b16 %v468, %v467
        %v520 = vpack.c.b16 %v470, %v469
        %v521 = vpack.c.b16 %v472, %v471
        %v522 = vpack.c.b16 %v474, %v473
        %v523 = vpack.c.b16 %v476, %v475
        %v524 = vpack.c.b16 %v478, %v477
        %v525 = vpack.c.b16 %v480, %v479
        %v526 = vpack.c.b16 %v482, %v481
        %v527 = vpack.c.b16 %v484, %v483
        %v528 = vpack.c.b16 %v486, %v485
        %v529 = vpack.c.b16 %v488, %v487
        %v530 = vpack.c.b16 %v490, %v489
        %v531 = vpack.c.b16 %v492, %v491
        %v532 = vpack.c.b16 %v494, %v493
        %v533 = vpack.c.b16 %v496, %v495
        %v534 = vpack.c.b16 %v498, %v497
        %v535 = vpack.c.b16 %v500, %v499
        %v536 = vpack.c.b16 %v502, %v501
        %v537 = vpack.c.b16 %v504, %v503
        %v538 = vpack.c.b16 %v506, %v505
        %v547 = vunpack.c.l.b16 %v371
        %v548 = vunpack.c.l.b16 %v372
        %v549 = vunpack.c.l.b16 %v373
        %v550 = vunpack.c.l.b16 %v374
        %v551 = vunpack.c.l.b16 %v375
        %v552 = vunpack.c.l.b16 %v376
        %v553 = vunpack.c.l.b16 %v377
        %v554 = vunpack.c.l.b16 %v378
        %v555 = vpack.c.b16 %v548, %v547
        %v556 = vpack.c.b16 %v550, %v549
        %v557 = vpack.c.b16 %v552, %v551
        %v558 = vpack.c.b16 %v554, %v553
        %vm563 = vcmask 523264
        %v565 = vsel %vm563, %v507, 0
        %v568 = vsel %vm563, %v508, 0
        %v571 = vsel %vm563, %v509, 0
        %v574 = vsel %vm563, %v510, 0
        %v577 = vsel %vm563, %v511, 0
        %v580 = vsel %vm563, %v512, 0
        %v583 = vsel %vm563, %v513, 0
        %v586 = vsel %vm563, %v514, 0
        %v589 = vsel %vm563, %v515, 0
        %v592 = vsel %vm563, %v516, 0
        %v595 = vsel %vm563, %v517, 0
        %v598 = vsel %vm563, %v518, 0
        %v601 = vsel %vm563, %v519, 0
        %v604 = vsel %vm563, %v520, 0
        %v607 = vsel %vm563, %v521, 0
        %v610 = vsel %vm563, %v522, 0
        %v613 = vsel %vm563, %v523, 0
        %v616 = vsel %vm563, %v524, 0
        %v619 = vsel %vm563, %v525, 0
        %v622 = vsel %vm563, %v526, 0
        %v625 = vsel %vm563, %v527, 0
        %v628 = vsel %vm563, %v528, 0
        %v631 = vsel %vm563, %v529, 0
        %v634 = vsel %vm563, %v530, 0
        %v637 = vsel %vm563, %v531, 0
        %v640 = vsel %vm563, %v532, 0
        %v643 = vsel %vm563, %v533, 0
        %v646 = vsel %vm563, %v534, 0
        %v649 = vsel %vm563, %v535, 0
        %v652 = vsel %vm563, %v536, 0
        %v655 = vsel %vm563, %v537, 0
        %v658 = vsel %vm563, %v538, 0
        %660 = vmatprep.subr.bf16.mxu0 0
        %661 = vmatpush1.bf16.msra.mxu0 %v555
        %662 = vmatprep.subr.bf16.mxu0 0
        %663 = vmatpush1.bf16.msra.mxu0 %v556
        %664 = vmatprep.subr.bf16.mxu0 0
        %665 = vmatpush1.bf16.msra.mxu0 %v557
        %666 = vmatprep.subr.bf16.mxu0 0
        %667 = vmatpush1.bf16.msra.mxu0 %v558
        %668 = vmatprep.subr.bf16.mxu0 0
        %669 = vmatpush1.bf16.msra.mxu0 0
        %670 = vmatprep.subr.bf16.mxu0 0
        %671 = vmatpush1.bf16.msra.mxu0 0
        %672 = vmatprep.subr.bf16.mxu0 0
        %673 = vmatpush1.bf16.msra.mxu0 0
        %674 = vmatprep.subr.bf16.mxu0 0
        %675 = vmatpush1.bf16.msra.mxu0 0
        %676 = vmatprep.subr.bf16.mxu0 0
        %677 = vmatpush1.bf16.msra.mxu0 0
        %678 = vmatprep.subr.bf16.mxu0 0
        %679 = vmatpush1.bf16.msra.mxu0 0
        %680 = vmatprep.subr.bf16.mxu0 0
        %681 = vmatpush1.bf16.msra.mxu0 0
        %682 = vmatprep.subr.bf16.mxu0 0
        %683 = vmatpush1.bf16.msra.mxu0 0
        %684 = vmatprep.subr.bf16.mxu0 0
        %685 = vmatpush1.bf16.msra.mxu0 0
        %686 = vmatprep.subr.bf16.mxu0 0
        %687 = vmatpush1.bf16.msra.mxu0 0
        %688 = vmatprep.subr.bf16.mxu0 0
        %689 = vmatpush1.bf16.msra.mxu0 0
        %690 = vmatprep.subr.bf16.mxu0 0
        %691 = vmatpush1.bf16.msra.mxu0 0
        %692 = vmatprep.mubr.bf16.mxu0 0
        %693 = vmatmul.mubr.bf16.gmra.mrb[0].mxu0 %v565
        %v694 = vpop.f32.mrb[0].mxu0
        %v695 = vadd.f32 0.0, %v694
        %v696 = vpop.f32.mrb[0].mxu0
        %v697 = vpop.f32.mrb[0].mxu0
        %v698 = vadd.f32 0.0, %v697
        %v699 = vpop.f32.mrb[0].mxu0
        %700 = vmatprep.mubr.bf16.mxu0 0
        %701 = vmatmul.mubr.bf16.gmra.mrb[0].mxu0 %v568
        %v702 = vpop.f32.mrb[0].mxu0
        %v703 = vadd.f32 0.0, %v702
        %v704 = vpop.f32.mrb[0].mxu0
        %v705 = vpop.f32.mrb[0].mxu0
        %v706 = vadd.f32 0.0, %v705
        %v707 = vpop.f32.mrb[0].mxu0
        %708 = vmatprep.mubr.bf16.mxu0 0
        %709 = vmatmul.mubr.bf16.gmra.mrb[0].mxu0 %v571
        %v710 = vpop.f32.mrb[0].mxu0
        %v711 = vadd.f32 0.0, %v710
        %v712 = vpop.f32.mrb[0].mxu0
        %v713 = vpop.f32.mrb[0].mxu0
        %v714 = vadd.f32 0.0, %v713
        %v715 = vpop.f32.mrb[0].mxu0
        %716 = vmatprep.mubr.bf16.mxu0 0
        %717 = vmatmul.mubr.bf16.gmra.mrb[0].mxu0 %v574
        %v718 = vpop.f32.mrb[0].mxu0
        %v719 = vadd.f32 0.0, %v718
        %v720 = vpop.f32.mrb[0].mxu0
        %v721 = vpop.f32.mrb[0].mxu0
        %v722 = vadd.f32 0.0, %v721
        %v723 = vpop.f32.mrb[0].mxu0
        %724 = vmatprep.mubr.bf16.mxu0 0
        %725 = vmatmul.mubr.bf16.gmra.mrb[0].mxu0 %v577
        %v726 = vpop.f32.mrb[0].mxu0
        %v727 = vadd.f32 0.0, %v726
        %v728 = vpop.f32.mrb[0].mxu0
        %v729 = vpop.f32.mrb[0].mxu0
        %v730 = vadd.f32 0.0, %v729
        %v731 = vpop.f32.mrb[0].mxu0
        %732 = vmatprep.mubr.bf16.mxu0 0
        %733 = vmatmul.mubr.bf16.gmra.mrb[0].mxu0 %v580
        %v734 = vpop.f32.mrb[0].mxu0
        %v735 = vadd.f32 0.0, %v734
        %v736 = vpop.f32.mrb[0].mxu0
        %v737 = vpop.f32.mrb[0].mxu0
        %v738 = vadd.f32 0.0, %v737
        %v739 = vpop.f32.mrb[0].mxu0
        %740 = vmatprep.mubr.bf16.mxu0 0
        %741 = vmatmul.mubr.bf16.gmra.mrb[0].mxu0 %v583
        %v742 = vpop.f32.mrb[0].mxu0
        %v743 = vadd.f32 0.0, %v742
        %v744 = vpop.f32.mrb[0].mxu0
        %v745 = vpop.f32.mrb[0].mxu0
        %v746 = vadd.f32 0.0, %v745
        %v747 = vpop.f32.mrb[0].mxu0
        %748 = vmatprep.mubr.bf16.mxu0 0
        %749 = vmatmul.mubr.bf16.gmra.mrb[0].mxu0 %v586
        %v750 = vpop.f32.mrb[0].mxu0
        %v751 = vadd.f32 0.0, %v750
        %v752 = vpop.f32.mrb[0].mxu0
        %v753 = vpop.f32.mrb[0].mxu0
        %v754 = vadd.f32 0.0, %v753
        %v755 = vpop.f32.mrb[0].mxu0
        %756 = vmatprep.mubr.bf16.mxu0 0
        %757 = vmatmul.mubr.bf16.gmra.mrb[0].mxu0 %v589
        %v758 = vpop.f32.mrb[0].mxu0
        %v759 = vadd.f32 0.0, %v758
        %v760 = vpop.f32.mrb[0].mxu0
        %v761 = vpop.f32.mrb[0].mxu0
        %v762 = vadd.f32 0.0, %v761
        %v763 = vpop.f32.mrb[0].mxu0
        %764 = vmatprep.mubr.bf16.mxu0 0
        %765 = vmatmul.mubr.bf16.gmra.mrb[0].mxu0 %v592
        %v766 = vpop.f32.mrb[0].mxu0
        %v767 = vadd.f32 0.0, %v766
        %v768 = vpop.f32.mrb[0].mxu0
        %v769 = vpop.f32.mrb[0].mxu0
        %v770 = vadd.f32 0.0, %v769
        %v771 = vpop.f32.mrb[0].mxu0
        %772 = vmatprep.mubr.bf16.mxu0 0
        %773 = vmatmul.mubr.bf16.gmra.mrb[0].mxu0 %v595
        %v774 = vpop.f32.mrb[0].mxu0
        %v775 = vadd.f32 0.0, %v774
        %v776 = vpop.f32.mrb[0].mxu0
        %v777 = vpop.f32.mrb[0].mxu0
        %v778 = vadd.f32 0.0, %v777
        %v779 = vpop.f32.mrb[0].mxu0
        %780 = vmatprep.mubr.bf16.mxu0 0
        %781 = vmatmul.mubr.bf16.gmra.mrb[0].mxu0 %v598
        %v782 = vpop.f32.mrb[0].mxu0
        %v783 = vadd.f32 0.0, %v782
        %v784 = vpop.f32.mrb[0].mxu0
        %v785 = vpop.f32.mrb[0].mxu0
        %v786 = vadd.f32 0.0, %v785
        %v787 = vpop.f32.mrb[0].mxu0
        %788 = vmatprep.mubr.bf16.mxu0 0
        %789 = vmatmul.mubr.bf16.gmra.mrb[0].mxu0 %v601
        %v790 = vpop.f32.mrb[0].mxu0
        %v791 = vadd.f32 0.0, %v790
        %v792 = vpop.f32.mrb[0].mxu0
        %v793 = vpop.f32.mrb[0].mxu0
        %v794 = vadd.f32 0.0, %v793
        %v795 = vpop.f32.mrb[0].mxu0
        %796 = vmatprep.mubr.bf16.mxu0 0
        %797 = vmatmul.mubr.bf16.gmra.mrb[0].mxu0 %v604
        %v798 = vpop.f32.mrb[0].mxu0
        %v799 = vadd.f32 0.0, %v798
        %v800 = vpop.f32.mrb[0].mxu0
        %v801 = vpop.f32.mrb[0].mxu0
        %v802 = vadd.f32 0.0, %v801
        %v803 = vpop.f32.mrb[0].mxu0
        %804 = vmatprep.mubr.bf16.mxu0 0
        %805 = vmatmul.mubr.bf16.gmra.mrb[0].mxu0 %v607
        %v806 = vpop.f32.mrb[0].mxu0
        %v807 = vadd.f32 0.0, %v806
        %v808 = vpop.f32.mrb[0].mxu0
        %v809 = vpop.f32.mrb[0].mxu0
        %v810 = vadd.f32 0.0, %v809
        %v811 = vpop.f32.mrb[0].mxu0
        %812 = vmatprep.mubr.bf16.mxu0 0
        %813 = vmatmul.mubr.bf16.gmra.mrb[0].mxu0 %v610
        %v814 = vpop.f32.mrb[0].mxu0
        %v815 = vadd.f32 0.0, %v814
        %v816 = vpop.f32.mrb[0].mxu0
        %v817 = vpop.f32.mrb[0].mxu0
        %v818 = vadd.f32 0.0, %v817
        %v819 = vpop.f32.mrb[0].mxu0
        %820 = vmatprep.mubr.bf16.mxu0 0
        %821 = vmatmul.mubr.bf16.gmra.mrb[0].mxu0 %v613
        %v822 = vpop.f32.mrb[0].mxu0
        %v823 = vadd.f32 0.0, %v822
        %v824 = vpop.f32.mrb[0].mxu0
        %v825 = vpop.f32.mrb[0].mxu0
        %v826 = vadd.f32 0.0, %v825
        %v827 = vpop.f32.mrb[0].mxu0
        %828 = vmatprep.mubr.bf16.mxu0 0
        %829 = vmatmul.mubr.bf16.gmra.mrb[0].mxu0 %v616
        %v830 = vpop.f32.mrb[0].mxu0
        %v831 = vadd.f32 0.0, %v830
        %v832 = vpop.f32.mrb[0].mxu0
        %v833 = vpop.f32.mrb[0].mxu0
        %v834 = vadd.f32 0.0, %v833
        %v835 = vpop.f32.mrb[0].mxu0
        %836 = vmatprep.mubr.bf16.mxu0 0
        %837 = vmatmul.mubr.bf16.gmra.mrb[0].mxu0 %v619
        %v838 = vpop.f32.mrb[0].mxu0
        %v839 = vadd.f32 0.0, %v838
        %v840 = vpop.f32.mrb[0].mxu0
        %v841 = vpop.f32.mrb[0].mxu0
        %v842 = vadd.f32 0.0, %v841
        %v843 = vpop.f32.mrb[0].mxu0
        %844 = vmatprep.mubr.bf16.mxu0 0
        %845 = vmatmul.mubr.bf16.gmra.mrb[0].mxu0 %v622
        %v846 = vpop.f32.mrb[0].mxu0
        %v847 = vadd.f32 0.0, %v846
        %v848 = vpop.f32.mrb[0].mxu0
        %v849 = vpop.f32.mrb[0].mxu0
        %v850 = vadd.f32 0.0, %v849
        %v851 = vpop.f32.mrb[0].mxu0
        %852 = vmatprep.mubr.bf16.mxu0 0
        %853 = vmatmul.mubr.bf16.gmra.mrb[0].mxu0 %v625
        %v854 = vpop.f32.mrb[0].mxu0
        %v855 = vadd.f32 0.0, %v854
        %v856 = vpop.f32.mrb[0].mxu0
        %v857 = vpop.f32.mrb[0].mxu0
        %v858 = vadd.f32 0.0, %v857
        %v859 = vpop.f32.mrb[0].mxu0
        %860 = vmatprep.mubr.bf16.mxu0 0
        %861 = vmatmul.mubr.bf16.gmra.mrb[0].mxu0 %v628
        %v862 = vpop.f32.mrb[0].mxu0
        %v863 = vadd.f32 0.0, %v862
        %v864 = vpop.f32.mrb[0].mxu0
        %v865 = vpop.f32.mrb[0].mxu0
        %v866 = vadd.f32 0.0, %v865
        %v867 = vpop.f32.mrb[0].mxu0
        %868 = vmatprep.mubr.bf16.mxu0 0
        %869 = vmatmul.mubr.bf16.gmra.mrb[0].mxu0 %v631
        %v870 = vpop.f32.mrb[0].mxu0
        %v871 = vadd.f32 0.0, %v870
        %v872 = vpop.f32.mrb[0].mxu0
        %v873 = vpop.f32.mrb[0].mxu0
        %v874 = vadd.f32 0.0, %v873
        %v875 = vpop.f32.mrb[0].mxu0
        %876 = vmatprep.mubr.bf16.mxu0 0
        %877 = vmatmul.mubr.bf16.gmra.mrb[0].mxu0 %v634
        %v878 = vpop.f32.mrb[0].mxu0
        %v879 = vadd.f32 0.0, %v878
        %v880 = vpop.f32.mrb[0].mxu0
        %v881 = vpop.f32.mrb[0].mxu0
        %v882 = vadd.f32 0.0, %v881
        %v883 = vpop.f32.mrb[0].mxu0
        %884 = vmatprep.mubr.bf16.mxu0 0
        %885 = vmatmul.mubr.bf16.gmra.mrb[0].mxu0 %v637
        %v886 = vpop.f32.mrb[0].mxu0
        %v887 = vadd.f32 0.0, %v886
        %v888 = vpop.f32.mrb[0].mxu0
        %v889 = vpop.f32.mrb[0].mxu0
        %v890 = vadd.f32 0.0, %v889
        %v891 = vpop.f32.mrb[0].mxu0
        %892 = vmatprep.mubr.bf16.mxu0 0
        %893 = vmatmul.mubr.bf16.gmra.mrb[0].mxu0 %v640
        %v894 = vpop.f32.mrb[0].mxu0
        %v895 = vadd.f32 0.0, %v894
        %v896 = vpop.f32.mrb[0].mxu0
        %v897 = vpop.f32.mrb[0].mxu0
        %v898 = vadd.f32 0.0, %v897
        %v899 = vpop.f32.mrb[0].mxu0
        %900 = vmatprep.mubr.bf16.mxu0 0
        %901 = vmatmul.mubr.bf16.gmra.mrb[0].mxu0 %v643
        %v902 = vpop.f32.mrb[0].mxu0
        %v903 = vadd.f32 0.0, %v902
        %v904 = vpop.f32.mrb[0].mxu0
        %v905 = vpop.f32.mrb[0].mxu0
        %v906 = vadd.f32 0.0, %v905
        %v907 = vpop.f32.mrb[0].mxu0
        %908 = vmatprep.mubr.bf16.mxu0 0
        %909 = vmatmul.mubr.bf16.gmra.mrb[0].mxu0 %v646
        %v910 = vpop.f32.mrb[0].mxu0
        %v911 = vadd.f32 0.0, %v910
        %v912 = vpop.f32.mrb[0].mxu0
        %v913 = vpop.f32.mrb[0].mxu0
        %v914 = vadd.f32 0.0, %v913
        %v915 = vpop.f32.mrb[0].mxu0
        %916 = vmatprep.mubr.bf16.mxu0 0
        %917 = vmatmul.mubr.bf16.gmra.mrb[0].mxu0 %v649
        %v918 = vpop.f32.mrb[0].mxu0
        %v919 = vadd.f32 0.0, %v918
        %v920 = vpop.f32.mrb[0].mxu0
        %v921 = vpop.f32.mrb[0].mxu0
        %v922 = vadd.f32 0.0, %v921
        %v923 = vpop.f32.mrb[0].mxu0
        %924 = vmatprep.mubr.bf16.mxu0 0
        %925 = vmatmul.mubr.bf16.gmra.mrb[0].mxu0 %v652
        %v926 = vpop.f32.mrb[0].mxu0
        %v927 = vadd.f32 0.0, %v926
        %v928 = vpop.f32.mrb[0].mxu0
        %v929 = vpop.f32.mrb[0].mxu0
        %v930 = vadd.f32 0.0, %v929
        %v931 = vpop.f32.mrb[0].mxu0
        %932 = vmatprep.mubr.bf16.mxu0 0
        %933 = vmatmul.mubr.bf16.gmra.mrb[0].mxu0 %v655
        %v934 = vpop.f32.mrb[0].mxu0
        %v935 = vadd.f32 0.0, %v934
        %v936 = vpop.f32.mrb[0].mxu0
        %v937 = vpop.f32.mrb[0].mxu0
        %v938 = vadd.f32 0.0, %v937
        %v939 = vpop.f32.mrb[0].mxu0
        %940 = vmatprep.mubr.bf16.mxu0 0
        %941 = vmatmul.mubr.bf16.gmra.mrb[0].mxu0 %v658
        %v942 = vpop.f32.mrb[0].mxu0
        %v943 = vadd.f32 0.0, %v942
        %v944 = vpop.f32.mrb[0].mxu0
        %v945 = vpop.f32.mrb[0].mxu0
        %v946 = vadd.f32 0.0, %v945
        %v947 = vpop.f32.mrb[0].mxu0
        %948 = vdwg.mxu0
        %v949 = vpack.c.bf16 %v698, %v695
        %v950 = vpack.c.bf16 %v706, %v703
        %v951 = vpack.c.bf16 %v714, %v711
        %v952 = vpack.c.bf16 %v722, %v719
        %v953 = vpack.c.bf16 %v730, %v727
        %v954 = vpack.c.bf16 %v738, %v735
        %v955 = vpack.c.bf16 %v746, %v743
        %v956 = vpack.c.bf16 %v754, %v751
        %v957 = vpack.c.bf16 %v762, %v759
        %v958 = vpack.c.bf16 %v770, %v767
        %v959 = vpack.c.bf16 %v778, %v775
        %v960 = vpack.c.bf16 %v786, %v783
        %v961 = vpack.c.bf16 %v794, %v791
        %v962 = vpack.c.bf16 %v802, %v799
        %v963 = vpack.c.bf16 %v810, %v807
        %v964 = vpack.c.bf16 %v818, %v815
        %v965 = vpack.c.bf16 %v826, %v823
        %v966 = vpack.c.bf16 %v834, %v831
        %v967 = vpack.c.bf16 %v842, %v839
        %v968 = vpack.c.bf16 %v850, %v847
        %v969 = vpack.c.bf16 %v858, %v855
        %v970 = vpack.c.bf16 %v866, %v863
        %v971 = vpack.c.bf16 %v874, %v871
        %v972 = vpack.c.bf16 %v882, %v879
        %v973 = vpack.c.bf16 %v890, %v887
        %v974 = vpack.c.bf16 %v898, %v895
        %v975 = vpack.c.bf16 %v906, %v903
        %v976 = vpack.c.bf16 %v914, %v911
        %v977 = vpack.c.bf16 %v922, %v919
        %v978 = vpack.c.bf16 %v930, %v927
        %v979 = vpack.c.bf16 %v938, %v935
        %v980 = vpack.c.bf16 %v946, %v943
        %v981 = vld [vmem:[#allocation2] sm:$0xff]
        %v982 = vld [vmem:[#allocation2 + $0x8] sm:$0xff]
        %v983 = vld [vmem:[#allocation2 + $0x10] sm:$0xff]
        %v984 = vld [vmem:[#allocation2 + $0x18] sm:$0xff]
        %v985 = vld [vmem:[#allocation2 + $0x20] sm:$0xff]
        %v986 = vld [vmem:[#allocation2 + $0x28] sm:$0xff]
        %v987 = vld [vmem:[#allocation2 + $0x30] sm:$0xff]
        %v988 = vld [vmem:[#allocation2 + $0x38] sm:$0xff]
        %v989 = vld [vmem:[#allocation2 + $0x40] sm:$0xff]
        %v990 = vld [vmem:[#allocation2 + $0x48] sm:$0xff]
        %v991 = vld [vmem:[#allocation2 + $0x50] sm:$0xff]
        %v992 = vld [vmem:[#allocation2 + $0x58] sm:$0xff]
        %v993 = vld [vmem:[#allocation2 + $0x60] sm:$0xff]
        %v994 = vld [vmem:[#allocation2 + $0x68] sm:$0xff]
        %v995 = vld [vmem:[#allocation2 + $0x70] sm:$0xff]
        %v996 = vld [vmem:[#allocation2 + $0x78] sm:$0xff]
        %v997 = vld [vmem:[#allocation2 + $0x80] sm:$0xff]
        %v998 = vld [vmem:[#allocation2 + $0x88] sm:$0xff]
        %v999 = vld [vmem:[#allocation2 + $0x90] sm:$0xff]
        %v1000 = vld [vmem:[#allocation2 + $0x98] sm:$0xff]
        %v1001 = vld [vmem:[#allocation2 + $0xa0] sm:$0xff]
        %v1002 = vld [vmem:[#allocation2 + $0xa8] sm:$0xff]
        %v1003 = vld [vmem:[#allocation2 + $0xb0] sm:$0xff]
        %v1004 = vld [vmem:[#allocation2 + $0xb8] sm:$0xff]
        %v1005 = vld [vmem:[#allocation2 + $0xc0] sm:$0xff]
        %v1006 = vld [vmem:[#allocation2 + $0xc8] sm:$0xff]
        %v1007 = vld [vmem:[#allocation2 + $0xd0] sm:$0xff]
        %v1008 = vld [vmem:[#allocation2 + $0xd8] sm:$0xff]
        %v1009 = vld [vmem:[#allocation2 + $0xe0] sm:$0xff]
        %v1010 = vld [vmem:[#allocation2 + $0xe8] sm:$0xff]
        %v1011 = vld [vmem:[#allocation2 + $0xf0] sm:$0xff]
        %v1012 = vld [vmem:[#allocation2 + $0xf8] sm:$0xff]
        %v1013 = vld [vmem:[%s224] sm:$0xff]
        %v1014 = vld [vmem:[%s224 + $0x8] sm:$0xff]
        %v1015 = vld [vmem:[%s224 + $0x10] sm:$0xff]
        %v1016 = vld [vmem:[%s224 + $0x18] sm:$0xff]
        %v1017 = vld [vmem:[%s224 + $0x20] sm:$0xff]
        %v1018 = vld [vmem:[%s224 + $0x28] sm:$0xff]
        %v1019 = vld [vmem:[%s224 + $0x30] sm:$0xff]
        %v1020 = vld [vmem:[%s224 + $0x38] sm:$0xff]
        %v1021 = vld [vmem:[%s224 + $0x40] sm:$0xff]
        %v1022 = vld [vmem:[%s224 + $0x48] sm:$0xff]
        %v1023 = vld [vmem:[%s224 + $0x50] sm:$0xff]
        %v1024 = vld [vmem:[%s224 + $0x58] sm:$0xff]
        %v1025 = vld [vmem:[%s224 + $0x60] sm:$0xff]
        %v1026 = vld [vmem:[%s224 + $0x68] sm:$0xff]
        %v1027 = vld [vmem:[%s224 + $0x70] sm:$0xff]
        %v1028 = vld [vmem:[%s224 + $0x78] sm:$0xff]
        %v1029 = vld [vmem:[%s224 + $0x80] sm:$0xff]
        %v1030 = vld [vmem:[%s224 + $0x88] sm:$0xff]
        %v1031 = vld [vmem:[%s224 + $0x90] sm:$0xff]
        %v1032 = vld [vmem:[%s224 + $0x98] sm:$0xff]
        %v1033 = vld [vmem:[%s224 + $0xa0] sm:$0xff]
        %v1034 = vld [vmem:[%s224 + $0xa8] sm:$0xff]
        %v1035 = vld [vmem:[%s224 + $0xb0] sm:$0xff]
        %v1036 = vld [vmem:[%s224 + $0xb8] sm:$0xff]
        %v1037 = vld [vmem:[%s224 + $0xc0] sm:$0xff]
        %v1038 = vld [vmem:[%s224 + $0xc8] sm:$0xff]
        %v1039 = vld [vmem:[%s224 + $0xd0] sm:$0xff]
        %v1040 = vld [vmem:[%s224 + $0xd8] sm:$0xff]
        %v1041 = vld [vmem:[%s224 + $0xe0] sm:$0xff]
        %v1042 = vld [vmem:[%s224 + $0xe8] sm:$0xff]
        %v1043 = vld [vmem:[%s224 + $0xf0] sm:$0xff]
        %v1044 = vld [vmem:[%s224 + $0xf8] sm:$0xff]
        %v1045 = vld [vmem:[%s224 + $0x100] sm:$0xff]
        %v1046 = vld [vmem:[%s224 + $0x108] sm:$0xff]
        %v1047 = vld [vmem:[%s224 + $0x110] sm:$0xff]
        %v1048 = vld [vmem:[%s224 + $0x118] sm:$0xff]
        %v1049 = vld [vmem:[%s224 + $0x120] sm:$0xff]
        %v1050 = vld [vmem:[%s224 + $0x128] sm:$0xff]
        %v1051 = vld [vmem:[%s224 + $0x130] sm:$0xff]
        %v1052 = vld [vmem:[%s224 + $0x138] sm:$0xff]
        %v1053 = vld [vmem:[%s224 + $0x140] sm:$0xff]
        %v1054 = vld [vmem:[%s224 + $0x148] sm:$0xff]
        %v1055 = vld [vmem:[%s224 + $0x150] sm:$0xff]
        %v1056 = vld [vmem:[%s224 + $0x158] sm:$0xff]
        %v1057 = vld [vmem:[%s224 + $0x160] sm:$0xff]
        %v1058 = vld [vmem:[%s224 + $0x168] sm:$0xff]
        %v1059 = vld [vmem:[%s224 + $0x170] sm:$0xff]
        %v1060 = vld [vmem:[%s224 + $0x178] sm:$0xff]
        %v1061 = vld [vmem:[%s224 + $0x180] sm:$0xff]
        %v1062 = vld [vmem:[%s224 + $0x188] sm:$0xff]
        %v1063 = vld [vmem:[%s224 + $0x190] sm:$0xff]
        %v1064 = vld [vmem:[%s224 + $0x198] sm:$0xff]
        %v1065 = vld [vmem:[%s224 + $0x1a0] sm:$0xff]
        %v1066 = vld [vmem:[%s224 + $0x1a8] sm:$0xff]
        %v1067 = vld [vmem:[%s224 + $0x1b0] sm:$0xff]
        %v1068 = vld [vmem:[%s224 + $0x1b8] sm:$0xff]
        %v1069 = vld [vmem:[%s224 + $0x1c0] sm:$0xff]
        %v1070 = vld [vmem:[%s224 + $0x1c8] sm:$0xff]
        %v1071 = vld [vmem:[%s224 + $0x1d0] sm:$0xff]
        %v1072 = vld [vmem:[%s224 + $0x1d8] sm:$0xff]
        %v1073 = vld [vmem:[%s224 + $0x1e0] sm:$0xff]
        %v1074 = vld [vmem:[%s224 + $0x1e8] sm:$0xff]
        %v1075 = vld [vmem:[%s224 + $0x1f0] sm:$0xff]
        %v1076 = vld [vmem:[%s224 + $0x1f8] sm:$0xff]
        %v1141 = vunpack.c.l.b16 %v1013
        %v1142 = vunpack.c.h.b16 %v1013
        %v1143 = vunpack.c.l.b16 %v1014
        %v1144 = vunpack.c.h.b16 %v1014
        %v1145 = vunpack.c.l.b16 %v1015
        %v1146 = vunpack.c.h.b16 %v1015
        %v1147 = vunpack.c.l.b16 %v1016
        %v1148 = vunpack.c.h.b16 %v1016
        %v1149 = vunpack.c.l.b16 %v1017
        %v1150 = vunpack.c.h.b16 %v1017
        %v1151 = vunpack.c.l.b16 %v1018
        %v1152 = vunpack.c.h.b16 %v1018
        %v1153 = vunpack.c.l.b16 %v1019
        %v1154 = vunpack.c.h.b16 %v1019
        %v1155 = vunpack.c.l.b16 %v1020
        %v1156 = vunpack.c.h.b16 %v1020
        %v1157 = vunpack.c.l.b16 %v1021
        %v1158 = vunpack.c.h.b16 %v1021
        %v1159 = vunpack.c.l.b16 %v1022
        %v1160 = vunpack.c.h.b16 %v1022
        %v1161 = vunpack.c.l.b16 %v1023
        %v1162 = vunpack.c.h.b16 %v1023
        %v1163 = vunpack.c.l.b16 %v1024
        %v1164 = vunpack.c.h.b16 %v1024
        %v1165 = vunpack.c.l.b16 %v1025
        %v1166 = vunpack.c.h.b16 %v1025
        %v1167 = vunpack.c.l.b16 %v1026
        %v1168 = vunpack.c.h.b16 %v1026
        %v1169 = vunpack.c.l.b16 %v1027
        %v1170 = vunpack.c.h.b16 %v1027
        %v1171 = vunpack.c.l.b16 %v1028
        %v1172 = vunpack.c.h.b16 %v1028
        %v1173 = vunpack.c.l.b16 %v1029
        %v1174 = vunpack.c.h.b16 %v1029
        %v1175 = vunpack.c.l.b16 %v1030
        %v1176 = vunpack.c.h.b16 %v1030
        %v1177 = vunpack.c.l.b16 %v1031
        %v1178 = vunpack.c.h.b16 %v1031
        %v1179 = vunpack.c.l.b16 %v1032
        %v1180 = vunpack.c.h.b16 %v1032
        %v1181 = vunpack.c.l.b16 %v1033
        %v1182 = vunpack.c.h.b16 %v1033
        %v1183 = vunpack.c.l.b16 %v1034
        %v1184 = vunpack.c.h.b16 %v1034
        %v1185 = vunpack.c.l.b16 %v1035
        %v1186 = vunpack.c.h.b16 %v1035
        %v1187 = vunpack.c.l.b16 %v1036
        %v1188 = vunpack.c.h.b16 %v1036
        %v1189 = vunpack.c.l.b16 %v1037
        %v1190 = vunpack.c.h.b16 %v1037
        %v1191 = vunpack.c.l.b16 %v1038
        %v1192 = vunpack.c.h.b16 %v1038
        %v1193 = vunpack.c.l.b16 %v1039
        %v1194 = vunpack.c.h.b16 %v1039
        %v1195 = vunpack.c.l.b16 %v1040
        %v1196 = vunpack.c.h.b16 %v1040
        %v1197 = vunpack.c.l.b16 %v1041
        %v1198 = vunpack.c.h.b16 %v1041
        %v1199 = vunpack.c.l.b16 %v1042
        %v1200 = vunpack.c.h.b16 %v1042
        %v1201 = vunpack.c.l.b16 %v1043
        %v1202 = vunpack.c.h.b16 %v1043
        %v1203 = vunpack.c.l.b16 %v1044
        %v1204 = vunpack.c.h.b16 %v1044
        %v1205 = vunpack.c.l.b16 %v1045
        %v1206 = vunpack.c.h.b16 %v1045
        %v1207 = vunpack.c.l.b16 %v1046
        %v1208 = vunpack.c.h.b16 %v1046
        %v1209 = vunpack.c.l.b16 %v1047
        %v1210 = vunpack.c.h.b16 %v1047
        %v1211 = vunpack.c.l.b16 %v1048
        %v1212 = vunpack.c.h.b16 %v1048
        %v1213 = vunpack.c.l.b16 %v1049
        %v1214 = vunpack.c.h.b16 %v1049
        %v1215 = vunpack.c.l.b16 %v1050
        %v1216 = vunpack.c.h.b16 %v1050
        %v1217 = vunpack.c.l.b16 %v1051
        %v1218 = vunpack.c.h.b16 %v1051
        %v1219 = vunpack.c.l.b16 %v1052
        %v1220 = vunpack.c.h.b16 %v1052
        %v1221 = vunpack.c.l.b16 %v1053
        %v1222 = vunpack.c.h.b16 %v1053
        %v1223 = vunpack.c.l.b16 %v1054
        %v1224 = vunpack.c.h.b16 %v1054
        %v1225 = vunpack.c.l.b16 %v1055
        %v1226 = vunpack.c.h.b16 %v1055
        %v1227 = vunpack.c.l.b16 %v1056
        %v1228 = vunpack.c.h.b16 %v1056
        %v1229 = vunpack.c.l.b16 %v1057
        %v1230 = vunpack.c.h.b16 %v1057
        %v1231 = vunpack.c.l.b16 %v1058
        %v1232 = vunpack.c.h.b16 %v1058
        %v1233 = vunpack.c.l.b16 %v1059
        %v1234 = vunpack.c.h.b16 %v1059
        %v1235 = vunpack.c.l.b16 %v1060
        %v1236 = vunpack.c.h.b16 %v1060
        %v1237 = vunpack.c.l.b16 %v1061
        %v1238 = vunpack.c.h.b16 %v1061
        %v1239 = vunpack.c.l.b16 %v1062
        %v1240 = vunpack.c.h.b16 %v1062
        %v1241 = vunpack.c.l.b16 %v1063
        %v1242 = vunpack.c.h.b16 %v1063
        %v1243 = vunpack.c.l.b16 %v1064
        %v1244 = vunpack.c.h.b16 %v1064
        %v1245 = vunpack.c.l.b16 %v1065
        %v1246 = vunpack.c.h.b16 %v1065
        %v1247 = vunpack.c.l.b16 %v1066
        %v1248 = vunpack.c.h.b16 %v1066
        %v1249 = vunpack.c.l.b16 %v1067
        %v1250 = vunpack.c.h.b16 %v1067
        %v1251 = vunpack.c.l.b16 %v1068
        %v1252 = vunpack.c.h.b16 %v1068
        %v1253 = vunpack.c.l.b16 %v1069
        %v1254 = vunpack.c.h.b16 %v1069
        %v1255 = vunpack.c.l.b16 %v1070
        %v1256 = vunpack.c.h.b16 %v1070
        %v1257 = vunpack.c.l.b16 %v1071
        %v1258 = vunpack.c.h.b16 %v1071
        %v1259 = vunpack.c.l.b16 %v1072
        %v1260 = vunpack.c.h.b16 %v1072
        %v1261 = vunpack.c.l.b16 %v1073
        %v1262 = vunpack.c.h.b16 %v1073
        %v1263 = vunpack.c.l.b16 %v1074
        %v1264 = vunpack.c.h.b16 %v1074
        %v1265 = vunpack.c.l.b16 %v1075
        %v1266 = vunpack.c.h.b16 %v1075
        %v1267 = vunpack.c.l.b16 %v1076
        %v1268 = vunpack.c.h.b16 %v1076
        %v1269 = vpack.c.b16 %v1145, %v1141
        %v1270 = vpack.c.b16 %v1146, %v1142
        %v1271 = vpack.c.b16 %v1147, %v1143
        %v1272 = vpack.c.b16 %v1148, %v1144
        %v1273 = vpack.c.b16 %v1153, %v1149
        %v1274 = vpack.c.b16 %v1154, %v1150
        %v1275 = vpack.c.b16 %v1155, %v1151
        %v1276 = vpack.c.b16 %v1156, %v1152
        %v1277 = vpack.c.b16 %v1161, %v1157
        %v1278 = vpack.c.b16 %v1162, %v1158
        %v1279 = vpack.c.b16 %v1163, %v1159
        %v1280 = vpack.c.b16 %v1164, %v1160
        %v1281 = vpack.c.b16 %v1169, %v1165
        %v1282 = vpack.c.b16 %v1170, %v1166
        %v1283 = vpack.c.b16 %v1171, %v1167
        %v1284 = vpack.c.b16 %v1172, %v1168
        %v1285 = vpack.c.b16 %v1177, %v1173
        %v1286 = vpack.c.b16 %v1178, %v1174
        %v1287 = vpack.c.b16 %v1179, %v1175
        %v1288 = vpack.c.b16 %v1180, %v1176
        %v1289 = vpack.c.b16 %v1185, %v1181
        %v1290 = vpack.c.b16 %v1186, %v1182
        %v1291 = vpack.c.b16 %v1187, %v1183
        %v1292 = vpack.c.b16 %v1188, %v1184
        %v1293 = vpack.c.b16 %v1193, %v1189
        %v1294 = vpack.c.b16 %v1194, %v1190
        %v1295 = vpack.c.b16 %v1195, %v1191
        %v1296 = vpack.c.b16 %v1196, %v1192
        %v1297 = vpack.c.b16 %v1201, %v1197
        %v1298 = vpack.c.b16 %v1202, %v1198
        %v1299 = vpack.c.b16 %v1203, %v1199
        %v1300 = vpack.c.b16 %v1204, %v1200
        %v1301 = vpack.c.b16 %v1209, %v1205
        %v1302 = vpack.c.b16 %v1210, %v1206
        %v1303 = vpack.c.b16 %v1211, %v1207
        %v1304 = vpack.c.b16 %v1212, %v1208
        %v1305 = vpack.c.b16 %v1217, %v1213
        %v1306 = vpack.c.b16 %v1218, %v1214
        %v1307 = vpack.c.b16 %v1219, %v1215
        %v1308 = vpack.c.b16 %v1220, %v1216
        %v1309 = vpack.c.b16 %v1225, %v1221
        %v1310 = vpack.c.b16 %v1226, %v1222
        %v1311 = vpack.c.b16 %v1227, %v1223
        %v1312 = vpack.c.b16 %v1228, %v1224
        %v1313 = vpack.c.b16 %v1233, %v1229
        %v1314 = vpack.c.b16 %v1234, %v1230
        %v1315 = vpack.c.b16 %v1235, %v1231
        %v1316 = vpack.c.b16 %v1236, %v1232
        %v1317 = vpack.c.b16 %v1241, %v1237
        %v1318 = vpack.c.b16 %v1242, %v1238
        %v1319 = vpack.c.b16 %v1243, %v1239
        %v1320 = vpack.c.b16 %v1244, %v1240
        %v1321 = vpack.c.b16 %v1249, %v1245
        %v1322 = vpack.c.b16 %v1250, %v1246
        %v1323 = vpack.c.b16 %v1251, %v1247
        %v1324 = vpack.c.b16 %v1252, %v1248
        %v1325 = vpack.c.b16 %v1257, %v1253
        %v1326 = vpack.c.b16 %v1258, %v1254
        %v1327 = vpack.c.b16 %v1259, %v1255
        %v1328 = vpack.c.b16 %v1260, %v1256
        %v1329 = vpack.c.b16 %v1265, %v1261
        %v1330 = vpack.c.b16 %v1266, %v1262
        %v1331 = vpack.c.b16 %v1267, %v1263
        %v1332 = vpack.c.b16 %v1268, %v1264
        %1397 = vmatprep.subr.bf16.mxu0 0
        %1398 = vmatpush1.bf16.msra.mxu0 %v949
        %1399 = vmatprep.subr.bf16.mxu0 0
        %1400 = vmatpush1.bf16.msra.mxu0 %v950
        %1401 = vmatprep.subr.bf16.mxu0 0
        %1402 = vmatpush1.bf16.msra.mxu0 %v951
        %1403 = vmatprep.subr.bf16.mxu0 0
        %1404 = vmatpush1.bf16.msra.mxu0 %v952
        %1405 = vmatprep.subr.bf16.mxu0 0
        %1406 = vmatpush1.bf16.msra.mxu0 %v953
        %1407 = vmatprep.subr.bf16.mxu0 0
        %1408 = vmatpush1.bf16.msra.mxu0 %v954
        %1409 = vmatprep.subr.bf16.mxu0 0
        %1410 = vmatpush1.bf16.msra.mxu0 %v955
        %1411 = vmatprep.subr.bf16.mxu0 0
        %1412 = vmatpush1.bf16.msra.mxu0 %v956
        %1413 = vmatprep.subr.bf16.mxu0 0
        %1414 = vmatpush1.bf16.msra.mxu0 %v957
        %1415 = vmatprep.subr.bf16.mxu0 0
        %1416 = vmatpush1.bf16.msra.mxu0 %v958
        %1417 = vmatprep.subr.bf16.mxu0 0
        %1418 = vmatpush1.bf16.msra.mxu0 %v959
        %1419 = vmatprep.subr.bf16.mxu0 0
        %1420 = vmatpush1.bf16.msra.mxu0 %v960
        %1421 = vmatprep.subr.bf16.mxu0 0
        %1422 = vmatpush1.bf16.msra.mxu0 %v961
        %1423 = vmatprep.subr.bf16.mxu0 0
        %1424 = vmatpush1.bf16.msra.mxu0 %v962
        %1425 = vmatprep.subr.bf16.mxu0 0
        %1426 = vmatpush1.bf16.msra.mxu0 %v963
        %1427 = vmatprep.subr.bf16.mxu0 0
        %1428 = vmatpush1.bf16.msra.mxu0 %v964
        %1429 = vmatprep.mubr.bf16.mxu0 %v1270
        %1430 = vmatmul.mubr.bf16.gmra.mrb[0].mxu0 %v1269
        %v1431 = vpop.f32.mrb[0].mxu0
        %v1432 = vadd.f32 0.0, %v1431
        %v1433 = vpop.f32.mrb[0].mxu0
        %v1434 = vpop.f32.mrb[0].mxu0
        %v1435 = vadd.f32 0.0, %v1434
        %v1436 = vpop.f32.mrb[0].mxu0
        %1437 = vmatprep.mubr.bf16.mxu0 %v1274
        %1438 = vmatmul.mubr.bf16.gmra.mrb[0].mxu0 %v1273
        %v1439 = vpop.f32.mrb[0].mxu0
        %v1440 = vadd.f32 0.0, %v1439
        %v1441 = vpop.f32.mrb[0].mxu0
        %v1442 = vpop.f32.mrb[0].mxu0
        %v1443 = vadd.f32 0.0, %v1442
        %v1444 = vpop.f32.mrb[0].mxu0
        %1445 = vmatprep.mubr.bf16.mxu0 %v1278
        %1446 = vmatmul.mubr.bf16.gmra.mrb[0].mxu0 %v1277
        %v1447 = vpop.f32.mrb[0].mxu0
        %v1448 = vadd.f32 0.0, %v1447
        %v1449 = vpop.f32.mrb[0].mxu0
        %v1450 = vpop.f32.mrb[0].mxu0
        %v1451 = vadd.f32 0.0, %v1450
        %v1452 = vpop.f32.mrb[0].mxu0
        %1453 = vmatprep.mubr.bf16.mxu0 %v1282
        %1454 = vmatmul.mubr.bf16.gmra.mrb[0].mxu0 %v1281
        %v1455 = vpop.f32.mrb[0].mxu0
        %v1456 = vadd.f32 0.0, %v1455
        %v1457 = vpop.f32.mrb[0].mxu0
        %v1458 = vpop.f32.mrb[0].mxu0
        %v1459 = vadd.f32 0.0, %v1458
        %v1460 = vpop.f32.mrb[0].mxu0
        %1461 = vmatprep.mubr.bf16.mxu0 %v1286
        %1462 = vmatmul.mubr.bf16.gmra.mrb[0].mxu0 %v1285
        %v1463 = vpop.f32.mrb[0].mxu0
        %v1464 = vadd.f32 0.0, %v1463
        %v1465 = vpop.f32.mrb[0].mxu0
        %v1466 = vpop.f32.mrb[0].mxu0
        %v1467 = vadd.f32 0.0, %v1466
        %v1468 = vpop.f32.mrb[0].mxu0
        %1469 = vmatprep.mubr.bf16.mxu0 %v1290
        %1470 = vmatmul.mubr.bf16.gmra.mrb[0].mxu0 %v1289
        %v1471 = vpop.f32.mrb[0].mxu0
        %v1472 = vadd.f32 0.0, %v1471
        %v1473 = vpop.f32.mrb[0].mxu0
        %v1474 = vpop.f32.mrb[0].mxu0
        %v1475 = vadd.f32 0.0, %v1474
        %v1476 = vpop.f32.mrb[0].mxu0
        %1477 = vmatprep.mubr.bf16.mxu0 %v1294
        %1478 = vmatmul.mubr.bf16.gmra.mrb[0].mxu0 %v1293
        %v1479 = vpop.f32.mrb[0].mxu0
        %v1480 = vadd.f32 0.0, %v1479
        %v1481 = vpop.f32.mrb[0].mxu0
        %v1482 = vpop.f32.mrb[0].mxu0
        %v1483 = vadd.f32 0.0, %v1482
        %v1484 = vpop.f32.mrb[0].mxu0
        %1485 = vmatprep.mubr.bf16.mxu0 %v1298
        %1486 = vmatmul.mubr.bf16.gmra.mrb[0].mxu0 %v1297
        %v1487 = vpop.f32.mrb[0].mxu0
        %v1488 = vadd.f32 0.0, %v1487
        %v1489 = vpop.f32.mrb[0].mxu0
        %v1490 = vpop.f32.mrb[0].mxu0
        %v1491 = vadd.f32 0.0, %v1490
        %v1492 = vpop.f32.mrb[0].mxu0
        %1493 = vmatprep.mubr.bf16.mxu0 %v1302
        %1494 = vmatmul.mubr.bf16.gmra.mrb[0].mxu0 %v1301
        %v1495 = vpop.f32.mrb[0].mxu0
        %v1496 = vadd.f32 0.0, %v1495
        %v1497 = vpop.f32.mrb[0].mxu0
        %v1498 = vpop.f32.mrb[0].mxu0
        %v1499 = vadd.f32 0.0, %v1498
        %v1500 = vpop.f32.mrb[0].mxu0
        %1501 = vmatprep.mubr.bf16.mxu0 %v1306
        %1502 = vmatmul.mubr.bf16.gmra.mrb[0].mxu0 %v1305
        %v1503 = vpop.f32.mrb[0].mxu0
        %v1504 = vadd.f32 0.0, %v1503
        %v1505 = vpop.f32.mrb[0].mxu0
        %v1506 = vpop.f32.mrb[0].mxu0
        %v1507 = vadd.f32 0.0, %v1506
        %v1508 = vpop.f32.mrb[0].mxu0
        %1509 = vmatprep.mubr.bf16.mxu0 %v1310
        %1510 = vmatmul.mubr.bf16.gmra.mrb[0].mxu0 %v1309
        %v1511 = vpop.f32.mrb[0].mxu0
        %v1512 = vadd.f32 0.0, %v1511
        %v1513 = vpop.f32.mrb[0].mxu0
        %v1514 = vpop.f32.mrb[0].mxu0
        %v1515 = vadd.f32 0.0, %v1514
        %v1516 = vpop.f32.mrb[0].mxu0
        %1517 = vmatprep.mubr.bf16.mxu0 %v1314
        %1518 = vmatmul.mubr.bf16.gmra.mrb[0].mxu0 %v1313
        %v1519 = vpop.f32.mrb[0].mxu0
        %v1520 = vadd.f32 0.0, %v1519
        %v1521 = vpop.f32.mrb[0].mxu0
        %v1522 = vpop.f32.mrb[0].mxu0
        %v1523 = vadd.f32 0.0, %v1522
        %v1524 = vpop.f32.mrb[0].mxu0
        %1525 = vmatprep.mubr.bf16.mxu0 %v1318
        %1526 = vmatmul.mubr.bf16.gmra.mrb[0].mxu0 %v1317
        %v1527 = vpop.f32.mrb[0].mxu0
        %v1528 = vadd.f32 0.0, %v1527
        %v1529 = vpop.f32.mrb[0].mxu0
        %v1530 = vpop.f32.mrb[0].mxu0
        %v1531 = vadd.f32 0.0, %v1530
        %v1532 = vpop.f32.mrb[0].mxu0
        %1533 = vmatprep.mubr.bf16.mxu0 %v1322
        %1534 = vmatmul.mubr.bf16.gmra.mrb[0].mxu0 %v1321
        %v1535 = vpop.f32.mrb[0].mxu0
        %v1536 = vadd.f32 0.0, %v1535
        %v1537 = vpop.f32.mrb[0].mxu0
        %v1538 = vpop.f32.mrb[0].mxu0
        %v1539 = vadd.f32 0.0, %v1538
        %v1540 = vpop.f32.mrb[0].mxu0
        %1541 = vmatprep.mubr.bf16.mxu0 %v1326
        %1542 = vmatmul.mubr.bf16.gmra.mrb[0].mxu0 %v1325
        %v1543 = vpop.f32.mrb[0].mxu0
        %v1544 = vadd.f32 0.0, %v1543
        %v1545 = vpop.f32.mrb[0].mxu0
        %v1546 = vpop.f32.mrb[0].mxu0
        %v1547 = vadd.f32 0.0, %v1546
        %v1548 = vpop.f32.mrb[0].mxu0
        %1549 = vmatprep.mubr.bf16.mxu0 %v1330
        %1550 = vmatmul.mubr.bf16.gmra.mrb[0].mxu0 %v1329
        %v1551 = vpop.f32.mrb[0].mxu0
        %v1552 = vadd.f32 0.0, %v1551
        %v1553 = vpop.f32.mrb[0].mxu0
        %v1554 = vpop.f32.mrb[0].mxu0
        %v1555 = vadd.f32 0.0, %v1554
        %v1556 = vpop.f32.mrb[0].mxu0
        %1557 = vdwg.mxu0
        %1558 = vmatprep.subr.bf16.mxu0 0
        %1559 = vmatpush1.bf16.msra.mxu0 %v965
        %1560 = vmatprep.subr.bf16.mxu0 0
        %1561 = vmatpush1.bf16.msra.mxu0 %v966
        %1562 = vmatprep.subr.bf16.mxu0 0
        %1563 = vmatpush1.bf16.msra.mxu0 %v967
        %1564 = vmatprep.subr.bf16.mxu0 0
        %1565 = vmatpush1.bf16.msra.mxu0 %v968
        %1566 = vmatprep.subr.bf16.mxu0 0
        %1567 = vmatpush1.bf16.msra.mxu0 %v969
        %1568 = vmatprep.subr.bf16.mxu0 0
        %1569 = vmatpush1.bf16.msra.mxu0 %v970
        %1570 = vmatprep.subr.bf16.mxu0 0
        %1571 = vmatpush1.bf16.msra.mxu0 %v971
        %1572 = vmatprep.subr.bf16.mxu0 0
        %1573 = vmatpush1.bf16.msra.mxu0 %v972
        %1574 = vmatprep.subr.bf16.mxu0 0
        %1575 = vmatpush1.bf16.msra.mxu0 %v973
        %1576 = vmatprep.subr.bf16.mxu0 0
        %1577 = vmatpush1.bf16.msra.mxu0 %v974
        %1578 = vmatprep.subr.bf16.mxu0 0
        %1579 = vmatpush1.bf16.msra.mxu0 %v975
        %1580 = vmatprep.subr.bf16.mxu0 0
        %1581 = vmatpush1.bf16.msra.mxu0 %v976
        %1582 = vmatprep.subr.bf16.mxu0 0
        %1583 = vmatpush1.bf16.msra.mxu0 %v977
        %1584 = vmatprep.subr.bf16.mxu0 0
        %1585 = vmatpush1.bf16.msra.mxu0 %v978
        %1586 = vmatprep.subr.bf16.mxu0 0
        %1587 = vmatpush1.bf16.msra.mxu0 %v979
        %1588 = vmatprep.subr.bf16.mxu0 0
        %1589 = vmatpush1.bf16.msra.mxu0 %v980
        %1590 = vmatprep.mubr.bf16.mxu0 %v1272
        %1591 = vmatmul.mubr.bf16.gmra.mrb[0].mxu0 %v1271
        %v1592 = vpop.f32.mrb[0].mxu0
        %v1593 = vadd.f32 %v1432, %v1592
        %v1594 = vpop.f32.mrb[0].mxu0
        %v1595 = vpop.f32.mrb[0].mxu0
        %v1596 = vadd.f32 %v1435, %v1595
        %v1597 = vpop.f32.mrb[0].mxu0
        %1598 = vmatprep.mubr.bf16.mxu0 %v1276
        %1599 = vmatmul.mubr.bf16.gmra.mrb[0].mxu0 %v1275
        %v1600 = vpop.f32.mrb[0].mxu0
        %v1601 = vadd.f32 %v1440, %v1600
        %v1602 = vpop.f32.mrb[0].mxu0
        %v1603 = vpop.f32.mrb[0].mxu0
        %v1604 = vadd.f32 %v1443, %v1603
        %v1605 = vpop.f32.mrb[0].mxu0
        %1606 = vmatprep.mubr.bf16.mxu0 %v1280
        %1607 = vmatmul.mubr.bf16.gmra.mrb[0].mxu0 %v1279
        %v1608 = vpop.f32.mrb[0].mxu0
        %v1609 = vadd.f32 %v1448, %v1608
        %v1610 = vpop.f32.mrb[0].mxu0
        %v1611 = vpop.f32.mrb[0].mxu0
        %v1612 = vadd.f32 %v1451, %v1611
        %v1613 = vpop.f32.mrb[0].mxu0
        %1614 = vmatprep.mubr.bf16.mxu0 %v1284
        %1615 = vmatmul.mubr.bf16.gmra.mrb[0].mxu0 %v1283
        %v1616 = vpop.f32.mrb[0].mxu0
        %v1617 = vadd.f32 %v1456, %v1616
        %v1618 = vpop.f32.mrb[0].mxu0
        %v1619 = vpop.f32.mrb[0].mxu0
        %v1620 = vadd.f32 %v1459, %v1619
        %v1621 = vpop.f32.mrb[0].mxu0
        %1622 = vmatprep.mubr.bf16.mxu0 %v1288
        %1623 = vmatmul.mubr.bf16.gmra.mrb[0].mxu0 %v1287
        %v1624 = vpop.f32.mrb[0].mxu0
        %v1625 = vadd.f32 %v1464, %v1624
        %v1626 = vpop.f32.mrb[0].mxu0
        %v1627 = vpop.f32.mrb[0].mxu0
        %v1628 = vadd.f32 %v1467, %v1627
        %v1629 = vpop.f32.mrb[0].mxu0
        %1630 = vmatprep.mubr.bf16.mxu0 %v1292
        %1631 = vmatmul.mubr.bf16.gmra.mrb[0].mxu0 %v1291
        %v1632 = vpop.f32.mrb[0].mxu0
        %v1633 = vadd.f32 %v1472, %v1632
        %v1634 = vpop.f32.mrb[0].mxu0
        %v1635 = vpop.f32.mrb[0].mxu0
        %v1636 = vadd.f32 %v1475, %v1635
        %v1637 = vpop.f32.mrb[0].mxu0
        %1638 = vmatprep.mubr.bf16.mxu0 %v1296
        %1639 = vmatmul.mubr.bf16.gmra.mrb[0].mxu0 %v1295
        %v1640 = vpop.f32.mrb[0].mxu0
        %v1641 = vadd.f32 %v1480, %v1640
        %v1642 = vpop.f32.mrb[0].mxu0
        %v1643 = vpop.f32.mrb[0].mxu0
        %v1644 = vadd.f32 %v1483, %v1643
        %v1645 = vpop.f32.mrb[0].mxu0
        %1646 = vmatprep.mubr.bf16.mxu0 %v1300
        %1647 = vmatmul.mubr.bf16.gmra.mrb[0].mxu0 %v1299
        %v1648 = vpop.f32.mrb[0].mxu0
        %v1649 = vadd.f32 %v1488, %v1648
        %v1650 = vpop.f32.mrb[0].mxu0
        %v1651 = vpop.f32.mrb[0].mxu0
        %v1652 = vadd.f32 %v1491, %v1651
        %v1653 = vpop.f32.mrb[0].mxu0
        %1654 = vmatprep.mubr.bf16.mxu0 %v1304
        %1655 = vmatmul.mubr.bf16.gmra.mrb[0].mxu0 %v1303
        %v1656 = vpop.f32.mrb[0].mxu0
        %v1657 = vadd.f32 %v1496, %v1656
        %v1658 = vpop.f32.mrb[0].mxu0
        %v1659 = vpop.f32.mrb[0].mxu0
        %v1660 = vadd.f32 %v1499, %v1659
        %v1661 = vpop.f32.mrb[0].mxu0
        %1662 = vmatprep.mubr.bf16.mxu0 %v1308
        %1663 = vmatmul.mubr.bf16.gmra.mrb[0].mxu0 %v1307
        %v1664 = vpop.f32.mrb[0].mxu0
        %v1665 = vadd.f32 %v1504, %v1664
        %v1666 = vpop.f32.mrb[0].mxu0
        %v1667 = vpop.f32.mrb[0].mxu0
        %v1668 = vadd.f32 %v1507, %v1667
        %v1669 = vpop.f32.mrb[0].mxu0
        %1670 = vmatprep.mubr.bf16.mxu0 %v1312
        %1671 = vmatmul.mubr.bf16.gmra.mrb[0].mxu0 %v1311
        %v1672 = vpop.f32.mrb[0].mxu0
        %v1673 = vadd.f32 %v1512, %v1672
        %v1674 = vpop.f32.mrb[0].mxu0
        %v1675 = vpop.f32.mrb[0].mxu0
        %v1676 = vadd.f32 %v1515, %v1675
        %v1677 = vpop.f32.mrb[0].mxu0
        %1678 = vmatprep.mubr.bf16.mxu0 %v1316
        %1679 = vmatmul.mubr.bf16.gmra.mrb[0].mxu0 %v1315
        %v1680 = vpop.f32.mrb[0].mxu0
        %v1681 = vadd.f32 %v1520, %v1680
        %v1682 = vpop.f32.mrb[0].mxu0
        %v1683 = vpop.f32.mrb[0].mxu0
        %v1684 = vadd.f32 %v1523, %v1683
        %v1685 = vpop.f32.mrb[0].mxu0
        %1686 = vmatprep.mubr.bf16.mxu0 %v1320
        %1687 = vmatmul.mubr.bf16.gmra.mrb[0].mxu0 %v1319
        %v1688 = vpop.f32.mrb[0].mxu0
        %v1689 = vadd.f32 %v1528, %v1688
        %v1690 = vpop.f32.mrb[0].mxu0
        %v1691 = vpop.f32.mrb[0].mxu0
        %v1692 = vadd.f32 %v1531, %v1691
        %v1693 = vpop.f32.mrb[0].mxu0
        %1694 = vmatprep.mubr.bf16.mxu0 %v1324
        %1695 = vmatmul.mubr.bf16.gmra.mrb[0].mxu0 %v1323
        %v1696 = vpop.f32.mrb[0].mxu0
        %v1697 = vadd.f32 %v1536, %v1696
        %v1698 = vpop.f32.mrb[0].mxu0
        %v1699 = vpop.f32.mrb[0].mxu0
        %v1700 = vadd.f32 %v1539, %v1699
        %v1701 = vpop.f32.mrb[0].mxu0
        %1702 = vmatprep.mubr.bf16.mxu0 %v1328
        %1703 = vmatmul.mubr.bf16.gmra.mrb[0].mxu0 %v1327
        %v1704 = vpop.f32.mrb[0].mxu0
        %v1705 = vadd.f32 %v1544, %v1704
        %v1706 = vpop.f32.mrb[0].mxu0
        %v1707 = vpop.f32.mrb[0].mxu0
        %v1708 = vadd.f32 %v1547, %v1707
        %v1709 = vpop.f32.mrb[0].mxu0
        %1710 = vmatprep.mubr.bf16.mxu0 %v1332
        %1711 = vmatmul.mubr.bf16.gmra.mrb[0].mxu0 %v1331
        %v1712 = vpop.f32.mrb[0].mxu0
        %v1713 = vadd.f32 %v1552, %v1712
        %v1714 = vpop.f32.mrb[0].mxu0
        %v1715 = vpop.f32.mrb[0].mxu0
        %v1716 = vadd.f32 %v1555, %v1715
        %v1717 = vpop.f32.mrb[0].mxu0
        %1718 = vdwg.mxu0
        %v1719 = vadd.f32 %v981, %v1593
        %v1720 = vadd.f32 %v982, %v1596
        %v1721 = vadd.f32 %v983, %v1601
        %v1722 = vadd.f32 %v984, %v1604
        %v1723 = vadd.f32 %v985, %v1609
        %v1724 = vadd.f32 %v986, %v1612
        %v1725 = vadd.f32 %v987, %v1617
        %v1726 = vadd.f32 %v988, %v1620
        %v1727 = vadd.f32 %v989, %v1625
        %v1728 = vadd.f32 %v990, %v1628
        %v1729 = vadd.f32 %v991, %v1633
        %v1730 = vadd.f32 %v992, %v1636
        %v1731 = vadd.f32 %v993, %v1641
        %v1732 = vadd.f32 %v994, %v1644
        %v1733 = vadd.f32 %v995, %v1649
        %v1734 = vadd.f32 %v996, %v1652
        %v1735 = vadd.f32 %v997, %v1657
        %v1736 = vadd.f32 %v998, %v1660
        %v1737 = vadd.f32 %v999, %v1665
        %v1738 = vadd.f32 %v1000, %v1668
        %v1739 = vadd.f32 %v1001, %v1673
        %v1740 = vadd.f32 %v1002, %v1676
        %v1741 = vadd.f32 %v1003, %v1681
        %v1742 = vadd.f32 %v1004, %v1684
        %v1743 = vadd.f32 %v1005, %v1689
        %v1744 = vadd.f32 %v1006, %v1692
        %v1745 = vadd.f32 %v1007, %v1697
        %v1746 = vadd.f32 %v1008, %v1700
        %v1747 = vadd.f32 %v1009, %v1705
        %v1748 = vadd.f32 %v1010, %v1708
        %v1749 = vadd.f32 %v1011, %v1713
        %v1750 = vadd.f32 %v1012, %v1716
        %1751 = vst [vmem:[#allocation2] sm:$0xff] %v1719
        %1752 = vst [vmem:[#allocation2 + $0x8] sm:$0xff] %v1720
        %1753 = vst [vmem:[#allocation2 + $0x10] sm:$0xff] %v1721
        %1754 = vst [vmem:[#allocation2 + $0x18] sm:$0xff] %v1722
        %1755 = vst [vmem:[#allocation2 + $0x20] sm:$0xff] %v1723
        %1756 = vst [vmem:[#allocation2 + $0x28] sm:$0xff] %v1724
        %1757 = vst [vmem:[#allocation2 + $0x30] sm:$0xff] %v1725
        %1758 = vst [vmem:[#allocation2 + $0x38] sm:$0xff] %v1726
        %1759 = vst [vmem:[#allocation2 + $0x40] sm:$0xff] %v1727
        %1760 = vst [vmem:[#allocation2 + $0x48] sm:$0xff] %v1728
        %1761 = vst [vmem:[#allocation2 + $0x50] sm:$0xff] %v1729
        %1762 = vst [vmem:[#allocation2 + $0x58] sm:$0xff] %v1730
        %1763 = vst [vmem:[#allocation2 + $0x60] sm:$0xff] %v1731
        %1764 = vst [vmem:[#allocation2 + $0x68] sm:$0xff] %v1732
        %1765 = vst [vmem:[#allocation2 + $0x70] sm:$0xff] %v1733
        %1766 = vst [vmem:[#allocation2 + $0x78] sm:$0xff] %v1734
        %1767 = vst [vmem:[#allocation2 + $0x80] sm:$0xff] %v1735
        %1768 = vst [vmem:[#allocation2 + $0x88] sm:$0xff] %v1736
        %1769 = vst [vmem:[#allocation2 + $0x90] sm:$0xff] %v1737
        %1770 = vst [vmem:[#allocation2 + $0x98] sm:$0xff] %v1738
        %1771 = vst [vmem:[#allocation2 + $0xa0] sm:$0xff] %v1739
        %1772 = vst [vmem:[#allocation2 + $0xa8] sm:$0xff] %v1740
        %1773 = vst [vmem:[#allocation2 + $0xb0] sm:$0xff] %v1741
        %1774 = vst [vmem:[#allocation2 + $0xb8] sm:$0xff] %v1742
        %1775 = vst [vmem:[#allocation2 + $0xc0] sm:$0xff] %v1743
        %1776 = vst [vmem:[#allocation2 + $0xc8] sm:$0xff] %v1744
        %1777 = vst [vmem:[#allocation2 + $0xd0] sm:$0xff] %v1745
        %1778 = vst [vmem:[#allocation2 + $0xd8] sm:$0xff] %v1746
        %1779 = vst [vmem:[#allocation2 + $0xe0] sm:$0xff] %v1747
        %1780 = vst [vmem:[#allocation2 + $0xe8] sm:$0xff] %v1748
        %1781 = vst [vmem:[#allocation2 + $0xf0] sm:$0xff] %v1749
        %1782 = vst [vmem:[#allocation2 + $0xf8] sm:$0xff] %v1750
        // Predicated region
        $region53: #{gcn_forward.2} parent=35 // pred_check
          %p1783 = pneg %p266
        $region54: #{gcn_forward.2} parent=35 // pred_check_branch
          %1785 = sbr.rel (%p1783) target = $region56
        $region55: #{gcn_forward.2} parent=35 // pred_region
          %v1786 = vld [vmem:[#allocation2] sm:$0xff]
          %v1787 = vld [vmem:[#allocation2 + $0x8] sm:$0xff]
          %v1788 = vld [vmem:[#allocation2 + $0x10] sm:$0xff]
          %v1789 = vld [vmem:[#allocation2 + $0x18] sm:$0xff]
          %v1790 = vld [vmem:[#allocation2 + $0x20] sm:$0xff]
          %v1791 = vld [vmem:[#allocation2 + $0x28] sm:$0xff]
          %v1792 = vld [vmem:[#allocation2 + $0x30] sm:$0xff]
          %v1793 = vld [vmem:[#allocation2 + $0x38] sm:$0xff]
          %v1794 = vld [vmem:[#allocation2 + $0x40] sm:$0xff]
          %v1795 = vld [vmem:[#allocation2 + $0x48] sm:$0xff]
          %v1796 = vld [vmem:[#allocation2 + $0x50] sm:$0xff]
          %v1797 = vld [vmem:[#allocation2 + $0x58] sm:$0xff]
          %v1798 = vld [vmem:[#allocation2 + $0x60] sm:$0xff]
          %v1799 = vld [vmem:[#allocation2 + $0x68] sm:$0xff]
          %v1800 = vld [vmem:[#allocation2 + $0x70] sm:$0xff]
          %v1801 = vld [vmem:[#allocation2 + $0x78] sm:$0xff]
          %v1802 = vld [vmem:[#allocation2 + $0x80] sm:$0xff]
          %v1803 = vld [vmem:[#allocation2 + $0x88] sm:$0xff]
          %v1804 = vld [vmem:[#allocation2 + $0x90] sm:$0xff]
          %v1805 = vld [vmem:[#allocation2 + $0x98] sm:$0xff]
          %v1806 = vld [vmem:[#allocation2 + $0xa0] sm:$0xff]
          %v1807 = vld [vmem:[#allocation2 + $0xa8] sm:$0xff]
          %v1808 = vld [vmem:[#allocation2 + $0xb0] sm:$0xff]
          %v1809 = vld [vmem:[#allocation2 + $0xb8] sm:$0xff]
          %v1810 = vld [vmem:[#allocation2 + $0xc0] sm:$0xff]
          %v1811 = vld [vmem:[#allocation2 + $0xc8] sm:$0xff]
          %v1812 = vld [vmem:[#allocation2 + $0xd0] sm:$0xff]
          %v1813 = vld [vmem:[#allocation2 + $0xd8] sm:$0xff]
          %v1814 = vld [vmem:[#allocation2 + $0xe0] sm:$0xff]
          %v1815 = vld [vmem:[#allocation2 + $0xe8] sm:$0xff]
          %v1816 = vld [vmem:[#allocation2 + $0xf0] sm:$0xff]
          %v1817 = vld [vmem:[#allocation2 + $0xf8] sm:$0xff]
          %v1818 = vld [vmem:[#allocation7] sm:$0x1]
          %v1820 = vlaneseq
          %v1821 = vshrl.u32 %v1820, 7
          %v1822 = vsub.s32 0, %v1821
          %v1823 = vrot.slane %v1818, %v1822
          %v1825 = vadd.f32 %v1786, %v1823
          %v1826 = vadd.f32 %v1787, %v1823
          %v1827 = vadd.f32 %v1788, %v1823
          %v1828 = vadd.f32 %v1789, %v1823
          %v1829 = vadd.f32 %v1790, %v1823
          %v1830 = vadd.f32 %v1791, %v1823
          %v1831 = vadd.f32 %v1792, %v1823
          %v1832 = vadd.f32 %v1793, %v1823
          %v1833 = vadd.f32 %v1794, %v1823
          %v1834 = vadd.f32 %v1795, %v1823
          %v1835 = vadd.f32 %v1796, %v1823
          %v1836 = vadd.f32 %v1797, %v1823
          %v1837 = vadd.f32 %v1798, %v1823
          %v1838 = vadd.f32 %v1799, %v1823
          %v1839 = vadd.f32 %v1800, %v1823
          %v1840 = vadd.f32 %v1801, %v1823
          %v1841 = vadd.f32 %v1802, %v1823
          %v1842 = vadd.f32 %v1803, %v1823
          %v1843 = vadd.f32 %v1804, %v1823
          %v1844 = vadd.f32 %v1805, %v1823
          %v1845 = vadd.f32 %v1806, %v1823
          %v1846 = vadd.f32 %v1807, %v1823
          %v1847 = vadd.f32 %v1808, %v1823
          %v1848 = vadd.f32 %v1809, %v1823
          %v1849 = vadd.f32 %v1810, %v1823
          %v1850 = vadd.f32 %v1811, %v1823
          %v1851 = vadd.f32 %v1812, %v1823
          %v1852 = vadd.f32 %v1813, %v1823
          %v1853 = vadd.f32 %v1814, %v1823
          %v1854 = vadd.f32 %v1815, %v1823
          %v1855 = vadd.f32 %v1816, %v1823
          %v1856 = vadd.f32 %v1817, %v1823
          %v1857 = vmax.f32 %v1825, 0.0
          %v1858 = vmax.f32 %v1826, 0.0
          %v1859 = vmax.f32 %v1827, 0.0
          %v1860 = vmax.f32 %v1828, 0.0
          %v1861 = vmax.f32 %v1829, 0.0
          %v1862 = vmax.f32 %v1830, 0.0
          %v1863 = vmax.f32 %v1831, 0.0
          %v1864 = vmax.f32 %v1832, 0.0
          %v1865 = vmax.f32 %v1833, 0.0
          %v1866 = vmax.f32 %v1834, 0.0
          %v1867 = vmax.f32 %v1835, 0.0
          %v1868 = vmax.f32 %v1836, 0.0
          %v1869 = vmax.f32 %v1837, 0.0
          %v1870 = vmax.f32 %v1838, 0.0
          %v1871 = vmax.f32 %v1839, 0.0
          %v1872 = vmax.f32 %v1840, 0.0
          %v1873 = vmax.f32 %v1841, 0.0
          %v1874 = vmax.f32 %v1842, 0.0
          %v1875 = vmax.f32 %v1843, 0.0
          %v1876 = vmax.f32 %v1844, 0.0
          %v1877 = vmax.f32 %v1845, 0.0
          %v1878 = vmax.f32 %v1846, 0.0
          %v1879 = vmax.f32 %v1847, 0.0
          %v1880 = vmax.f32 %v1848, 0.0
          %v1881 = vmax.f32 %v1849, 0.0
          %v1882 = vmax.f32 %v1850, 0.0
          %v1883 = vmax.f32 %v1851, 0.0
          %v1884 = vmax.f32 %v1852, 0.0
          %v1885 = vmax.f32 %v1853, 0.0
          %v1886 = vmax.f32 %v1854, 0.0
          %v1887 = vmax.f32 %v1855, 0.0
          %v1888 = vmax.f32 %v1856, 0.0
          %v1889 = vpack.c.bf16 %v1858, %v1857
          %v1890 = vpack.c.bf16 %v1860, %v1859
          %v1891 = vpack.c.bf16 %v1862, %v1861
          %v1892 = vpack.c.bf16 %v1864, %v1863
          %v1893 = vpack.c.bf16 %v1866, %v1865
          %v1894 = vpack.c.bf16 %v1868, %v1867
          %v1895 = vpack.c.bf16 %v1870, %v1869
          %v1896 = vpack.c.bf16 %v1872, %v1871
          %v1897 = vpack.c.bf16 %v1874, %v1873
          %v1898 = vpack.c.bf16 %v1876, %v1875
          %v1899 = vpack.c.bf16 %v1878, %v1877
          %v1900 = vpack.c.bf16 %v1880, %v1879
          %v1901 = vpack.c.bf16 %v1882, %v1881
          %v1902 = vpack.c.bf16 %v1884, %v1883
          %v1903 = vpack.c.bf16 %v1886, %v1885
          %v1904 = vpack.c.bf16 %v1888, %v1887
          %v1921 = vunpack.c.l.b16 %v1889
          %v1922 = vunpack.c.h.b16 %v1889
          %v1923 = vunpack.c.l.b16 %v1890
          %v1924 = vunpack.c.h.b16 %v1890
          %v1925 = vunpack.c.l.b16 %v1891
          %v1926 = vunpack.c.h.b16 %v1891
          %v1927 = vunpack.c.l.b16 %v1892
          %v1928 = vunpack.c.h.b16 %v1892
          %v1929 = vunpack.c.l.b16 %v1893
          %v1930 = vunpack.c.h.b16 %v1893
          %v1931 = vunpack.c.l.b16 %v1894
          %v1932 = vunpack.c.h.b16 %v1894
          %v1933 = vunpack.c.l.b16 %v1895
          %v1934 = vunpack.c.h.b16 %v1895
          %v1935 = vunpack.c.l.b16 %v1896
          %v1936 = vunpack.c.h.b16 %v1896
          %v1937 = vunpack.c.l.b16 %v1897
          %v1938 = vunpack.c.h.b16 %v1897
          %v1939 = vunpack.c.l.b16 %v1898
          %v1940 = vunpack.c.h.b16 %v1898
          %v1941 = vunpack.c.l.b16 %v1899
          %v1942 = vunpack.c.h.b16 %v1899
          %v1943 = vunpack.c.l.b16 %v1900
          %v1944 = vunpack.c.h.b16 %v1900
          %v1945 = vunpack.c.l.b16 %v1901
          %v1946 = vunpack.c.h.b16 %v1901
          %v1947 = vunpack.c.l.b16 %v1902
          %v1948 = vunpack.c.h.b16 %v1902
          %v1949 = vunpack.c.l.b16 %v1903
          %v1950 = vunpack.c.h.b16 %v1903
          %v1951 = vunpack.c.l.b16 %v1904
          %v1952 = vunpack.c.h.b16 %v1904
          %v1953 = vpack.c.b16 %v1921, %v1921
          %v1954 = vpack.c.b16 %v1922, %v1922
          %v1955 = vpack.c.b16 %v1923, %v1923
          %v1956 = vpack.c.b16 %v1924, %v1924
          %v1957 = vpack.c.b16 %v1925, %v1925
          %v1958 = vpack.c.b16 %v1926, %v1926
          %v1959 = vpack.c.b16 %v1927, %v1927
          %v1960 = vpack.c.b16 %v1928, %v1928
          %v1961 = vpack.c.b16 %v1929, %v1929
          %v1962 = vpack.c.b16 %v1930, %v1930
          %v1963 = vpack.c.b16 %v1931, %v1931
          %v1964 = vpack.c.b16 %v1932, %v1932
          %v1965 = vpack.c.b16 %v1933, %v1933
          %v1966 = vpack.c.b16 %v1934, %v1934
          %v1967 = vpack.c.b16 %v1935, %v1935
          %v1968 = vpack.c.b16 %v1936, %v1936
          %v1969 = vpack.c.b16 %v1937, %v1937
          %v1970 = vpack.c.b16 %v1938, %v1938
          %v1971 = vpack.c.b16 %v1939, %v1939
          %v1972 = vpack.c.b16 %v1940, %v1940
          %v1973 = vpack.c.b16 %v1941, %v1941
          %v1974 = vpack.c.b16 %v1942, %v1942
          %v1975 = vpack.c.b16 %v1943, %v1943
          %v1976 = vpack.c.b16 %v1944, %v1944
          %v1977 = vpack.c.b16 %v1945, %v1945
          %v1978 = vpack.c.b16 %v1946, %v1946
          %v1979 = vpack.c.b16 %v1947, %v1947
          %v1980 = vpack.c.b16 %v1948, %v1948
          %v1981 = vpack.c.b16 %v1949, %v1949
          %v1982 = vpack.c.b16 %v1950, %v1950
          %v1983 = vpack.c.b16 %v1951, %v1951
          %v1984 = vpack.c.b16 %v1952, %v1952
          %2017 = vst [vmem:[%s263] sm:$0xf] %v1953
          %2018 = vst [vmem:[%s263 + $0x4] sm:$0xf] %v1954
          %2019 = vst [vmem:[%s263 + $0x8] sm:$0xf] %v1955
          %2020 = vst [vmem:[%s263 + $0xc] sm:$0xf] %v1956
          %2021 = vst [vmem:[%s263 + $0x10] sm:$0xf] %v1957
          %2022 = vst [vmem:[%s263 + $0x14] sm:$0xf] %v1958
          %2023 = vst [vmem:[%s263 + $0x18] sm:$0xf] %v1959
          %2024 = vst [vmem:[%s263 + $0x1c] sm:$0xf] %v1960
          %2025 = vst [vmem:[%s263 + $0x20] sm:$0xf] %v1961
          %2026 = vst [vmem:[%s263 + $0x24] sm:$0xf] %v1962
          %2027 = vst [vmem:[%s263 + $0x28] sm:$0xf] %v1963
          %2028 = vst [vmem:[%s263 + $0x2c] sm:$0xf] %v1964
          %2029 = vst [vmem:[%s263 + $0x30] sm:$0xf] %v1965
          %2030 = vst [vmem:[%s263 + $0x34] sm:$0xf] %v1966
          %2031 = vst [vmem:[%s263 + $0x38] sm:$0xf] %v1967
          %2032 = vst [vmem:[%s263 + $0x3c] sm:$0xf] %v1968
          %2033 = vst [vmem:[%s263 + $0x40] sm:$0xf] %v1969
          %2034 = vst [vmem:[%s263 + $0x44] sm:$0xf] %v1970
          %2035 = vst [vmem:[%s263 + $0x48] sm:$0xf] %v1971
          %2036 = vst [vmem:[%s263 + $0x4c] sm:$0xf] %v1972
          %2037 = vst [vmem:[%s263 + $0x50] sm:$0xf] %v1973
          %2038 = vst [vmem:[%s263 + $0x54] sm:$0xf] %v1974
          %2039 = vst [vmem:[%s263 + $0x58] sm:$0xf] %v1975
          %2040 = vst [vmem:[%s263 + $0x5c] sm:$0xf] %v1976
          %2041 = vst [vmem:[%s263 + $0x60] sm:$0xf] %v1977
          %2042 = vst [vmem:[%s263 + $0x64] sm:$0xf] %v1978
          %2043 = vst [vmem:[%s263 + $0x68] sm:$0xf] %v1979
          %2044 = vst [vmem:[%s263 + $0x6c] sm:$0xf] %v1980
          %2045 = vst [vmem:[%s263 + $0x70] sm:$0xf] %v1981
          %2046 = vst [vmem:[%s263 + $0x74] sm:$0xf] %v1982
          %2047 = vst [vmem:[%s263 + $0x78] sm:$0xf] %v1983
          %2048 = vst [vmem:[%s263 + $0x7c] sm:$0xf] %v1984
        $region56: #{gcn_forward.2} parent=35 // pred_fallthru
          _
        %s2049 = smul.u32 32, %s23
        %p2050 = scmp.lt.s32.totalorder %s2049, 63
        %s2051 = scalar_select %p2050, %s2049, 63
        %s2052 = smul.addr %s2051, 4
        %s2053 = scalar_lea.vmem %s4, %s2052
        // Predicated region
        $region57: #{gcn_forward.2} parent=35 // pred_check
          %p2054 = pneg %p140
        $region58: #{gcn_forward.2} parent=35 // pred_check_branch
          %2056 = sbr.rel (%p2054) target = $region60
        $region59: #{gcn_forward.2} parent=35 // pred_region
          %s2057 = smul.u32 32, %s23
        $region60: #{gcn_forward.2} parent=35 // pred_fallthru
          _
      $region36: #{gcn_forward.2} parent=5 // pred_fallthru
        _
      %p2058 = scmp.le.s32.totalorder 2, %s14
      // Predicated region
      $region61: #{gcn_forward.2} parent=5 // pred_check
        %p2059 = pneg %p2058
      $region62: #{gcn_forward.2} parent=5 // pred_check_branch
        %2061 = sbr.rel (%p2059) target = $region64
      $region63: #{gcn_forward.2} parent=5 // pred_region
        %s2062 = ssub.s32 %s14, 2
        // Predicated region
        $region65: #{gcn_forward.2} parent=63 // pred_check
          %p2063 = pneg %p146
        $region66: #{gcn_forward.2} parent=63 // pred_check_branch
          %2065 = sbr.rel (%p2063) target = $region68
        $region67: #{gcn_forward.2} parent=63 // pred_region
          %s2066 = smul.u32 32, %s25
          %p2067 = scmp.lt.s32.totalorder %s2066, 63
          %s2068 = scalar_select %p2067, %s2066, 63
          %s2069 = smul.addr %s2068, 4
          %s2070 = scalar_lea.vmem %s4, %s2069
        $region68: #{gcn_forward.2} parent=63 // pred_fallthru
          _
      $region64: #{gcn_forward.2} parent=5 // pred_fallthru
        _
    $region6: #{gcn_forward.2} parent=1 // loop_footer
      %s18 = sadd.s32 1, %s14
    $region7: #{gcn_forward.2} parent=1 // loop_footer_branch
      %13 = sbr.rel target = $region3
    $region8: #{gcn_forward.2} parent=1 // loop_exit
      _
    %2071 = vsyncpa [#allocation4], 1
    %s2072 = scalar_lea.sflag [#allocation4], 1
    %2073 = vsyncpa %s2072, 1
    %2074 = vsyncpa [#allocation6], 1

</llo_original>
